<compile_context>
chip_gen: v5e
topology: v5e:2x2
jax: 0.10.0
libtpu: 0.0.40
codegen_flags: <defaults>
</compile_context>

<pallas_src>
import functools

import jax
import jax.numpy as jnp
from jax import lax
from jax.experimental import pallas as pl
from jax.experimental.pallas import tpu as pltpu


def _round_up(x, m):
    return ((x + m - 1) // m) * m


# ----------------------------------------------------------------------------
# Fused kernel factory (closes over static sizes)
# ----------------------------------------------------------------------------
def make_fused_lstm_kernel(num_layers, seq_len, batch_block, kp, hp, compute_dtype):
    T, B, Kp, Hp = seq_len, batch_block, kp, hp
    f32 = jnp.float32
    cd = compute_dtype
    H3 = 3 * Hp

    def kernel(x_ref, wih_ref, whh_ref, bias_ref, wlin_ref, blin_ref,
               out_ref, act_ref, gate_ref):
        layer = pl.program_id(1)

        # Stage this batch block of the time-major input into the persistent
        # activation scratch at the start of layer 0 (already compute dtype).
        @pl.when(layer == 0)
        def _():
            act_ref[...] = x_ref[...].reshape(T * B, Kp)

        # Whole-sequence input projection: one big MXU matmul, off the serial
        # critical path.  f32 accumulation into the f32 gate scratch.
        gate_ref[...] = (
            jnp.dot(act_ref[...], wih_ref[...], preferred_element_type=f32)
            + bias_ref[...])

        # Sequential recurrence: only h @ W_hh is on the critical path.
        # W_hh is read from the VMEM ref inside the body (not hoisted).
        # TODO(synk): stage W_hh once per layer via pltpu.matmul_push_rhs /
        #             matmul_acc_lhs / matmul_pop instead of a dot per step.
        def step(t, carry):
            h, c = carry
            row = t * B
            if B % 8 == 0:
                row = pl.multiple_of(row, 8)
            gates = gate_ref[pl.ds(row, B), :] + jnp.dot(
                h.astype(cd), whh_ref[...], preferred_element_type=f32)
            s = jax.nn.sigmoid(gates[:, 0:H3])        # [i, f, o] in one shot
            i_g = s[:, 0 * Hp:1 * Hp]
            f_g = s[:, 1 * Hp:2 * Hp]
            o_g = s[:, 2 * Hp:3 * Hp]
            g_g = jnp.tanh(gates[:, H3:4 * Hp])
            c = f_g * c + i_g * g_g
            h = o_g * jnp.tanh(c)
            # Store h for the next layer's batched input projection.
            if Kp == Hp:
                act_ref[pl.ds(row, B), :] = h.astype(act_ref.dtype)
            else:
                act_ref[pl.ds(row, B), pl.ds(0, Hp)] = h.astype(act_ref.dtype)
            return h, c

        h0 = jnp.zeros((B, Hp), f32)
        c0 = jnp.zeros((B, Hp), f32)
        h_last, _ = lax.fori_loop(0, T, step, (h0, c0),
                                  unroll=(True if T <= 16 else 8))

        # Fused final Linear(hidden, 1): VPU multiply + lane reduce.
        @pl.when(layer == num_layers - 1)
        def _():
            out = jnp.sum(h_last * wlin_ref[...], axis=-1, keepdims=True)
            out_ref[...] = (out + blin_ref[...]).astype(out_ref.dtype)

    return kernel


# ----------------------------------------------------------------------------
# Wrapper-side weight packing (pad + permute gates to [i, f, o, g])
# ----------------------------------------------------------------------------
_GATE_PERM = (0, 1, 3, 2)   # PyTorch [i, f, g, o] -> kernel [i, f, o, g]


def _pack_gate_cols(w, H, Hp):
    """(in_dim, 4H) in [i,f,g,o] -> (in_dim, 4Hp) in [i,f,o,g], each gate padded."""
    in_dim = w.shape[0]
    w4 = w.reshape(in_dim, 4, H)[:, _GATE_PERM, :]
    out = jnp.zeros((in_dim, 4, Hp), w.dtype).at[:, :, :H].set(w4)
    return out.reshape(in_dim, 4 * Hp)


def _pad_rows(w, rows):
    r, c = w.shape
    if r == rows:
        return w
    return jnp.zeros((rows, c), w.dtype).at[:r, :].set(w)


# ----------------------------------------------------------------------------
# Forward wrapper
# ----------------------------------------------------------------------------
@functools.partial(jax.jit,
                   static_argnames=("num_layers", "hidden_size", "compute_dtype"))
def multivariate_lstm_forward(x_bti, params, num_layers, hidden_size,
                              compute_dtype=jnp.bfloat16):
    """x_bti: (B, T, I) batch-first like the PyTorch module.  Returns (B, 1)."""
    B, T, I = x_bti.shape
    H = hidden_size
    Hp = _round_up(H, 128)            # lane-aligned gate blocks
    Kp = max(_round_up(I, 128), Hp)   # shared input width for all layers
    cd = compute_dtype

    # Dual-TensorCore batch split (v7x): only if both halves keep 8-sublane tiles.
    n_batch_blocks = 2 if (B % 2 == 0 and (B // 2) % 8 == 0) else 1
    bb = B // n_batch_blocks

    # ---- time-major, lane-padded input, cast to the MXU compute dtype ----
    x_tbk = jnp.transpose(x_bti, (1, 0, 2)).astype(cd)          # (T, B, I)
    x_p = jnp.zeros((T, B, Kp), cd).at[:, :, :I].set(x_tbk)     # (T, B, Kp)

    # ---- stacked, padded, gate-permuted weights (one block per layer) ----
    wih_l, whh_l, bias_l = [], [], []
    for layer in range(num_layers):
        w_ih, w_hh, bias = params[f"layer{layer}"]
        wih_l.append(_pad_rows(_pack_gate_cols(w_ih, H, Hp), Kp).astype(cd))
        whh_l.append(_pad_rows(_pack_gate_cols(w_hh, H, Hp), Hp).astype(cd))
        bias_l.append(_pack_gate_cols(bias.reshape(1, 4 * H), H, Hp)
                      .astype(jnp.float32))
    wih_s = jnp.stack(wih_l)                                    # (L, Kp, 4Hp)
    whh_s = jnp.stack(whh_l)                                    # (L, Hp, 4Hp)
    bias_s = jnp.stack(bias_l)                                  # (L, 1, 4Hp)

    w_lin, b_lin = params["linear"]
    wlin_p = jnp.zeros((1, Hp), jnp.float32).at[:, :H].set(w_lin.reshape(1, H))
    blin_p = b_lin.reshape(1, 1).astype(jnp.float32)

    # ---- explicit VMEM budget (BlockSpec blocks are double-buffered) ----
    csz = jnp.dtype(cd).itemsize
    four_hp = 4 * Hp
    vmem_bytes = (
        2 * T * bb * Kp * csz              # x block
        + 2 * Kp * four_hp * csz           # W_ih block
        + 2 * Hp * four_hp * csz           # W_hh block
        + 2 * four_hp * 4                  # bias block
        + 2 * (Hp + 1) * 4                 # linear weights
        + 2 * bb * 4                       # output block
        + T * bb * Kp * csz                # activation scratch
        + T * bb * four_hp * 4)            # gate scratch
    vmem_limit = int(min(max(vmem_bytes + (8 << 20), 32 << 20), 128 << 20))

    kernel = make_fused_lstm_kernel(num_layers, T, bb, Kp, Hp, cd)

    return pl.pallas_call(
        kernel,
        out_shape=jax.ShapeDtypeStruct((B, 1), jnp.float32),
        grid=(n_batch_blocks, num_layers),
        in_specs=[
            pl.BlockSpec((T, bb, Kp), lambda nb, l: (0, nb, 0)),        # x
            pl.BlockSpec((None, Kp, four_hp), lambda nb, l: (l, 0, 0)),  # W_ih
            pl.BlockSpec((None, Hp, four_hp), lambda nb, l: (l, 0, 0)),  # W_hh
            pl.BlockSpec((None, 1, four_hp), lambda nb, l: (l, 0, 0)),   # bias
            pl.BlockSpec((1, Hp), lambda nb, l: (0, 0)),                 # W_lin
            pl.BlockSpec((1, 1), lambda nb, l: (0, 0)),                  # b_lin
        ],
        out_specs=pl.BlockSpec((bb, 1), lambda nb, l: (nb, 0)),
        scratch_shapes=[
            pltpu.VMEM((T * bb, Kp), cd),                 # inter-layer activations
            pltpu.VMEM((T * bb, four_hp), jnp.float32),   # gate pre-activations
        ],
        compiler_params=pltpu.CompilerParams(
            dimension_semantics=("parallel", "arbitrary"),
            vmem_limit_bytes=vmem_limit),
    )(x_p, wih_s, whh_s, bias_s, wlin_p, blin_p)


# ----------------------------------------------------------------------------
# Pure-JAX reference (PyTorch LSTM semantics, gate order [i, f, g, o])
# ----------------------------------------------------------------------------
def reference_forward(x_bti, params, num_layers):
    B, T, I = x_bti.shape
    x = x_bti
    for layer in range(num_layers):
        w_ih, w_hh, bias = params[f"layer{layer}"]
        H = w_hh.shape[0]
        h = jnp.zeros((B, H), jnp.float32)
        c = jnp.zeros((B, H), jnp.float32)
        outs = []
        for t in range(T):
            gates = x[:, t, :] @ w_ih + h @ w_hh + bias
            i_g = jax.nn.sigmoid(gates[:, 0 * H:1 * H])
            f_g = jax.nn.sigmoid(gates[:, 1 * H:2 * H])
            g_g = jnp.tanh(gates[:, 2 * H:3 * H])
            o_g = jax.nn.sigmoid(gates[:, 3 * H:4 * H])
            c = f_g * c + i_g * g_g
            h = o_g * jnp.tanh(c)
            outs.append(h)
        x = jnp.stack(outs, axis=1)  # (B, T, H)
    w_lin, b_lin = params["linear"]
    return x[:, -1, :] @ w_lin + b_lin


# ----------------------------------------------------------------------------
# Deterministic parameter init (PyTorch-style uniform(-1/sqrt(H), 1/sqrt(H)))
# ----------------------------------------------------------------------------
def init_params(key, input_size, hidden_size, num_layers):
    params = {}
    bound = 1.0 / jnp.sqrt(hidden_size)
    for layer in range(num_layers):
        in_dim = input_size if layer == 0 else hidden_size
        key, k1, k2, k3, k4 = jax.random.split(key, 5)
        # stored pre-transposed: (in_dim, 4H) / (H, 4H); gate order [i,f,g,o]
        w_ih = jax.random.uniform(k1, (in_dim, 4 * hidden_size), jnp.float32,
                                  -bound, bound)
        w_hh = jax.random.uniform(k2, (hidden_size, 4 * hidden_size),
                                  jnp.float32, -bound, bound)
        b_ih = jax.random.uniform(k3, (4 * hidden_size,), jnp.float32,
                                  -bound, bound)
        b_hh = jax.random.uniform(k4, (4 * hidden_size,), jnp.float32,
                                  -bound, bound)
        params[f"layer{layer}"] = (w_ih, w_hh, b_ih + b_hh)
    key, k5, k6 = jax.random.split(key, 3)
    w_lin = jax.random.uniform(k5, (hidden_size, 1), jnp.float32, -bound, bound)
    b_lin = jax.random.uniform(k6, (1,), jnp.float32, -bound, bound)
    params["linear"] = (w_lin, b_lin)
    return params


if __name__ == "__main__":
    B, T, I, H, L = 8, 8, 32, 32, 2
    key = jax.random.PRNGKey(0)
    key, kx = jax.random.split(key)
    x = jax.random.normal(kx, (B, T, I), jnp.float32)
    params = init_params(key, I, H, L)

    ref = reference_forward(x, params, L)

    # f32 compute path: must match the pure-JAX reference tightly.
    out_f32 = jax.block_until_ready(
        multivariate_lstm_forward(x, params, L, H, compute_dtype=jnp.float32))
    assert out_f32.shape == (B, 1), out_f32.shape
    err32 = float(jnp.max(jnp.abs(out_f32 - ref)))
    assert err32 < 1e-3, f"f32 max abs err {err32}"

    # bf16-MXU path (fast default): looser tolerance vs the f32 reference.
    out_bf16 = jax.block_until_ready(
        multivariate_lstm_forward(x, params, L, H, compute_dtype=jnp.bfloat16))
    assert out_bf16.shape == (B, 1), out_bf16.shape
    err16 = float(jnp.max(jnp.abs(out_bf16 - ref)))
    assert err16 < 1e-1, f"bf16 max abs err {err16}"

    print("KERNEL_OK")
</pallas_src>

<mosaic_0001>
module attributes {stable_mosaic.version = 11 : i64} {
  func.func @kernel(%arg0: i32, %arg1: i32, %arg2: memref<8x8x128xf32, #tpu.memory_space<vmem>>, %arg3: memref<1x128x512xf32, #tpu.memory_space<vmem>>, %arg4: memref<1x128x512xf32, #tpu.memory_space<vmem>>, %arg5: memref<1x1x512xf32, #tpu.memory_space<vmem>>, %arg6: memref<1x128xf32, #tpu.memory_space<vmem>>, %arg7: memref<1x1xf32, #tpu.memory_space<vmem>>, %arg8: memref<8x1xf32, #tpu.memory_space<vmem>>, %arg9: memref<64x128xf32, #tpu.memory_space<vmem>>, %arg10: memref<64x512xf32, #tpu.memory_space<vmem>>) attributes {dimension_semantics = [#tpu.dimension_semantics<parallel>, #tpu.dimension_semantics<arbitrary>], iteration_bounds = array<i64: 1, 2>, scalar_prefetch = 0 : i64, scratch_operands = 2 : i64, tpu.core_type = #tpu.core_type<tc>, window_params = [{transform_indices = @transform_0, window_bounds = array<i64: 8, 8, 128>}, {transform_indices = @transform_1, window_bounds = array<i64: 1, 128, 512>}, {transform_indices = @transform_2, window_bounds = array<i64: 1, 128, 512>}, {transform_indices = @transform_3, window_bounds = array<i64: 1, 1, 512>}, {pipeline_mode = #tpu.pipeline_mode<synchronous>, transform_indices = @transform_4, window_bounds = array<i64: 1, 128>}, {pipeline_mode = #tpu.pipeline_mode<synchronous>, transform_indices = @transform_5, window_bounds = array<i64: 1, 1>}, {transform_indices = @transform_6, window_bounds = array<i64: 8, 1>}]} {
    %c0_i32 = arith.constant 0 : i32
    %0 = arith.cmpi eq, %arg1, %c0_i32 : i32
    %1 = arith.extui %0 : i1 to i32
    %c0_i32_0 = arith.constant 0 : i32
    %2 = arith.cmpi ne, %1, %c0_i32_0 : i32
    scf.if %2 {
      %c0_79 = arith.constant 0 : index
      %c0_80 = arith.constant 0 : index
      %c0_81 = arith.constant 0 : index
      %225 = vector.load %arg2[%c0_79, %c0_80, %c0_81] : memref<8x8x128xf32, #tpu.memory_space<vmem>>, vector<8x8x128xf32>
      %226 = vector.shape_cast %225 : vector<8x8x128xf32> to vector<64x128xf32>
      %c0_82 = arith.constant 0 : index
      %c0_83 = arith.constant 0 : index
      %227 = vector.load %arg9[%c0_82, %c0_83] : memref<64x128xf32, #tpu.memory_space<vmem>>, vector<64x128xf32>
      tpu.vector_store %arg9[%c0_82, %c0_83], %226 {strides = array<i32>} : memref<64x128xf32, #tpu.memory_space<vmem>>, vector<64x128xf32>,
    } else {
    }
    %c0 = arith.constant 0 : index
    %c0_1 = arith.constant 0 : index
    %3 = vector.load %arg9[%c0, %c0_1] : memref<64x128xf32, #tpu.memory_space<vmem>>, vector<64x128xf32>
    %c0_2 = arith.constant 0 : index
    %c0_3 = arith.constant 0 : index
    %c0_4 = arith.constant 0 : index
    %4 = vector.load %arg3[%c0_2, %c0_3, %c0_4] : memref<1x128x512xf32, #tpu.memory_space<vmem>>, vector<1x128x512xf32>
    %5 = vector.shape_cast %4 : vector<1x128x512xf32> to vector<128x512xf32>
    %cst = arith.constant dense<0.000000e+00> : vector<64x512xf32>
    %6 = tpu.matmul %3, %5, %cst {dimension_numbers = #tpu.dot_dimension_numbers<[1], [0], [0], [1], [0, 0, 1, 1], [], []>} : vector<64x128xf32>, vector<128x512xf32>, vector<64x512xf32> -> vector<64x512xf32>
    %c0_5 = arith.constant 0 : index
    %c0_6 = arith.constant 0 : index
    %c0_7 = arith.constant 0 : index
    %7 = vector.load %arg5[%c0_5, %c0_6, %c0_7] : memref<1x1x512xf32, #tpu.memory_space<vmem>>, vector<1x1x512xf32>
    %8 = vector.shape_cast %7 : vector<1x1x512xf32> to vector<1x512xf32>
    %9 = vector.broadcast %8 : vector<1x512xf32> to vector<64x512xf32>
    %10 = arith.addf %6, %9 : vector<64x512xf32>
    %c0_8 = arith.constant 0 : index
    %c0_9 = arith.constant 0 : index
    %11 = vector.load %arg10[%c0_8, %c0_9] : memref<64x512xf32, #tpu.memory_space<vmem>>, vector<64x512xf32>
    tpu.vector_store %arg10[%c0_8, %c0_9], %10 {strides = array<i32>} : memref<64x512xf32, #tpu.memory_space<vmem>>, vector<64x512xf32>,
    %cst_10 = arith.constant 0.000000e+00 : f32
    %12 = vector.broadcast %cst_10 : f32 to vector<8x128xf32>
    %cst_11 = arith.constant 0.000000e+00 : f32
    %13 = vector.broadcast %cst_11 : f32 to vector<8x128xf32>
    %c0_i32_12 = arith.constant 0 : i32
    %c8_i32 = arith.constant 8 : i32
    %14 = arith.muli %c0_i32_12, %c8_i32 : i32
    %15 = tpu.assume_multiple %14, 8 : i32
    %16 = arith.index_cast %15 : i32 to index
    %c0_13 = arith.constant 0 : index
    %17 = vector.load %arg10[%16, %c0_13] : memref<64x512xf32, #tpu.memory_space<vmem>>, vector<8x512xf32>
    %c0_14 = arith.constant 0 : index
    %c0_15 = arith.constant 0 : index
    %c0_16 = arith.constant 0 : index
    %18 = vector.load %arg4[%c0_14, %c0_15, %c0_16] : memref<1x128x512xf32, #tpu.memory_space<vmem>>, vector<1x128x512xf32>
    %19 = vector.shape_cast %18 : vector<1x128x512xf32> to vector<128x512xf32>
    %cst_17 = arith.constant dense<0.000000e+00> : vector<8x512xf32>
    %20 = tpu.matmul %12, %19, %cst_17 {dimension_numbers = #tpu.dot_dimension_numbers<[1], [0], [0], [1], [0, 0, 1, 1], [], []>} : vector<8x128xf32>, vector<128x512xf32>, vector<8x512xf32> -> vector<8x512xf32>
    %21 = arith.addf %17, %20 : vector<8x512xf32>
    %22 = vector.extract_strided_slice %21 {offsets = [0, 0], sizes = [8, 384], strides = [1, 1]} : vector<8x512xf32> to vector<8x384xf32>
    %23 = arith.negf %22 : vector<8x384xf32>
    %24 = math.exp %23 : vector<8x384xf32>
    %cst_18 = arith.constant 1.000000e+00 : f32
    %25 = vector.broadcast %cst_18 : f32 to vector<8x384xf32>
    %26 = arith.addf %25, %24 : vector<8x384xf32>
    %27 = arith.divf %25, %26 : vector<8x384xf32>
    %28 = vector.extract_strided_slice %27 {offsets = [0, 0], sizes = [8, 128], strides = [1, 1]} : vector<8x384xf32> to vector<8x128xf32>
    %29 = vector.extract_strided_slice %27 {offsets = [0, 128], sizes = [8, 128], strides = [1, 1]} : vector<8x384xf32> to vector<8x128xf32>
    %30 = vector.extract_strided_slice %27 {offsets = [0, 256], sizes = [8, 128], strides = [1, 1]} : vector<8x384xf32> to vector<8x128xf32>
    %31 = vector.extract_strided_slice %21 {offsets = [0, 384], sizes = [8, 128], strides = [1, 1]} : vector<8x512xf32> to vector<8x128xf32>
    %32 = math.tanh %31 : vector<8x128xf32>
    %33 = arith.mulf %29, %13 : vector<8x128xf32>
    %34 = arith.mulf %28, %32 : vector<8x128xf32>
    %35 = arith.addf %33, %34 : vector<8x128xf32>
    %36 = math.tanh %35 : vector<8x128xf32>
    %37 = arith.mulf %30, %36 : vector<8x128xf32>
    %38 = arith.index_cast %15 : i32 to index
    %c0_19 = arith.constant 0 : index
    %39 = vector.load %arg9[%38, %c0_19] : memref<64x128xf32, #tpu.memory_space<vmem>>, vector<8x128xf32>
    tpu.vector_store %arg9[%38, %c0_19], %37 {strides = array<i32>} : memref<64x128xf32, #tpu.memory_space<vmem>>, vector<8x128xf32>,
    %c1_i32 = arith.constant 1 : i32
    %c8_i32_20 = arith.constant 8 : i32
    %40 = arith.muli %c1_i32, %c8_i32_20 : i32
    %41 = tpu.assume_multiple %40, 8 : i32
    %42 = arith.index_cast %41 : i32 to index
    %c0_21 = arith.constant 0 : index
    %43 = vector.load %arg10[%42, %c0_21] : memref<64x512xf32, #tpu.memory_space<vmem>>, vector<8x512xf32>
    %c0_22 = arith.constant 0 : index
    %c0_23 = arith.constant 0 : index
    %c0_24 = arith.constant 0 : index
    %44 = vector.load %arg4[%c0_22, %c0_23, %c0_24] : memref<1x128x512xf32, #tpu.memory_space<vmem>>, vector<1x128x512xf32>
    %45 = vector.shape_cast %44 : vector<1x128x512xf32> to vector<128x512xf32>
    %cst_25 = arith.constant dense<0.000000e+00> : vector<8x512xf32>
    %46 = tpu.matmul %37, %45, %cst_25 {dimension_numbers = #tpu.dot_dimension_numbers<[1], [0], [0], [1], [0, 0, 1, 1], [], []>} : vector<8x128xf32>, vector<128x512xf32>, vector<8x512xf32> -> vector<8x512xf32>
    %47 = arith.addf %43, %46 : vector<8x512xf32>
    %48 = vector.extract_strided_slice %47 {offsets = [0, 0], sizes = [8, 384], strides = [1, 1]} : vector<8x512xf32> to vector<8x384xf32>
    %49 = arith.negf %48 : vector<8x384xf32>
    %50 = math.exp %49 : vector<8x384xf32>
    %cst_26 = arith.constant 1.000000e+00 : f32
    %51 = vector.broadcast %cst_26 : f32 to vector<8x384xf32>
    %52 = arith.addf %51, %50 : vector<8x384xf32>
    %53 = arith.divf %51, %52 : vector<8x384xf32>
    %54 = vector.extract_strided_slice %53 {offsets = [0, 0], sizes = [8, 128], strides = [1, 1]} : vector<8x384xf32> to vector<8x128xf32>
    %55 = vector.extract_strided_slice %53 {offsets = [0, 128], sizes = [8, 128], strides = [1, 1]} : vector<8x384xf32> to vector<8x128xf32>
    %56 = vector.extract_strided_slice %53 {offsets = [0, 256], sizes = [8, 128], strides = [1, 1]} : vector<8x384xf32> to vector<8x128xf32>
    %57 = vector.extract_strided_slice %47 {offsets = [0, 384], sizes = [8, 128], strides = [1, 1]} : vector<8x512xf32> to vector<8x128xf32>
    %58 = math.tanh %57 : vector<8x128xf32>
    %59 = arith.mulf %55, %35 : vector<8x128xf32>
    %60 = arith.mulf %54, %58 : vector<8x128xf32>
    %61 = arith.addf %59, %60 : vector<8x128xf32>
    %62 = math.tanh %61 : vector<8x128xf32>
    %63 = arith.mulf %56, %62 : vector<8x128xf32>
    %64 = arith.index_cast %41 : i32 to index
    %c0_27 = arith.constant 0 : index
    %65 = vector.load %arg9[%64, %c0_27] : memref<64x128xf32, #tpu.memory_space<vmem>>, vector<8x128xf32>
    tpu.vector_store %arg9[%64, %c0_27], %63 {strides = array<i32>} : memref<64x128xf32, #tpu.memory_space<vmem>>, vector<8x128xf32>,
    %c2_i32 = arith.constant 2 : i32
    %c8_i32_28 = arith.constant 8 : i32
    %66 = arith.muli %c2_i32, %c8_i32_28 : i32
    %67 = tpu.assume_multiple %66, 8 : i32
    %68 = arith.index_cast %67 : i32 to index
    %c0_29 = arith.constant 0 : index
    %69 = vector.load %arg10[%68, %c0_29] : memref<64x512xf32, #tpu.memory_space<vmem>>, vector<8x512xf32>
    %c0_30 = arith.constant 0 : index
    %c0_31 = arith.constant 0 : index
    %c0_32 = arith.constant 0 : index
    %70 = vector.load %arg4[%c0_30, %c0_31, %c0_32] : memref<1x128x512xf32, #tpu.memory_space<vmem>>, vector<1x128x512xf32>
    %71 = vector.shape_cast %70 : vector<1x128x512xf32> to vector<128x512xf32>
    %cst_33 = arith.constant dense<0.000000e+00> : vector<8x512xf32>
    %72 = tpu.matmul %63, %71, %cst_33 {dimension_numbers = #tpu.dot_dimension_numbers<[1], [0], [0], [1], [0, 0, 1, 1], [], []>} : vector<8x128xf32>, vector<128x512xf32>, vector<8x512xf32> -> vector<8x512xf32>
    %73 = arith.addf %69, %72 : vector<8x512xf32>
    %74 = vector.extract_strided_slice %73 {offsets = [0, 0], sizes = [8, 384], strides = [1, 1]} : vector<8x512xf32> to vector<8x384xf32>
    %75 = arith.negf %74 : vector<8x384xf32>
    %76 = math.exp %75 : vector<8x384xf32>
    %cst_34 = arith.constant 1.000000e+00 : f32
    %77 = vector.broadcast %cst_34 : f32 to vector<8x384xf32>
    %78 = arith.addf %77, %76 : vector<8x384xf32>
    %79 = arith.divf %77, %78 : vector<8x384xf32>
    %80 = vector.extract_strided_slice %79 {offsets = [0, 0], sizes = [8, 128], strides = [1, 1]} : vector<8x384xf32> to vector<8x128xf32>
    %81 = vector.extract_strided_slice %79 {offsets = [0, 128], sizes = [8, 128], strides = [1, 1]} : vector<8x384xf32> to vector<8x128xf32>
    %82 = vector.extract_strided_slice %79 {offsets = [0, 256], sizes = [8, 128], strides = [1, 1]} : vector<8x384xf32> to vector<8x128xf32>
    %83 = vector.extract_strided_slice %73 {offsets = [0, 384], sizes = [8, 128], strides = [1, 1]} : vector<8x512xf32> to vector<8x128xf32>
    %84 = math.tanh %83 : vector<8x128xf32>
    %85 = arith.mulf %81, %61 : vector<8x128xf32>
    %86 = arith.mulf %80, %84 : vector<8x128xf32>
    %87 = arith.addf %85, %86 : vector<8x128xf32>
    %88 = math.tanh %87 : vector<8x128xf32>
    %89 = arith.mulf %82, %88 : vector<8x128xf32>
    %90 = arith.index_cast %67 : i32 to index
    %c0_35 = arith.constant 0 : index
    %91 = vector.load %arg9[%90, %c0_35] : memref<64x128xf32, #tpu.memory_space<vmem>>, vector<8x128xf32>
    tpu.vector_store %arg9[%90, %c0_35], %89 {strides = array<i32>} : memref<64x128xf32, #tpu.memory_space<vmem>>, vector<8x128xf32>,
    %c3_i32 = arith.constant 3 : i32
    %c8_i32_36 = arith.constant 8 : i32
    %92 = arith.muli %c3_i32, %c8_i32_36 : i32
    %93 = tpu.assume_multiple %92, 8 : i32
    %94 = arith.index_cast %93 : i32 to index
    %c0_37 = arith.constant 0 : index
    %95 = vector.load %arg10[%94, %c0_37] : memref<64x512xf32, #tpu.memory_space<vmem>>, vector<8x512xf32>
    %c0_38 = arith.constant 0 : index
    %c0_39 = arith.constant 0 : index
    %c0_40 = arith.constant 0 : index
    %96 = vector.load %arg4[%c0_38, %c0_39, %c0_40] : memref<1x128x512xf32, #tpu.memory_space<vmem>>, vector<1x128x512xf32>
    %97 = vector.shape_cast %96 : vector<1x128x512xf32> to vector<128x512xf32>
    %cst_41 = arith.constant dense<0.000000e+00> : vector<8x512xf32>
    %98 = tpu.matmul %89, %97, %cst_41 {dimension_numbers = #tpu.dot_dimension_numbers<[1], [0], [0], [1], [0, 0, 1, 1], [], []>} : vector<8x128xf32>, vector<128x512xf32>, vector<8x512xf32> -> vector<8x512xf32>
    %99 = arith.addf %95, %98 : vector<8x512xf32>
    %100 = vector.extract_strided_slice %99 {offsets = [0, 0], sizes = [8, 384], strides = [1, 1]} : vector<8x512xf32> to vector<8x384xf32>
    %101 = arith.negf %100 : vector<8x384xf32>
    %102 = math.exp %101 : vector<8x384xf32>
    %cst_42 = arith.constant 1.000000e+00 : f32
    %103 = vector.broadcast %cst_42 : f32 to vector<8x384xf32>
    %104 = arith.addf %103, %102 : vector<8x384xf32>
    %105 = arith.divf %103, %104 : vector<8x384xf32>
    %106 = vector.extract_strided_slice %105 {offsets = [0, 0], sizes = [8, 128], strides = [1, 1]} : vector<8x384xf32> to vector<8x128xf32>
    %107 = vector.extract_strided_slice %105 {offsets = [0, 128], sizes = [8, 128], strides = [1, 1]} : vector<8x384xf32> to vector<8x128xf32>
    %108 = vector.extract_strided_slice %105 {offsets = [0, 256], sizes = [8, 128], strides = [1, 1]} : vector<8x384xf32> to vector<8x128xf32>
    %109 = vector.extract_strided_slice %99 {offsets = [0, 384], sizes = [8, 128], strides = [1, 1]} : vector<8x512xf32> to vector<8x128xf32>
    %110 = math.tanh %109 : vector<8x128xf32>
    %111 = arith.mulf %107, %87 : vector<8x128xf32>
    %112 = arith.mulf %106, %110 : vector<8x128xf32>
    %113 = arith.addf %111, %112 : vector<8x128xf32>
    %114 = math.tanh %113 : vector<8x128xf32>
    %115 = arith.mulf %108, %114 : vector<8x128xf32>
    %116 = arith.index_cast %93 : i32 to index
    %c0_43 = arith.constant 0 : index
    %117 = vector.load %arg9[%116, %c0_43] : memref<64x128xf32, #tpu.memory_space<vmem>>, vector<8x128xf32>
    tpu.vector_store %arg9[%116, %c0_43], %115 {strides = array<i32>} : memref<64x128xf32, #tpu.memory_space<vmem>>, vector<8x128xf32>,
    %c4_i32 = arith.constant 4 : i32
    %c8_i32_44 = arith.constant 8 : i32
    %118 = arith.muli %c4_i32, %c8_i32_44 : i32
    %119 = tpu.assume_multiple %118, 8 : i32
    %120 = arith.index_cast %119 : i32 to index
    %c0_45 = arith.constant 0 : index
    %121 = vector.load %arg10[%120, %c0_45] : memref<64x512xf32, #tpu.memory_space<vmem>>, vector<8x512xf32>
    %c0_46 = arith.constant 0 : index
    %c0_47 = arith.constant 0 : index
    %c0_48 = arith.constant 0 : index
    %122 = vector.load %arg4[%c0_46, %c0_47, %c0_48] : memref<1x128x512xf32, #tpu.memory_space<vmem>>, vector<1x128x512xf32>
    %123 = vector.shape_cast %122 : vector<1x128x512xf32> to vector<128x512xf32>
    %cst_49 = arith.constant dense<0.000000e+00> : vector<8x512xf32>
    %124 = tpu.matmul %115, %123, %cst_49 {dimension_numbers = #tpu.dot_dimension_numbers<[1], [0], [0], [1], [0, 0, 1, 1], [], []>} : vector<8x128xf32>, vector<128x512xf32>, vector<8x512xf32> -> vector<8x512xf32>
    %125 = arith.addf %121, %124 : vector<8x512xf32>
    %126 = vector.extract_strided_slice %125 {offsets = [0, 0], sizes = [8, 384], strides = [1, 1]} : vector<8x512xf32> to vector<8x384xf32>
    %127 = arith.negf %126 : vector<8x384xf32>
    %128 = math.exp %127 : vector<8x384xf32>
    %cst_50 = arith.constant 1.000000e+00 : f32
    %129 = vector.broadcast %cst_50 : f32 to vector<8x384xf32>
    %130 = arith.addf %129, %128 : vector<8x384xf32>
    %131 = arith.divf %129, %130 : vector<8x384xf32>
    %132 = vector.extract_strided_slice %131 {offsets = [0, 0], sizes = [8, 128], strides = [1, 1]} : vector<8x384xf32> to vector<8x128xf32>
    %133 = vector.extract_strided_slice %131 {offsets = [0, 128], sizes = [8, 128], strides = [1, 1]} : vector<8x384xf32> to vector<8x128xf32>
    %134 = vector.extract_strided_slice %131 {offsets = [0, 256], sizes = [8, 128], strides = [1, 1]} : vector<8x384xf32> to vector<8x128xf32>
    %135 = vector.extract_strided_slice %125 {offsets = [0, 384], sizes = [8, 128], strides = [1, 1]} : vector<8x512xf32> to vector<8x128xf32>
    %136 = math.tanh %135 : vector<8x128xf32>
    %137 = arith.mulf %133, %113 : vector<8x128xf32>
    %138 = arith.mulf %132, %136 : vector<8x128xf32>
    %139 = arith.addf %137, %138 : vector<8x128xf32>
    %140 = math.tanh %139 : vector<8x128xf32>
    %141 = arith.mulf %134, %140 : vector<8x128xf32>
    %142 = arith.index_cast %119 : i32 to index
    %c0_51 = arith.constant 0 : index
    %143 = vector.load %arg9[%142, %c0_51] : memref<64x128xf32, #tpu.memory_space<vmem>>, vector<8x128xf32>
    tpu.vector_store %arg9[%142, %c0_51], %141 {strides = array<i32>} : memref<64x128xf32, #tpu.memory_space<vmem>>, vector<8x128xf32>,
    %c5_i32 = arith.constant 5 : i32
    %c8_i32_52 = arith.constant 8 : i32
    %144 = arith.muli %c5_i32, %c8_i32_52 : i32
    %145 = tpu.assume_multiple %144, 8 : i32
    %146 = arith.index_cast %145 : i32 to index
    %c0_53 = arith.constant 0 : index
    %147 = vector.load %arg10[%146, %c0_53] : memref<64x512xf32, #tpu.memory_space<vmem>>, vector<8x512xf32>
    %c0_54 = arith.constant 0 : index
    %c0_55 = arith.constant 0 : index
    %c0_56 = arith.constant 0 : index
    %148 = vector.load %arg4[%c0_54, %c0_55, %c0_56] : memref<1x128x512xf32, #tpu.memory_space<vmem>>, vector<1x128x512xf32>
    %149 = vector.shape_cast %148 : vector<1x128x512xf32> to vector<128x512xf32>
    %cst_57 = arith.constant dense<0.000000e+00> : vector<8x512xf32>
    %150 = tpu.matmul %141, %149, %cst_57 {dimension_numbers = #tpu.dot_dimension_numbers<[1], [0], [0], [1], [0, 0, 1, 1], [], []>} : vector<8x128xf32>, vector<128x512xf32>, vector<8x512xf32> -> vector<8x512xf32>
    %151 = arith.addf %147, %150 : vector<8x512xf32>
    %152 = vector.extract_strided_slice %151 {offsets = [0, 0], sizes = [8, 384], strides = [1, 1]} : vector<8x512xf32> to vector<8x384xf32>
    %153 = arith.negf %152 : vector<8x384xf32>
    %154 = math.exp %153 : vector<8x384xf32>
    %cst_58 = arith.constant 1.000000e+00 : f32
    %155 = vector.broadcast %cst_58 : f32 to vector<8x384xf32>
    %156 = arith.addf %155, %154 : vector<8x384xf32>
    %157 = arith.divf %155, %156 : vector<8x384xf32>
    %158 = vector.extract_strided_slice %157 {offsets = [0, 0], sizes = [8, 128], strides = [1, 1]} : vector<8x384xf32> to vector<8x128xf32>
    %159 = vector.extract_strided_slice %157 {offsets = [0, 128], sizes = [8, 128], strides = [1, 1]} : vector<8x384xf32> to vector<8x128xf32>
    %160 = vector.extract_strided_slice %157 {offsets = [0, 256], sizes = [8, 128], strides = [1, 1]} : vector<8x384xf32> to vector<8x128xf32>
    %161 = vector.extract_strided_slice %151 {offsets = [0, 384], sizes = [8, 128], strides = [1, 1]} : vector<8x512xf32> to vector<8x128xf32>
    %162 = math.tanh %161 : vector<8x128xf32>
    %163 = arith.mulf %159, %139 : vector<8x128xf32>
    %164 = arith.mulf %158, %162 : vector<8x128xf32>
    %165 = arith.addf %163, %164 : vector<8x128xf32>
    %166 = math.tanh %165 : vector<8x128xf32>
    %167 = arith.mulf %160, %166 : vector<8x128xf32>
    %168 = arith.index_cast %145 : i32 to index
    %c0_59 = arith.constant 0 : index
    %169 = vector.load %arg9[%168, %c0_59] : memref<64x128xf32, #tpu.memory_space<vmem>>, vector<8x128xf32>
    tpu.vector_store %arg9[%168, %c0_59], %167 {strides = array<i32>} : memref<64x128xf32, #tpu.memory_space<vmem>>, vector<8x128xf32>,
    %c6_i32 = arith.constant 6 : i32
    %c8_i32_60 = arith.constant 8 : i32
    %170 = arith.muli %c6_i32, %c8_i32_60 : i32
    %171 = tpu.assume_multiple %170, 8 : i32
    %172 = arith.index_cast %171 : i32 to index
    %c0_61 = arith.constant 0 : index
    %173 = vector.load %arg10[%172, %c0_61] : memref<64x512xf32, #tpu.memory_space<vmem>>, vector<8x512xf32>
    %c0_62 = arith.constant 0 : index
    %c0_63 = arith.constant 0 : index
    %c0_64 = arith.constant 0 : index
    %174 = vector.load %arg4[%c0_62, %c0_63, %c0_64] : memref<1x128x512xf32, #tpu.memory_space<vmem>>, vector<1x128x512xf32>
    %175 = vector.shape_cast %174 : vector<1x128x512xf32> to vector<128x512xf32>
    %cst_65 = arith.constant dense<0.000000e+00> : vector<8x512xf32>
    %176 = tpu.matmul %167, %175, %cst_65 {dimension_numbers = #tpu.dot_dimension_numbers<[1], [0], [0], [1], [0, 0, 1, 1], [], []>} : vector<8x128xf32>, vector<128x512xf32>, vector<8x512xf32> -> vector<8x512xf32>
    %177 = arith.addf %173, %176 : vector<8x512xf32>
    %178 = vector.extract_strided_slice %177 {offsets = [0, 0], sizes = [8, 384], strides = [1, 1]} : vector<8x512xf32> to vector<8x384xf32>
    %179 = arith.negf %178 : vector<8x384xf32>
    %180 = math.exp %179 : vector<8x384xf32>
    %cst_66 = arith.constant 1.000000e+00 : f32
    %181 = vector.broadcast %cst_66 : f32 to vector<8x384xf32>
    %182 = arith.addf %181, %180 : vector<8x384xf32>
    %183 = arith.divf %181, %182 : vector<8x384xf32>
    %184 = vector.extract_strided_slice %183 {offsets = [0, 0], sizes = [8, 128], strides = [1, 1]} : vector<8x384xf32> to vector<8x128xf32>
    %185 = vector.extract_strided_slice %183 {offsets = [0, 128], sizes = [8, 128], strides = [1, 1]} : vector<8x384xf32> to vector<8x128xf32>
    %186 = vector.extract_strided_slice %183 {offsets = [0, 256], sizes = [8, 128], strides = [1, 1]} : vector<8x384xf32> to vector<8x128xf32>
    %187 = vector.extract_strided_slice %177 {offsets = [0, 384], sizes = [8, 128], strides = [1, 1]} : vector<8x512xf32> to vector<8x128xf32>
    %188 = math.tanh %187 : vector<8x128xf32>
    %189 = arith.mulf %185, %165 : vector<8x128xf32>
    %190 = arith.mulf %184, %188 : vector<8x128xf32>
    %191 = arith.addf %189, %190 : vector<8x128xf32>
    %192 = math.tanh %191 : vector<8x128xf32>
    %193 = arith.mulf %186, %192 : vector<8x128xf32>
    %194 = arith.index_cast %171 : i32 to index
    %c0_67 = arith.constant 0 : index
    %195 = vector.load %arg9[%194, %c0_67] : memref<64x128xf32, #tpu.memory_space<vmem>>, vector<8x128xf32>
    tpu.vector_store %arg9[%194, %c0_67], %193 {strides = array<i32>} : memref<64x128xf32, #tpu.memory_space<vmem>>, vector<8x128xf32>,
    %c7_i32 = arith.constant 7 : i32
    %c8_i32_68 = arith.constant 8 : i32
    %196 = arith.muli %c7_i32, %c8_i32_68 : i32
    %197 = tpu.assume_multiple %196, 8 : i32
    %198 = arith.index_cast %197 : i32 to index
    %c0_69 = arith.constant 0 : index
    %199 = vector.load %arg10[%198, %c0_69] : memref<64x512xf32, #tpu.memory_space<vmem>>, vector<8x512xf32>
    %c0_70 = arith.constant 0 : index
    %c0_71 = arith.constant 0 : index
    %c0_72 = arith.constant 0 : index
    %200 = vector.load %arg4[%c0_70, %c0_71, %c0_72] : memref<1x128x512xf32, #tpu.memory_space<vmem>>, vector<1x128x512xf32>
    %201 = vector.shape_cast %200 : vector<1x128x512xf32> to vector<128x512xf32>
    %cst_73 = arith.constant dense<0.000000e+00> : vector<8x512xf32>
    %202 = tpu.matmul %193, %201, %cst_73 {dimension_numbers = #tpu.dot_dimension_numbers<[1], [0], [0], [1], [0, 0, 1, 1], [], []>} : vector<8x128xf32>, vector<128x512xf32>, vector<8x512xf32> -> vector<8x512xf32>
    %203 = arith.addf %199, %202 : vector<8x512xf32>
    %204 = vector.extract_strided_slice %203 {offsets = [0, 0], sizes = [8, 384], strides = [1, 1]} : vector<8x512xf32> to vector<8x384xf32>
    %205 = arith.negf %204 : vector<8x384xf32>
    %206 = math.exp %205 : vector<8x384xf32>
    %cst_74 = arith.constant 1.000000e+00 : f32
    %207 = vector.broadcast %cst_74 : f32 to vector<8x384xf32>
    %208 = arith.addf %207, %206 : vector<8x384xf32>
    %209 = arith.divf %207, %208 : vector<8x384xf32>
    %210 = vector.extract_strided_slice %209 {offsets = [0, 0], sizes = [8, 128], strides = [1, 1]} : vector<8x384xf32> to vector<8x128xf32>
    %211 = vector.extract_strided_slice %209 {offsets = [0, 128], sizes = [8, 128], strides = [1, 1]} : vector<8x384xf32> to vector<8x128xf32>
    %212 = vector.extract_strided_slice %209 {offsets = [0, 256], sizes = [8, 128], strides = [1, 1]} : vector<8x384xf32> to vector<8x128xf32>
    %213 = vector.extract_strided_slice %203 {offsets = [0, 384], sizes = [8, 128], strides = [1, 1]} : vector<8x512xf32> to vector<8x128xf32>
    %214 = math.tanh %213 : vector<8x128xf32>
    %215 = arith.mulf %211, %191 : vector<8x128xf32>
    %216 = arith.mulf %210, %214 : vector<8x128xf32>
    %217 = arith.addf %215, %216 : vector<8x128xf32>
    %218 = math.tanh %217 : vector<8x128xf32>
    %219 = arith.mulf %212, %218 : vector<8x128xf32>
    %220 = arith.index_cast %197 : i32 to index
    %c0_75 = arith.constant 0 : index
    %221 = vector.load %arg9[%220, %c0_75] : memref<64x128xf32, #tpu.memory_space<vmem>>, vector<8x128xf32>
    tpu.vector_store %arg9[%220, %c0_75], %219 {strides = array<i32>} : memref<64x128xf32, #tpu.memory_space<vmem>>, vector<8x128xf32>,
    %c8_i32_76 = arith.constant 8 : i32
    %c1_i32_77 = arith.constant 1 : i32
    %222 = arith.cmpi eq, %arg1, %c1_i32_77 : i32
    %223 = arith.extui %222 : i1 to i32
    %c0_i32_78 = arith.constant 0 : i32
    %224 = arith.cmpi ne, %223, %c0_i32_78 : i32
    scf.if %224 {
      %c0_79 = arith.constant 0 : index
      %c0_80 = arith.constant 0 : index
      %225 = vector.load %arg6[%c0_79, %c0_80] : memref<1x128xf32, #tpu.memory_space<vmem>>, vector<1x128xf32>
      %226 = vector.broadcast %225 : vector<1x128xf32> to vector<8x128xf32>
      %227 = arith.mulf %219, %226 : vector<8x128xf32>
      %cst_81 = arith.constant dense<0.000000e+00> : vector<8xf32>
      %228 = vector.multi_reduction <add>, %227, %cst_81 [1] : vector<8x128xf32> to vector<8xf32>
      %229 = vector.shape_cast %228 : vector<8xf32> to vector<8x1xf32>
      %c0_82 = arith.constant 0 : index
      %c0_83 = arith.constant 0 : index
      %230 = vector.load %arg7[%c0_82, %c0_83] : memref<1x1xf32, #tpu.memory_space<vmem>>, vector<1x1xf32>
      %231 = vector.broadcast %230 : vector<1x1xf32> to vector<8x1xf32>
      %232 = arith.addf %229, %231 : vector<8x1xf32>
      %c0_84 = arith.constant 0 : index
      %c0_85 = arith.constant 0 : index
      %233 = vector.load %arg8[%c0_84, %c0_85] : memref<8x1xf32, #tpu.memory_space<vmem>>, vector<8x1xf32>
      tpu.vector_store %arg8[%c0_84, %c0_85], %232 {strides = array<i32>} : memref<8x1xf32, #tpu.memory_space<vmem>>, vector<8x1xf32>,
    } else {
    }
    return
  }
  func.func @transform_0(%arg0: i32, %arg1: i32) -> (i32, i32, i32) {
    %c0_i32 = arith.constant 0 : i32
    %c0_i32_0 = arith.constant 0 : i32
    %c0_i32_1 = arith.constant 0 : i32
    return %c0_i32, %arg0, %c0_i32_0 : i32, i32, i32
  }
  func.func @transform_1(%arg0: i32, %arg1: i32) -> (i32, i32, i32) {
    %c0_i32 = arith.constant 0 : i32
    %c0_i32_0 = arith.constant 0 : i32
    %c0_i32_1 = arith.constant 0 : i32
    return %arg1, %c0_i32, %c0_i32_0 : i32, i32, i32
  }
  func.func @transform_2(%arg0: i32, %arg1: i32) -> (i32, i32, i32) {
    %c0_i32 = arith.constant 0 : i32
    %c0_i32_0 = arith.constant 0 : i32
    %c0_i32_1 = arith.constant 0 : i32
    return %arg1, %c0_i32, %c0_i32_0 : i32, i32, i32
  }
  func.func @transform_3(%arg0: i32, %arg1: i32) -> (i32, i32, i32) {
    %c0_i32 = arith.constant 0 : i32
    %c0_i32_0 = arith.constant 0 : i32
    %c0_i32_1 = arith.constant 0 : i32
    return %arg1, %c0_i32, %c0_i32_0 : i32, i32, i32
  }
  func.func @transform_4(%arg0: i32, %arg1: i32) -> (i32, i32) {
    %c0_i32 = arith.constant 0 : i32
    %c0_i32_0 = arith.constant 0 : i32
    %c0_i32_1 = arith.constant 0 : i32
    return %c0_i32, %c0_i32_0 : i32, i32
  }
  func.func @transform_5(%arg0: i32, %arg1: i32) -> (i32, i32) {
    %c0_i32 = arith.constant 0 : i32
    %c0_i32_0 = arith.constant 0 : i32
    %c0_i32_1 = arith.constant 0 : i32
    return %c0_i32, %c0_i32_0 : i32, i32
  }
  func.func @transform_6(%arg0: i32, %arg1: i32) -> (i32, i32) {
    %c0_i32 = arith.constant 0 : i32
    %c0_i32_0 = arith.constant 0 : i32
    return %arg0, %c0_i32 : i32, i32
  }
}

</mosaic_0001>

<llo_original>
// kernel: multivariate_lstm_forward.1
$region0: #{multivariate_lstm_forward.1}
  #allocation0 [shape = 'u32[]', space=smem, size = 0x4, offset = 0x4, fixed_abs, tag = 'smem constant byte address 0x4 - core index']
  #allocation1 [shape = 'u32[72,128]{1,0:T(1,128)}', space=vmem, size = 0x9000, scoped, tag = 'internal scratch']
  #allocation2 [shape = 'f32[64,128]{1,0:T(8,128)}', space=vmem, size = 0x8000, scoped, tag = 'scratch operand']
  #allocation3 [shape = 'f32[64,512]{1,0:T(8,128)}', space=vmem, size = 0x20000, scoped, tag = 'scratch operand']
  #allocation4 [shape = 'f32[1,1]{1,0:T(1,128)S(1)}', space=vmem, size = 0x200, scoped, tag = 'scoped memory for multivariate_lstm_forward.1']
  %s0 = inlined_call_operand.vmem [shape: f32[8,8,128], index: 0, kind: input, shape index: {}]
  %s1 = inlined_call_operand.vmem [shape: f32[2,128,512], index: 1, kind: input, shape index: {}]
  %s2 = inlined_call_operand.vmem [shape: f32[2,128,512], index: 2, kind: input, shape index: {}]
  %s3 = inlined_call_operand.vmem [shape: f32[2,1,512], index: 3, kind: input, shape index: {}]
  %s4 = inlined_call_operand.vmem [shape: f32[1,128], index: 4, kind: input, shape index: {}]
  %s5 = inlined_call_operand.<no memory space> [shape: f32[1,1], index: 5, kind: input, shape index: {}]
  %s6 = inlined_call_operand.vmem [shape: f32[8,1], index: 6, kind: output, shape index: {}]
  %s7 = sld [smem:[#allocation0]]
  $region65: #{multivariate_lstm_forward.1} parent=0
    _
  %s9 = ssub.s32 1, %s7
  %s10 = scalar_select 0, %s9, %s7
  %v11 = vstv %s5
  %12 = vst [vmem:[#allocation4] sm:$0x1] %v11
  loop: start=0, step=1, limit=4
  $region2: #{multivariate_lstm_forward.1} parent=0 // loop_pre_header
    _
  $region3: #{multivariate_lstm_forward.1} parent=0 // loop_header
    %s14 = sphi 0, %s18
    %p15 = scmp.ge.s32.totalorder %s14, 4
    %s21 = sphi 0, %s33
    %s22 = sphi 0, %s29
    %s23 = sphi 0, %s21
    %s24 = sphi 0, %s22
    %s25 = sphi 0, %s23
    %s26 = sphi 0, %s24
    %s36 = sphi 0, %s38
    %s39 = sphi 0, %s36
    %s40 = sphi 0, %s39
    %s56 = sphi 0, %s40
    %s62 = sphi 0, %s64
    %s65 = sphi 0, %s62
    %s66 = sphi 0, %s65
    %s82 = sphi 0, %s66
    %s88 = sphi 0, %s90
    %s91 = sphi 0, %s88
    %s92 = sphi 0, %s91
    %s108 = sphi 0, %s92
    %s114 = sphi 0, %s116
    %s117 = sphi 0, %s114
    %s118 = sphi 0, %s117
    %s134 = sphi 0, %s118
    %s138 = sphi 0, %s138
    %s140 = sphi 0, %s138
    %s141 = sphi 0, %s140
    %s155 = sphi 0, %s141
    %s159 = sphi 0, %s159
    %s161 = sphi 0, %s159
    %s162 = sphi 0, %s161
    %s176 = sphi 0, %s162
    %s182 = sphi 0, %s184
    %s185 = sphi 0, %s182
    %s186 = sphi 0, %s185
    %s202 = sphi 0, %s186
  $region4: #{multivariate_lstm_forward.1} parent=0 // loop_header_branch
    %17 = sbr.rel (%p15) target = $region8
  $region5: #{multivariate_lstm_forward.1} parent=0 // loop_body
    %s19 = ssub.s32 %s14, 1
    %s20 = ssub.s32 %s14, 2
    %s27 = sadd.s32 1, %s22
    %p28 = scmp.ge.s32.totalorder %s27, 2
    %s29 = scalar_select %p28, 0, %s27
    %s30 = sadd.s32 1, %s21
    %s31 = scalar_select %p28, %s30, %s21
    %p32 = scmp.ge.s32.totalorder %s31, 1
    %s33 = scalar_select %p32, 0, %s31
    %s34 = ssub.s32 %s21, %s33
    %p35 = scmp.eq.s32.totalorder %s34, 0
    %s37 = sadd.s32 %s36, 1
    %s38 = scalar_select %p35, %s36, %s37
    %p41 = pneg %p35
    %p42 = scmp.eq.s32.totalorder %s14, 1
    %p43 = por %p41, %p42
    %p44 = scmp.ne.s32.totalorder %s36, %s39
    %p45 = scmp.eq.s32.totalorder %s14, 0
    %p46 = por %p44, %p45
    %p47 = scmp.ne.s32.totalorder %s36, %s39
    %p48 = scmp.eq.s32.totalorder %s19, 1
    %p49 = por %p47, %p48
    %p50 = scmp.ne.s32.totalorder %s39, %s40
    %p51 = scmp.eq.s32.totalorder %s19, 0
    %p52 = por %p50, %p51
    %p53 = scmp.ne.s32.totalorder %s39, %s40
    %p54 = scmp.eq.s32.totalorder %s20, 1
    %p55 = por %p53, %p54
    %p57 = scmp.ne.s32.totalorder %s40, %s56
    %p58 = scmp.eq.s32.totalorder %s20, 0
    %p59 = por %p57, %p58
    %s60 = ssub.s32 %s22, %s29
    %p61 = scmp.eq.s32.totalorder %s60, 0
    %s63 = sadd.s32 %s62, 1
    %s64 = scalar_select %p61, %s62, %s63
    %p67 = pneg %p61
    %p68 = scmp.eq.s32.totalorder %s14, 1
    %p69 = por %p67, %p68
    %p70 = scmp.ne.s32.totalorder %s62, %s65
    %p71 = scmp.eq.s32.totalorder %s14, 0
    %p72 = por %p70, %p71
    %p73 = scmp.ne.s32.totalorder %s62, %s65
    %p74 = scmp.eq.s32.totalorder %s19, 1
    %p75 = por %p73, %p74
    %p76 = scmp.ne.s32.totalorder %s65, %s66
    %p77 = scmp.eq.s32.totalorder %s19, 0
    %p78 = por %p76, %p77
    %p79 = scmp.ne.s32.totalorder %s65, %s66
    %p80 = scmp.eq.s32.totalorder %s20, 1
    %p81 = por %p79, %p80
    %p83 = scmp.ne.s32.totalorder %s66, %s82
    %p84 = scmp.eq.s32.totalorder %s20, 0
    %p85 = por %p83, %p84
    %s86 = ssub.s32 %s22, %s29
    %p87 = scmp.eq.s32.totalorder %s86, 0
    %s89 = sadd.s32 %s88, 1
    %s90 = scalar_select %p87, %s88, %s89
    %p93 = pneg %p87
    %p94 = scmp.eq.s32.totalorder %s14, 1
    %p95 = por %p93, %p94
    %p96 = scmp.ne.s32.totalorder %s88, %s91
    %p97 = scmp.eq.s32.totalorder %s14, 0
    %p98 = por %p96, %p97
    %p99 = scmp.ne.s32.totalorder %s88, %s91
    %p100 = scmp.eq.s32.totalorder %s19, 1
    %p101 = por %p99, %p100
    %p102 = scmp.ne.s32.totalorder %s91, %s92
    %p103 = scmp.eq.s32.totalorder %s19, 0
    %p104 = por %p102, %p103
    %p105 = scmp.ne.s32.totalorder %s91, %s92
    %p106 = scmp.eq.s32.totalorder %s20, 1
    %p107 = por %p105, %p106
    %p109 = scmp.ne.s32.totalorder %s92, %s108
    %p110 = scmp.eq.s32.totalorder %s20, 0
    %p111 = por %p109, %p110
    %s112 = ssub.s32 %s22, %s29
    %p113 = scmp.eq.s32.totalorder %s112, 0
    %s115 = sadd.s32 %s114, 1
    %s116 = scalar_select %p113, %s114, %s115
    %p119 = pneg %p113
    %p120 = scmp.eq.s32.totalorder %s14, 1
    %p121 = por %p119, %p120
    %p122 = scmp.ne.s32.totalorder %s114, %s117
    %p123 = scmp.eq.s32.totalorder %s14, 0
    %p124 = por %p122, %p123
    %p125 = scmp.ne.s32.totalorder %s114, %s117
    %p126 = scmp.eq.s32.totalorder %s19, 1
    %p127 = por %p125, %p126
    %p128 = scmp.ne.s32.totalorder %s117, %s118
    %p129 = scmp.eq.s32.totalorder %s19, 0
    %p130 = por %p128, %p129
    %p131 = scmp.ne.s32.totalorder %s117, %s118
    %p132 = scmp.eq.s32.totalorder %s20, 1
    %p133 = por %p131, %p132
    %p135 = scmp.ne.s32.totalorder %s118, %s134
    %p136 = scmp.eq.s32.totalorder %s20, 0
    %p137 = por %p135, %p136
    %s139 = sadd.s32 %s138, 1
    %p142 = scmp.eq.s32.totalorder %s14, 1
    %p143 = scmp.ne.s32.totalorder %s138, %s140
    %p144 = scmp.eq.s32.totalorder %s14, 0
    %p145 = por %p143, %p144
    %p146 = scmp.ne.s32.totalorder %s138, %s140
    %p147 = scmp.eq.s32.totalorder %s19, 1
    %p148 = por %p146, %p147
    %p149 = scmp.ne.s32.totalorder %s140, %s141
    %p150 = scmp.eq.s32.totalorder %s19, 0
    %p151 = por %p149, %p150
    %p152 = scmp.ne.s32.totalorder %s140, %s141
    %p153 = scmp.eq.s32.totalorder %s20, 1
    %p154 = por %p152, %p153
    %p156 = scmp.ne.s32.totalorder %s141, %s155
    %p157 = scmp.eq.s32.totalorder %s20, 0
    %p158 = por %p156, %p157
    %s160 = sadd.s32 %s159, 1
    %p163 = scmp.eq.s32.totalorder %s14, 1
    %p164 = scmp.ne.s32.totalorder %s159, %s161
    %p165 = scmp.eq.s32.totalorder %s14, 0
    %p166 = por %p164, %p165
    %p167 = scmp.ne.s32.totalorder %s159, %s161
    %p168 = scmp.eq.s32.totalorder %s19, 1
    %p169 = por %p167, %p168
    %p170 = scmp.ne.s32.totalorder %s161, %s162
    %p171 = scmp.eq.s32.totalorder %s19, 0
    %p172 = por %p170, %p171
    %p173 = scmp.ne.s32.totalorder %s161, %s162
    %p174 = scmp.eq.s32.totalorder %s20, 1
    %p175 = por %p173, %p174
    %p177 = scmp.ne.s32.totalorder %s162, %s176
    %p178 = scmp.eq.s32.totalorder %s20, 0
    %p179 = por %p177, %p178
    %s180 = ssub.s32 %s21, %s33
    %p181 = scmp.eq.s32.totalorder %s180, 0
    %s183 = sadd.s32 %s182, 1
    %s184 = scalar_select %p181, %s182, %s183
    %p187 = pneg %p181
    %p188 = scmp.eq.s32.totalorder %s14, 1
    %p189 = por %p187, %p188
    %p190 = scmp.ne.s32.totalorder %s182, %s185
    %p191 = scmp.eq.s32.totalorder %s14, 0
    %p192 = por %p190, %p191
    %p193 = scmp.ne.s32.totalorder %s182, %s185
    %p194 = scmp.eq.s32.totalorder %s19, 1
    %p195 = por %p193, %p194
    %p196 = scmp.ne.s32.totalorder %s185, %s186
    %p197 = scmp.eq.s32.totalorder %s19, 0
    %p198 = por %p196, %p197
    %p199 = scmp.ne.s32.totalorder %s185, %s186
    %p200 = scmp.eq.s32.totalorder %s20, 1
    %p201 = por %p199, %p200
    %p203 = scmp.ne.s32.totalorder %s186, %s202
    %p204 = scmp.eq.s32.totalorder %s20, 0
    %p205 = por %p203, %p204
    %p206 = scmp.le.s32.totalorder 1, %s14
    %p207 = scmp.lt.s32.totalorder %s14, 3
    %p208 = pnand %p206, %p207
    %p209 = pneg %p208
    // Predicated region
    $region9: #{multivariate_lstm_forward.1} parent=5 // pred_check
      _
    $region10: #{multivariate_lstm_forward.1} parent=5 // pred_check_branch
      %211 = sbr.rel (%p208) target = $region12
    $region11: #{multivariate_lstm_forward.1} parent=5 // pred_region
      %s212 = ssub.s32 %s14, 1
      // Predicated region
      $region13: #{multivariate_lstm_forward.1} parent=11 // pred_check
        %p213 = pneg %p52
      $region14: #{multivariate_lstm_forward.1} parent=11 // pred_check_branch
        %215 = sbr.rel (%p213) target = $region16
      $region15: #{multivariate_lstm_forward.1} parent=11 // pred_region
        %p216 = scmp.lt.s32.totalorder %s23, 0
        %s217 = scalar_select %p216, %s23, 0
        %s218 = smul.addr %s217, 8
        %s219 = scalar_lea.vmem %s0, %s218
      $region16: #{multivariate_lstm_forward.1} parent=11 // pred_fallthru
        _
      // Predicated region
      $region17: #{multivariate_lstm_forward.1} parent=11 // pred_check
        %p220 = pneg %p151
      $region18: #{multivariate_lstm_forward.1} parent=11 // pred_check_branch
        %222 = sbr.rel (%p220) target = $region20
      $region19: #{multivariate_lstm_forward.1} parent=11 // pred_region
        _
      $region20: #{multivariate_lstm_forward.1} parent=11 // pred_fallthru
        _
      // Predicated region
      $region21: #{multivariate_lstm_forward.1} parent=11 // pred_check
        %p223 = pneg %p172
      $region22: #{multivariate_lstm_forward.1} parent=11 // pred_check_branch
        %225 = sbr.rel (%p223) target = $region24
      $region23: #{multivariate_lstm_forward.1} parent=11 // pred_region
        _
      $region24: #{multivariate_lstm_forward.1} parent=11 // pred_fallthru
        _
    $region12: #{multivariate_lstm_forward.1} parent=5 // pred_fallthru
      _
    %p226 = scmp.lt.s32.totalorder %s14, 2
    // Predicated region
    $region25: #{multivariate_lstm_forward.1} parent=5 // pred_check
      %p227 = pneg %p226
    $region26: #{multivariate_lstm_forward.1} parent=5 // pred_check_branch
      %229 = sbr.rel (%p227) target = $region28
    $region27: #{multivariate_lstm_forward.1} parent=5 // pred_region
      // Predicated region
      $region29: #{multivariate_lstm_forward.1} parent=27 // pred_check
        %p230 = pneg %p72
      $region30: #{multivariate_lstm_forward.1} parent=27 // pred_check_branch
        %232 = sbr.rel (%p230) target = $region32
      $region31: #{multivariate_lstm_forward.1} parent=27 // pred_region
        %p233 = scmp.lt.s32.totalorder %s22, 1
        %s234 = scalar_select %p233, %s22, 1
        %s235 = smul.addr %s234, 64
        %s236 = smul.addr %s235, 8
        %s237 = scalar_lea.vmem %s1, %s236
      $region32: #{multivariate_lstm_forward.1} parent=27 // pred_fallthru
        _
      // Predicated region
      $region33: #{multivariate_lstm_forward.1} parent=27 // pred_check
        %p238 = pneg %p98
      $region34: #{multivariate_lstm_forward.1} parent=27 // pred_check_branch
        %240 = sbr.rel (%p238) target = $region36
      $region35: #{multivariate_lstm_forward.1} parent=27 // pred_region
        %p241 = scmp.lt.s32.totalorder %s22, 1
        %s242 = scalar_select %p241, %s22, 1
        %s243 = smul.addr %s242, 64
        %s244 = smul.addr %s243, 8
        %s245 = scalar_lea.vmem %s2, %s244
      $region36: #{multivariate_lstm_forward.1} parent=27 // pred_fallthru
        _
      // Predicated region
      $region37: #{multivariate_lstm_forward.1} parent=27 // pred_check
        %p246 = pneg %p124
      $region38: #{multivariate_lstm_forward.1} parent=27 // pred_check_branch
        %248 = sbr.rel (%p246) target = $region40
      $region39: #{multivariate_lstm_forward.1} parent=27 // pred_region
        %p249 = scmp.lt.s32.totalorder %s22, 1
        %s250 = scalar_select %p249, %s22, 1
        %s251 = smul.addr %s250, 4
        %s252 = scalar_lea.vmem %s3, %s251
      $region40: #{multivariate_lstm_forward.1} parent=27 // pred_fallthru
        _
    $region28: #{multivariate_lstm_forward.1} parent=5 // pred_fallthru
      _
    %p253 = scmp.le.s32.totalorder 1, %s14
    %p254 = scmp.lt.s32.totalorder %s14, 3
    %p255 = pnand %p253, %p254
    %p256 = pneg %p255
    // Predicated region
    $region41: #{multivariate_lstm_forward.1} parent=5 // pred_check
      _
    $region42: #{multivariate_lstm_forward.1} parent=5 // pred_check_branch
      %258 = sbr.rel (%p255) target = $region44
    $region43: #{multivariate_lstm_forward.1} parent=5 // pred_region
      %s259 = ssub.s32 %s14, 1
      %p260 = scmp.lt.s32.totalorder %s23, 0
      %s261 = scalar_select %p260, %s23, 0
      %s262 = smul.addr %s261, 8
      %s263 = scalar_lea.vmem %s0, %s262
      %p264 = pneg %p52
      %p265 = pneg %p49
      %p266 = scmp.lt.s32.totalorder %s24, 1
      %s267 = scalar_select %p266, %s24, 1
      %s268 = smul.addr %s267, 64
      %s269 = smul.addr %s268, 8
      %s270 = scalar_lea.vmem %s1, %s269
      %p271 = pneg %p78
      %p272 = pneg %p75
      %p273 = scmp.lt.s32.totalorder %s24, 1
      %s274 = scalar_select %p273, %s24, 1
      %s275 = smul.addr %s274, 64
      %s276 = smul.addr %s275, 8
      %s277 = scalar_lea.vmem %s2, %s276
      %p278 = pneg %p104
      %p279 = pneg %p101
      %p280 = scmp.lt.s32.totalorder %s24, 1
      %s281 = scalar_select %p280, %s24, 1
      %s282 = smul.addr %s281, 4
      %s283 = scalar_lea.vmem %s3, %s282
      %p284 = pneg %p130
      %p285 = pneg %p127
      %p286 = pneg %p151
      %p287 = pneg %p148
      %p288 = pneg %p172
      %p289 = pneg %p169
      %p290 = pneg %p198
      %p291 = pneg %p195
      %p292 = scmp.lt.s32.totalorder %s23, 0
      %s293 = scalar_select %p292, %s23, 0
      %s294 = smul.addr %s293, 8
      %s295 = scalar_lea.vmem %s6, %s294
      %p296 = scmp.lt.s32.totalorder %s23, 0
      %s297 = scalar_select %p296, %s23, 0
      %s298 = smul.addr %s297, 8
      %s299 = scalar_lea.vmem %s0, %s298
      %p300 = scmp.lt.s32.totalorder %s24, 1
      %s301 = scalar_select %p300, %s24, 1
      %s302 = smul.addr %s301, 64
      %s303 = smul.addr %s302, 8
      %s304 = scalar_lea.vmem %s1, %s303
      %p305 = scmp.lt.s32.totalorder %s24, 1
      %s306 = scalar_select %p305, %s24, 1
      %s307 = smul.addr %s306, 64
      %s308 = smul.addr %s307, 8
      %s309 = scalar_lea.vmem %s2, %s308
      %p310 = scmp.lt.s32.totalorder %s24, 1
      %s311 = scalar_select %p310, %s24, 1
      %s312 = smul.addr %s311, 4
      %s313 = scalar_lea.vmem %s3, %s312
      %p314 = scmp.lt.s32.totalorder %s23, 0
      %s315 = scalar_select %p314, %s23, 0
      %s316 = smul.addr %s315, 8
      %s317 = scalar_lea.vmem %s6, %s316
      %p318 = scmp.eq.s32.totalorder %s24, 0
      // Predicated region
      $region45: #{multivariate_lstm_forward.1} parent=43 // pred_check
        %p319 = pneg %p318
      $region46: #{multivariate_lstm_forward.1} parent=43 // pred_check_branch
        %321 = sbr.rel (%p319) target = $region48
      $region47: #{multivariate_lstm_forward.1} parent=43 // pred_region
        %v322 = vld [vmem:[%s299] sm:$0xff]
        %v323 = vld [vmem:[%s299 + $0x8] sm:$0xff]
        %v324 = vld [vmem:[%s299 + $0x10] sm:$0xff]
        %v325 = vld [vmem:[%s299 + $0x18] sm:$0xff]
        %v326 = vld [vmem:[%s299 + $0x20] sm:$0xff]
        %v327 = vld [vmem:[%s299 + $0x28] sm:$0xff]
        %v328 = vld [vmem:[%s299 + $0x30] sm:$0xff]
        %v329 = vld [vmem:[%s299 + $0x38] sm:$0xff]
        %330 = vst [vmem:[#allocation2] sm:$0xff] %v322
        %331 = vst [vmem:[#allocation2 + $0x8] sm:$0xff] %v323
        %332 = vst [vmem:[#allocation2 + $0x10] sm:$0xff] %v324
        %333 = vst [vmem:[#allocation2 + $0x18] sm:$0xff] %v325
        %334 = vst [vmem:[#allocation2 + $0x20] sm:$0xff] %v326
        %335 = vst [vmem:[#allocation2 + $0x28] sm:$0xff] %v327
        %336 = vst [vmem:[#allocation2 + $0x30] sm:$0xff] %v328
        %337 = vst [vmem:[#allocation2 + $0x38] sm:$0xff] %v329
      $region48: #{multivariate_lstm_forward.1} parent=43 // pred_fallthru
        _
      %v338 = vld [vmem:[#allocation2] sm:$0xff]
      %v339 = vld [vmem:[#allocation2 + $0x8] sm:$0xff]
      %v340 = vld [vmem:[#allocation2 + $0x10] sm:$0xff]
      %v341 = vld [vmem:[#allocation2 + $0x18] sm:$0xff]
      %v342 = vld [vmem:[#allocation2 + $0x20] sm:$0xff]
      %v343 = vld [vmem:[#allocation2 + $0x28] sm:$0xff]
      %v344 = vld [vmem:[#allocation2 + $0x30] sm:$0xff]
      %v345 = vld [vmem:[#allocation2 + $0x38] sm:$0xff]
      %v346 = vld [vmem:[%s304] sm:$0xff]
      %v347 = vld [vmem:[%s304 + $0x8] sm:$0xff]
      %v348 = vld [vmem:[%s304 + $0x10] sm:$0xff]
      %v349 = vld [vmem:[%s304 + $0x18] sm:$0xff]
      %v350 = vld [vmem:[%s304 + $0x20] sm:$0xff]
      %v351 = vld [vmem:[%s304 + $0x28] sm:$0xff]
      %v352 = vld [vmem:[%s304 + $0x30] sm:$0xff]
      %v353 = vld [vmem:[%s304 + $0x38] sm:$0xff]
      %v354 = vld [vmem:[%s304 + $0x40] sm:$0xff]
      %v355 = vld [vmem:[%s304 + $0x48] sm:$0xff]
      %v356 = vld [vmem:[%s304 + $0x50] sm:$0xff]
      %v357 = vld [vmem:[%s304 + $0x58] sm:$0xff]
      %v358 = vld [vmem:[%s304 + $0x60] sm:$0xff]
      %v359 = vld [vmem:[%s304 + $0x68] sm:$0xff]
      %v360 = vld [vmem:[%s304 + $0x70] sm:$0xff]
      %v361 = vld [vmem:[%s304 + $0x78] sm:$0xff]
      %v362 = vld [vmem:[%s304 + $0x80] sm:$0xff]
      %v363 = vld [vmem:[%s304 + $0x88] sm:$0xff]
      %v364 = vld [vmem:[%s304 + $0x90] sm:$0xff]
      %v365 = vld [vmem:[%s304 + $0x98] sm:$0xff]
      %v366 = vld [vmem:[%s304 + $0xa0] sm:$0xff]
      %v367 = vld [vmem:[%s304 + $0xa8] sm:$0xff]
      %v368 = vld [vmem:[%s304 + $0xb0] sm:$0xff]
      %v369 = vld [vmem:[%s304 + $0xb8] sm:$0xff]
      %v370 = vld [vmem:[%s304 + $0xc0] sm:$0xff]
      %v371 = vld [vmem:[%s304 + $0xc8] sm:$0xff]
      %v372 = vld [vmem:[%s304 + $0xd0] sm:$0xff]
      %v373 = vld [vmem:[%s304 + $0xd8] sm:$0xff]
      %v374 = vld [vmem:[%s304 + $0xe0] sm:$0xff]
      %v375 = vld [vmem:[%s304 + $0xe8] sm:$0xff]
      %v376 = vld [vmem:[%s304 + $0xf0] sm:$0xff]
      %v377 = vld [vmem:[%s304 + $0xf8] sm:$0xff]
      %v378 = vld [vmem:[%s304 + $0x100] sm:$0xff]
      %v379 = vld [vmem:[%s304 + $0x108] sm:$0xff]
      %v380 = vld [vmem:[%s304 + $0x110] sm:$0xff]
      %v381 = vld [vmem:[%s304 + $0x118] sm:$0xff]
      %v382 = vld [vmem:[%s304 + $0x120] sm:$0xff]
      %v383 = vld [vmem:[%s304 + $0x128] sm:$0xff]
      %v384 = vld [vmem:[%s304 + $0x130] sm:$0xff]
      %v385 = vld [vmem:[%s304 + $0x138] sm:$0xff]
      %v386 = vld [vmem:[%s304 + $0x140] sm:$0xff]
      %v387 = vld [vmem:[%s304 + $0x148] sm:$0xff]
      %v388 = vld [vmem:[%s304 + $0x150] sm:$0xff]
      %v389 = vld [vmem:[%s304 + $0x158] sm:$0xff]
      %v390 = vld [vmem:[%s304 + $0x160] sm:$0xff]
      %v391 = vld [vmem:[%s304 + $0x168] sm:$0xff]
      %v392 = vld [vmem:[%s304 + $0x170] sm:$0xff]
      %v393 = vld [vmem:[%s304 + $0x178] sm:$0xff]
      %v394 = vld [vmem:[%s304 + $0x180] sm:$0xff]
      %v395 = vld [vmem:[%s304 + $0x188] sm:$0xff]
      %v396 = vld [vmem:[%s304 + $0x190] sm:$0xff]
      %v397 = vld [vmem:[%s304 + $0x198] sm:$0xff]
      %v398 = vld [vmem:[%s304 + $0x1a0] sm:$0xff]
      %v399 = vld [vmem:[%s304 + $0x1a8] sm:$0xff]
      %v400 = vld [vmem:[%s304 + $0x1b0] sm:$0xff]
      %v401 = vld [vmem:[%s304 + $0x1b8] sm:$0xff]
      %v402 = vld [vmem:[%s304 + $0x1c0] sm:$0xff]
      %v403 = vld [vmem:[%s304 + $0x1c8] sm:$0xff]
      %v404 = vld [vmem:[%s304 + $0x1d0] sm:$0xff]
      %v405 = vld [vmem:[%s304 + $0x1d8] sm:$0xff]
      %v406 = vld [vmem:[%s304 + $0x1e0] sm:$0xff]
      %v407 = vld [vmem:[%s304 + $0x1e8] sm:$0xff]
      %v408 = vld [vmem:[%s304 + $0x1f0] sm:$0xff]
      %v409 = vld [vmem:[%s304 + $0x1f8] sm:$0xff]
      %v410 = vld [vmem:[%s313] sm:$0xf]
      %v412 = vperm.slane %v410, 0
      %v413 = vperm.slane %v410, 1
      %v414 = vperm.slane %v410, 2
      %v415 = vperm.slane %v410, 3
      %420 = vmatpush.msra.mxu0 %v406
      %421 = vmatpush.msra.mxu0 %v402
      %422 = vmatpush.msra.mxu0 %v398
      %423 = vmatpush.msra.mxu0 %v394
      %424 = vmatpush.msra.mxu0 %v390
      %425 = vmatpush.msra.mxu0 %v386
      %426 = vmatpush.msra.mxu0 %v382
      %427 = vmatpush.msra.mxu0 %v378
      %428 = vmatpush.msra.mxu0 %v374
      %429 = vmatpush.msra.mxu0 %v370
      %430 = vmatpush.msra.mxu0 %v366
      %431 = vmatpush.msra.mxu0 %v362
      %432 = vmatpush.msra.mxu0 %v358
      %433 = vmatpush.msra.mxu0 %v354
      %434 = vmatpush.msra.mxu0 %v350
      %435 = vmatpush.msra.mxu0 %v346
      %436 = vmatmul.f32.gmra.mxu0 %v338
      %v437 = vpop.f32.mrf.mxu0
      %v438 = vadd.f32 %v412, %v437
      %439 = vmatmul.f32.gmra.mxu0 %v339
      %v440 = vpop.f32.mrf.mxu0
      %v441 = vadd.f32 %v412, %v440
      %442 = vmatmul.f32.gmra.mxu0 %v340
      %v443 = vpop.f32.mrf.mxu0
      %v444 = vadd.f32 %v412, %v443
      %445 = vmatmul.f32.gmra.mxu0 %v341
      %v446 = vpop.f32.mrf.mxu0
      %v447 = vadd.f32 %v412, %v446
      %448 = vmatmul.f32.gmra.mxu0 %v342
      %v449 = vpop.f32.mrf.mxu0
      %v450 = vadd.f32 %v412, %v449
      %451 = vmatmul.f32.gmra.mxu0 %v343
      %v452 = vpop.f32.mrf.mxu0
      %v453 = vadd.f32 %v412, %v452
      %454 = vmatmul.f32.gmra.mxu0 %v344
      %v455 = vpop.f32.mrf.mxu0
      %v456 = vadd.f32 %v412, %v455
      %457 = vmatmul.f32.gmra.mxu0 %v345
      %v458 = vpop.f32.mrf.mxu0
      %v459 = vadd.f32 %v412, %v458
      %460 = vdwg.mxu0
      %461 = vmatpush.msra.mxu0 %v407
      %462 = vmatpush.msra.mxu0 %v403
      %463 = vmatpush.msra.mxu0 %v399
      %464 = vmatpush.msra.mxu0 %v395
      %465 = vmatpush.msra.mxu0 %v391
      %466 = vmatpush.msra.mxu0 %v387
      %467 = vmatpush.msra.mxu0 %v383
      %468 = vmatpush.msra.mxu0 %v379
      %469 = vmatpush.msra.mxu0 %v375
      %470 = vmatpush.msra.mxu0 %v371
      %471 = vmatpush.msra.mxu0 %v367
      %472 = vmatpush.msra.mxu0 %v363
      %473 = vmatpush.msra.mxu0 %v359
      %474 = vmatpush.msra.mxu0 %v355
      %475 = vmatpush.msra.mxu0 %v351
      %476 = vmatpush.msra.mxu0 %v347
      %477 = vmatmul.f32.gmra.mxu0 %v338
      %v478 = vpop.f32.mrf.mxu0
      %v479 = vadd.f32 %v413, %v478
      %480 = vmatmul.f32.gmra.mxu0 %v339
      %v481 = vpop.f32.mrf.mxu0
      %v482 = vadd.f32 %v413, %v481
      %483 = vmatmul.f32.gmra.mxu0 %v340
      %v484 = vpop.f32.mrf.mxu0
      %v485 = vadd.f32 %v413, %v484
      %486 = vmatmul.f32.gmra.mxu0 %v341
      %v487 = vpop.f32.mrf.mxu0
      %v488 = vadd.f32 %v413, %v487
      %489 = vmatmul.f32.gmra.mxu0 %v342
      %v490 = vpop.f32.mrf.mxu0
      %v491 = vadd.f32 %v413, %v490
      %492 = vmatmul.f32.gmra.mxu0 %v343
      %v493 = vpop.f32.mrf.mxu0
      %v494 = vadd.f32 %v413, %v493
      %495 = vmatmul.f32.gmra.mxu0 %v344
      %v496 = vpop.f32.mrf.mxu0
      %v497 = vadd.f32 %v413, %v496
      %498 = vmatmul.f32.gmra.mxu0 %v345
      %v499 = vpop.f32.mrf.mxu0
      %v500 = vadd.f32 %v413, %v499
      %501 = vdwg.mxu0
      %502 = vmatpush.msra.mxu0 %v408
      %503 = vmatpush.msra.mxu0 %v404
      %504 = vmatpush.msra.mxu0 %v400
      %505 = vmatpush.msra.mxu0 %v396
      %506 = vmatpush.msra.mxu0 %v392
      %507 = vmatpush.msra.mxu0 %v388
      %508 = vmatpush.msra.mxu0 %v384
      %509 = vmatpush.msra.mxu0 %v380
      %510 = vmatpush.msra.mxu0 %v376
      %511 = vmatpush.msra.mxu0 %v372
      %512 = vmatpush.msra.mxu0 %v368
      %513 = vmatpush.msra.mxu0 %v364
      %514 = vmatpush.msra.mxu0 %v360
      %515 = vmatpush.msra.mxu0 %v356
      %516 = vmatpush.msra.mxu0 %v352
      %517 = vmatpush.msra.mxu0 %v348
      %518 = vmatmul.f32.gmra.mxu0 %v338
      %v519 = vpop.f32.mrf.mxu0
      %v520 = vadd.f32 %v414, %v519
      %521 = vmatmul.f32.gmra.mxu0 %v339
      %v522 = vpop.f32.mrf.mxu0
      %v523 = vadd.f32 %v414, %v522
      %524 = vmatmul.f32.gmra.mxu0 %v340
      %v525 = vpop.f32.mrf.mxu0
      %v526 = vadd.f32 %v414, %v525
      %527 = vmatmul.f32.gmra.mxu0 %v341
      %v528 = vpop.f32.mrf.mxu0
      %v529 = vadd.f32 %v414, %v528
      %530 = vmatmul.f32.gmra.mxu0 %v342
      %v531 = vpop.f32.mrf.mxu0
      %v532 = vadd.f32 %v414, %v531
      %533 = vmatmul.f32.gmra.mxu0 %v343
      %v534 = vpop.f32.mrf.mxu0
      %v535 = vadd.f32 %v414, %v534
      %536 = vmatmul.f32.gmra.mxu0 %v344
      %v537 = vpop.f32.mrf.mxu0
      %v538 = vadd.f32 %v414, %v537
      %539 = vmatmul.f32.gmra.mxu0 %v345
      %v540 = vpop.f32.mrf.mxu0
      %v541 = vadd.f32 %v414, %v540
      %542 = vdwg.mxu0
      %543 = vmatpush.msra.mxu0 %v409
      %544 = vmatpush.msra.mxu0 %v405
      %545 = vmatpush.msra.mxu0 %v401
      %546 = vmatpush.msra.mxu0 %v397
      %547 = vmatpush.msra.mxu0 %v393
      %548 = vmatpush.msra.mxu0 %v389
      %549 = vmatpush.msra.mxu0 %v385
      %550 = vmatpush.msra.mxu0 %v381
      %551 = vmatpush.msra.mxu0 %v377
      %552 = vmatpush.msra.mxu0 %v373
      %553 = vmatpush.msra.mxu0 %v369
      %554 = vmatpush.msra.mxu0 %v365
      %555 = vmatpush.msra.mxu0 %v361
      %556 = vmatpush.msra.mxu0 %v357
      %557 = vmatpush.msra.mxu0 %v353
      %558 = vmatpush.msra.mxu0 %v349
      %559 = vmatmul.f32.gmra.mxu0 %v338
      %v560 = vpop.f32.mrf.mxu0
      %v561 = vadd.f32 %v415, %v560
      %562 = vmatmul.f32.gmra.mxu0 %v339
      %v563 = vpop.f32.mrf.mxu0
      %v564 = vadd.f32 %v415, %v563
      %565 = vmatmul.f32.gmra.mxu0 %v340
      %v566 = vpop.f32.mrf.mxu0
      %v567 = vadd.f32 %v415, %v566
      %568 = vmatmul.f32.gmra.mxu0 %v341
      %v569 = vpop.f32.mrf.mxu0
      %v570 = vadd.f32 %v415, %v569
      %571 = vmatmul.f32.gmra.mxu0 %v342
      %v572 = vpop.f32.mrf.mxu0
      %v573 = vadd.f32 %v415, %v572
      %574 = vmatmul.f32.gmra.mxu0 %v343
      %v575 = vpop.f32.mrf.mxu0
      %v576 = vadd.f32 %v415, %v575
      %577 = vmatmul.f32.gmra.mxu0 %v344
      %v578 = vpop.f32.mrf.mxu0
      %v579 = vadd.f32 %v415, %v578
      %580 = vmatmul.f32.gmra.mxu0 %v345
      %v581 = vpop.f32.mrf.mxu0
      %v582 = vadd.f32 %v415, %v581
      %583 = vdwg.mxu0
      %584 = vst [vmem:[#allocation3] sm:$0xff] %v438
      %585 = vst [vmem:[#allocation3 + $0x8] sm:$0xff] %v479
      %586 = vst [vmem:[#allocation3 + $0x10] sm:$0xff] %v520
      %587 = vst [vmem:[#allocation3 + $0x18] sm:$0xff] %v561
      %588 = vst [vmem:[#allocation3 + $0x20] sm:$0xff] %v441
      %589 = vst [vmem:[#allocation3 + $0x28] sm:$0xff] %v482
      %590 = vst [vmem:[#allocation3 + $0x30] sm:$0xff] %v523
      %591 = vst [vmem:[#allocation3 + $0x38] sm:$0xff] %v564
      %592 = vst [vmem:[#allocation3 + $0x40] sm:$0xff] %v444
      %593 = vst [vmem:[#allocation3 + $0x48] sm:$0xff] %v485
      %594 = vst [vmem:[#allocation3 + $0x50] sm:$0xff] %v526
      %595 = vst [vmem:[#allocation3 + $0x58] sm:$0xff] %v567
      %596 = vst [vmem:[#allocation3 + $0x60] sm:$0xff] %v447
      %597 = vst [vmem:[#allocation3 + $0x68] sm:$0xff] %v488
      %598 = vst [vmem:[#allocation3 + $0x70] sm:$0xff] %v529
      %599 = vst [vmem:[#allocation3 + $0x78] sm:$0xff] %v570
      %600 = vst [vmem:[#allocation3 + $0x80] sm:$0xff] %v450
      %601 = vst [vmem:[#allocation3 + $0x88] sm:$0xff] %v491
      %602 = vst [vmem:[#allocation3 + $0x90] sm:$0xff] %v532
      %603 = vst [vmem:[#allocation3 + $0x98] sm:$0xff] %v573
      %604 = vst [vmem:[#allocation3 + $0xa0] sm:$0xff] %v453
      %605 = vst [vmem:[#allocation3 + $0xa8] sm:$0xff] %v494
      %606 = vst [vmem:[#allocation3 + $0xb0] sm:$0xff] %v535
      %607 = vst [vmem:[#allocation3 + $0xb8] sm:$0xff] %v576
      %608 = vst [vmem:[#allocation3 + $0xc0] sm:$0xff] %v456
      %609 = vst [vmem:[#allocation3 + $0xc8] sm:$0xff] %v497
      %610 = vst [vmem:[#allocation3 + $0xd0] sm:$0xff] %v538
      %611 = vst [vmem:[#allocation3 + $0xd8] sm:$0xff] %v579
      %612 = vst [vmem:[#allocation3 + $0xe0] sm:$0xff] %v459
      %613 = vst [vmem:[#allocation3 + $0xe8] sm:$0xff] %v500
      %614 = vst [vmem:[#allocation3 + $0xf0] sm:$0xff] %v541
      %615 = vst [vmem:[#allocation3 + $0xf8] sm:$0xff] %v582
      %s616 = smul.u32 0, 4
      %s617 = smul.addr %s616, 8
      %s618 = scalar_lea.vmem [#allocation3], %s617
      %v619 = vld [vmem:[%s618] sm:$0xff]
      %v620 = vld [vmem:[%s618 + $0x8] sm:$0xff]
      %v621 = vld [vmem:[%s618 + $0x10] sm:$0xff]
      %v622 = vld [vmem:[%s618 + $0x18] sm:$0xff]
      %v623 = vld [vmem:[%s309] sm:$0xff]
      %v624 = vld [vmem:[%s309 + $0x8] sm:$0xff]
      %v625 = vld [vmem:[%s309 + $0x10] sm:$0xff]
      %v626 = vld [vmem:[%s309 + $0x18] sm:$0xff]
      %v627 = vld [vmem:[%s309 + $0x20] sm:$0xff]
      %v628 = vld [vmem:[%s309 + $0x28] sm:$0xff]
      %v629 = vld [vmem:[%s309 + $0x30] sm:$0xff]
      %v630 = vld [vmem:[%s309 + $0x38] sm:$0xff]
      %v631 = vld [vmem:[%s309 + $0x40] sm:$0xff]
      %v632 = vld [vmem:[%s309 + $0x48] sm:$0xff]
      %v633 = vld [vmem:[%s309 + $0x50] sm:$0xff]
      %v634 = vld [vmem:[%s309 + $0x58] sm:$0xff]
      %v635 = vld [vmem:[%s309 + $0x60] sm:$0xff]
      %v636 = vld [vmem:[%s309 + $0x68] sm:$0xff]
      %v637 = vld [vmem:[%s309 + $0x70] sm:$0xff]
      %v638 = vld [vmem:[%s309 + $0x78] sm:$0xff]
      %v639 = vld [vmem:[%s309 + $0x80] sm:$0xff]
      %v640 = vld [vmem:[%s309 + $0x88] sm:$0xff]
      %v641 = vld [vmem:[%s309 + $0x90] sm:$0xff]
      %v642 = vld [vmem:[%s309 + $0x98] sm:$0xff]
      %v643 = vld [vmem:[%s309 + $0xa0] sm:$0xff]
      %v644 = vld [vmem:[%s309 + $0xa8] sm:$0xff]
      %v645 = vld [vmem:[%s309 + $0xb0] sm:$0xff]
      %v646 = vld [vmem:[%s309 + $0xb8] sm:$0xff]
      %v647 = vld [vmem:[%s309 + $0xc0] sm:$0xff]
      %v648 = vld [vmem:[%s309 + $0xc8] sm:$0xff]
      %v649 = vld [vmem:[%s309 + $0xd0] sm:$0xff]
      %v650 = vld [vmem:[%s309 + $0xd8] sm:$0xff]
      %v651 = vld [vmem:[%s309 + $0xe0] sm:$0xff]
      %v652 = vld [vmem:[%s309 + $0xe8] sm:$0xff]
      %v653 = vld [vmem:[%s309 + $0xf0] sm:$0xff]
      %v654 = vld [vmem:[%s309 + $0xf8] sm:$0xff]
      %v655 = vld [vmem:[%s309 + $0x100] sm:$0xff]
      %v656 = vld [vmem:[%s309 + $0x108] sm:$0xff]
      %v657 = vld [vmem:[%s309 + $0x110] sm:$0xff]
      %v658 = vld [vmem:[%s309 + $0x118] sm:$0xff]
      %v659 = vld [vmem:[%s309 + $0x120] sm:$0xff]
      %v660 = vld [vmem:[%s309 + $0x128] sm:$0xff]
      %v661 = vld [vmem:[%s309 + $0x130] sm:$0xff]
      %v662 = vld [vmem:[%s309 + $0x138] sm:$0xff]
      %v663 = vld [vmem:[%s309 + $0x140] sm:$0xff]
      %v664 = vld [vmem:[%s309 + $0x148] sm:$0xff]
      %v665 = vld [vmem:[%s309 + $0x150] sm:$0xff]
      %v666 = vld [vmem:[%s309 + $0x158] sm:$0xff]
      %v667 = vld [vmem:[%s309 + $0x160] sm:$0xff]
      %v668 = vld [vmem:[%s309 + $0x168] sm:$0xff]
      %v669 = vld [vmem:[%s309 + $0x170] sm:$0xff]
      %v670 = vld [vmem:[%s309 + $0x178] sm:$0xff]
      %v671 = vld [vmem:[%s309 + $0x180] sm:$0xff]
      %v672 = vld [vmem:[%s309 + $0x188] sm:$0xff]
      %v673 = vld [vmem:[%s309 + $0x190] sm:$0xff]
      %v674 = vld [vmem:[%s309 + $0x198] sm:$0xff]
      %v675 = vld [vmem:[%s309 + $0x1a0] sm:$0xff]
      %v676 = vld [vmem:[%s309 + $0x1a8] sm:$0xff]
      %v677 = vld [vmem:[%s309 + $0x1b0] sm:$0xff]
      %v678 = vld [vmem:[%s309 + $0x1b8] sm:$0xff]
      %v679 = vld [vmem:[%s309 + $0x1c0] sm:$0xff]
      %v680 = vld [vmem:[%s309 + $0x1c8] sm:$0xff]
      %v681 = vld [vmem:[%s309 + $0x1d0] sm:$0xff]
      %v682 = vld [vmem:[%s309 + $0x1d8] sm:$0xff]
      %v683 = vld [vmem:[%s309 + $0x1e0] sm:$0xff]
      %v684 = vld [vmem:[%s309 + $0x1e8] sm:$0xff]
      %v685 = vld [vmem:[%s309 + $0x1f0] sm:$0xff]
      %v686 = vld [vmem:[%s309 + $0x1f8] sm:$0xff]
      %687 = vmatpush.msra.mxu0 %v683
      %688 = vmatpush.msra.mxu0 %v679
      %689 = vmatpush.msra.mxu0 %v675
      %690 = vmatpush.msra.mxu0 %v671
      %691 = vmatpush.msra.mxu0 %v667
      %692 = vmatpush.msra.mxu0 %v663
      %693 = vmatpush.msra.mxu0 %v659
      %694 = vmatpush.msra.mxu0 %v655
      %695 = vmatpush.msra.mxu0 %v651
      %696 = vmatpush.msra.mxu0 %v647
      %697 = vmatpush.msra.mxu0 %v643
      %698 = vmatpush.msra.mxu0 %v639
      %699 = vmatpush.msra.mxu0 %v635
      %700 = vmatpush.msra.mxu0 %v631
      %701 = vmatpush.msra.mxu0 %v627
      %702 = vmatpush.msra.mxu0 %v623
      %703 = vmatmul.f32.gmra.mxu0 0.0
      %v704 = vpop.f32.mrf.mxu0
      %v705 = vadd.f32 0.0, %v704
      %706 = vdwg.mxu0
      %707 = vmatpush.msra.mxu0 %v684
      %708 = vmatpush.msra.mxu0 %v680
      %709 = vmatpush.msra.mxu0 %v676
      %710 = vmatpush.msra.mxu0 %v672
      %711 = vmatpush.msra.mxu0 %v668
      %712 = vmatpush.msra.mxu0 %v664
      %713 = vmatpush.msra.mxu0 %v660
      %714 = vmatpush.msra.mxu0 %v656
      %715 = vmatpush.msra.mxu0 %v652
      %716 = vmatpush.msra.mxu0 %v648
      %717 = vmatpush.msra.mxu0 %v644
      %718 = vmatpush.msra.mxu0 %v640
      %719 = vmatpush.msra.mxu0 %v636
      %720 = vmatpush.msra.mxu0 %v632
      %721 = vmatpush.msra.mxu0 %v628
      %722 = vmatpush.msra.mxu0 %v624
      %723 = vmatmul.f32.gmra.mxu0 0.0
      %v724 = vpop.f32.mrf.mxu0
      %v725 = vadd.f32 0.0, %v724
      %726 = vdwg.mxu0
      %727 = vmatpush.msra.mxu0 %v685
      %728 = vmatpush.msra.mxu0 %v681
      %729 = vmatpush.msra.mxu0 %v677
      %730 = vmatpush.msra.mxu0 %v673
      %731 = vmatpush.msra.mxu0 %v669
      %732 = vmatpush.msra.mxu0 %v665
      %733 = vmatpush.msra.mxu0 %v661
      %734 = vmatpush.msra.mxu0 %v657
      %735 = vmatpush.msra.mxu0 %v653
      %736 = vmatpush.msra.mxu0 %v649
      %737 = vmatpush.msra.mxu0 %v645
      %738 = vmatpush.msra.mxu0 %v641
      %739 = vmatpush.msra.mxu0 %v637
      %740 = vmatpush.msra.mxu0 %v633
      %741 = vmatpush.msra.mxu0 %v629
      %742 = vmatpush.msra.mxu0 %v625
      %743 = vmatmul.f32.gmra.mxu0 0.0
      %v744 = vpop.f32.mrf.mxu0
      %v745 = vadd.f32 0.0, %v744
      %746 = vdwg.mxu0
      %747 = vmatpush.msra.mxu0 %v686
      %748 = vmatpush.msra.mxu0 %v682
      %749 = vmatpush.msra.mxu0 %v678
      %750 = vmatpush.msra.mxu0 %v674
      %751 = vmatpush.msra.mxu0 %v670
      %752 = vmatpush.msra.mxu0 %v666
      %753 = vmatpush.msra.mxu0 %v662
      %754 = vmatpush.msra.mxu0 %v658
      %755 = vmatpush.msra.mxu0 %v654
      %756 = vmatpush.msra.mxu0 %v650
      %757 = vmatpush.msra.mxu0 %v646
      %758 = vmatpush.msra.mxu0 %v642
      %759 = vmatpush.msra.mxu0 %v638
      %760 = vmatpush.msra.mxu0 %v634
      %761 = vmatpush.msra.mxu0 %v630
      %762 = vmatpush.msra.mxu0 %v626
      %763 = vmatmul.f32.gmra.mxu0 0.0
      %v764 = vpop.f32.mrf.mxu0
      %v765 = vadd.f32 0.0, %v764
      %766 = vdwg.mxu0
      %v767 = vadd.f32 %v619, %v705
      %v768 = vadd.f32 %v620, %v725
      %v769 = vadd.f32 %v621, %v745
      %v770 = vadd.f32 %v622, %v765
      %v771 = vxor.u32 %v767, 2147483648
      %v772 = vxor.u32 %v768, 2147483648
      %v773 = vxor.u32 %v769, 2147483648
      %v774 = vmul.f32 %v771, 1.442695
      %v775 = vpow.pop %v774
      %v776 = vmul.f32 %v772, 1.442695
      %v777 = vpow.pop %v776
      %v778 = vmul.f32 %v773, 1.442695
      %v779 = vpow.pop %v778
      %v780 = vadd.f32 %v775, 1.0
      %v781 = vadd.f32 %v777, 1.0
      %v782 = vadd.f32 %v779, 1.0
      %v783 = vrcp.pop %v780
      %v784 = vmul.f32 %v780, %v783
      %v785 = vsub.f32 1.0, %v784
      %v786 = vmul.f32 %v783, %v785
      %v787 = vadd.f32 %v783, %v786
      %vm788 = vweird.f32 %v780
      %vm789 = vweird.f32 %v783
      %vm790 = vmor %vm788, %vm789
      %v791 = vsel %vm790, %v783, %v787
      %v792 = vand.u32 2147483647, %v780
      %vm793 = vcmp.eq.f32.partialorder %v792, 8.507059e+37
      %v794 = vand.u32 %v780, 2147483648
      %v795 = vor.u32 1.1754944e-38, %v794
      %v796 = vsel %vm793, %v795, %v791
      %v797 = vmul.f32 1.0, %v796
      %v798 = vrcp.pop %v781
      %v799 = vmul.f32 %v781, %v798
      %v800 = vsub.f32 1.0, %v799
      %v801 = vmul.f32 %v798, %v800
      %v802 = vadd.f32 %v798, %v801
      %vm803 = vweird.f32 %v781
      %vm804 = vweird.f32 %v798
      %vm805 = vmor %vm803, %vm804
      %v806 = vsel %vm805, %v798, %v802
      %v807 = vand.u32 2147483647, %v781
      %vm808 = vcmp.eq.f32.partialorder %v807, 8.507059e+37
      %v809 = vand.u32 %v781, 2147483648
      %v810 = vor.u32 1.1754944e-38, %v809
      %v811 = vsel %vm808, %v810, %v806
      %v812 = vmul.f32 1.0, %v811
      %v813 = vrcp.pop %v782
      %v814 = vmul.f32 %v782, %v813
      %v815 = vsub.f32 1.0, %v814
      %v816 = vmul.f32 %v813, %v815
      %v817 = vadd.f32 %v813, %v816
      %vm818 = vweird.f32 %v782
      %vm819 = vweird.f32 %v813
      %vm820 = vmor %vm818, %vm819
      %v821 = vsel %vm820, %v813, %v817
      %v822 = vand.u32 2147483647, %v782
      %vm823 = vcmp.eq.f32.partialorder %v822, 8.507059e+37
      %v824 = vand.u32 %v782, 2147483648
      %v825 = vor.u32 1.1754944e-38, %v824
      %v826 = vsel %vm823, %v825, %v821
      %v827 = vmul.f32 1.0, %v826
      %v828 = vtanh.pop %v770
      %v829 = vmul.f32 %v812, 0.0
      %v830 = vmul.f32 %v797, %v828
      %v831 = vadd.f32 %v829, %v830
      %v832 = vtanh.pop %v831
      %v833 = vmul.f32 %v827, %v832
      %834 = vst [vmem:[#allocation2] sm:$0xff] %v833
      %s835 = smul.u32 1, 4
      %s836 = smul.addr %s835, 8
      %s837 = scalar_lea.vmem [#allocation3], %s836
      %v838 = vld [vmem:[%s837] sm:$0xff]
      %v839 = vld [vmem:[%s837 + $0x8] sm:$0xff]
      %v840 = vld [vmem:[%s837 + $0x10] sm:$0xff]
      %v841 = vld [vmem:[%s837 + $0x18] sm:$0xff]
      %v842 = vld [vmem:[%s309] sm:$0xff]
      %v843 = vld [vmem:[%s309 + $0x8] sm:$0xff]
      %v844 = vld [vmem:[%s309 + $0x10] sm:$0xff]
      %v845 = vld [vmem:[%s309 + $0x18] sm:$0xff]
      %v846 = vld [vmem:[%s309 + $0x20] sm:$0xff]
      %v847 = vld [vmem:[%s309 + $0x28] sm:$0xff]
      %v848 = vld [vmem:[%s309 + $0x30] sm:$0xff]
      %v849 = vld [vmem:[%s309 + $0x38] sm:$0xff]
      %v850 = vld [vmem:[%s309 + $0x40] sm:$0xff]
      %v851 = vld [vmem:[%s309 + $0x48] sm:$0xff]
      %v852 = vld [vmem:[%s309 + $0x50] sm:$0xff]
      %v853 = vld [vmem:[%s309 + $0x58] sm:$0xff]
      %v854 = vld [vmem:[%s309 + $0x60] sm:$0xff]
      %v855 = vld [vmem:[%s309 + $0x68] sm:$0xff]
      %v856 = vld [vmem:[%s309 + $0x70] sm:$0xff]
      %v857 = vld [vmem:[%s309 + $0x78] sm:$0xff]
      %v858 = vld [vmem:[%s309 + $0x80] sm:$0xff]
      %v859 = vld [vmem:[%s309 + $0x88] sm:$0xff]
      %v860 = vld [vmem:[%s309 + $0x90] sm:$0xff]
      %v861 = vld [vmem:[%s309 + $0x98] sm:$0xff]
      %v862 = vld [vmem:[%s309 + $0xa0] sm:$0xff]
      %v863 = vld [vmem:[%s309 + $0xa8] sm:$0xff]
      %v864 = vld [vmem:[%s309 + $0xb0] sm:$0xff]
      %v865 = vld [vmem:[%s309 + $0xb8] sm:$0xff]
      %v866 = vld [vmem:[%s309 + $0xc0] sm:$0xff]
      %v867 = vld [vmem:[%s309 + $0xc8] sm:$0xff]
      %v868 = vld [vmem:[%s309 + $0xd0] sm:$0xff]
      %v869 = vld [vmem:[%s309 + $0xd8] sm:$0xff]
      %v870 = vld [vmem:[%s309 + $0xe0] sm:$0xff]
      %v871 = vld [vmem:[%s309 + $0xe8] sm:$0xff]
      %v872 = vld [vmem:[%s309 + $0xf0] sm:$0xff]
      %v873 = vld [vmem:[%s309 + $0xf8] sm:$0xff]
      %v874 = vld [vmem:[%s309 + $0x100] sm:$0xff]
      %v875 = vld [vmem:[%s309 + $0x108] sm:$0xff]
      %v876 = vld [vmem:[%s309 + $0x110] sm:$0xff]
      %v877 = vld [vmem:[%s309 + $0x118] sm:$0xff]
      %v878 = vld [vmem:[%s309 + $0x120] sm:$0xff]
      %v879 = vld [vmem:[%s309 + $0x128] sm:$0xff]
      %v880 = vld [vmem:[%s309 + $0x130] sm:$0xff]
      %v881 = vld [vmem:[%s309 + $0x138] sm:$0xff]
      %v882 = vld [vmem:[%s309 + $0x140] sm:$0xff]
      %v883 = vld [vmem:[%s309 + $0x148] sm:$0xff]
      %v884 = vld [vmem:[%s309 + $0x150] sm:$0xff]
      %v885 = vld [vmem:[%s309 + $0x158] sm:$0xff]
      %v886 = vld [vmem:[%s309 + $0x160] sm:$0xff]
      %v887 = vld [vmem:[%s309 + $0x168] sm:$0xff]
      %v888 = vld [vmem:[%s309 + $0x170] sm:$0xff]
      %v889 = vld [vmem:[%s309 + $0x178] sm:$0xff]
      %v890 = vld [vmem:[%s309 + $0x180] sm:$0xff]
      %v891 = vld [vmem:[%s309 + $0x188] sm:$0xff]
      %v892 = vld [vmem:[%s309 + $0x190] sm:$0xff]
      %v893 = vld [vmem:[%s309 + $0x198] sm:$0xff]
      %v894 = vld [vmem:[%s309 + $0x1a0] sm:$0xff]
      %v895 = vld [vmem:[%s309 + $0x1a8] sm:$0xff]
      %v896 = vld [vmem:[%s309 + $0x1b0] sm:$0xff]
      %v897 = vld [vmem:[%s309 + $0x1b8] sm:$0xff]
      %v898 = vld [vmem:[%s309 + $0x1c0] sm:$0xff]
      %v899 = vld [vmem:[%s309 + $0x1c8] sm:$0xff]
      %v900 = vld [vmem:[%s309 + $0x1d0] sm:$0xff]
      %v901 = vld [vmem:[%s309 + $0x1d8] sm:$0xff]
      %v902 = vld [vmem:[%s309 + $0x1e0] sm:$0xff]
      %v903 = vld [vmem:[%s309 + $0x1e8] sm:$0xff]
      %v904 = vld [vmem:[%s309 + $0x1f0] sm:$0xff]
      %v905 = vld [vmem:[%s309 + $0x1f8] sm:$0xff]
      %906 = vmatpush.msra.mxu0 %v902
      %907 = vmatpush.msra.mxu0 %v898
      %908 = vmatpush.msra.mxu0 %v894
      %909 = vmatpush.msra.mxu0 %v890
      %910 = vmatpush.msra.mxu0 %v886
      %911 = vmatpush.msra.mxu0 %v882
      %912 = vmatpush.msra.mxu0 %v878
      %913 = vmatpush.msra.mxu0 %v874
      %914 = vmatpush.msra.mxu0 %v870
      %915 = vmatpush.msra.mxu0 %v866
      %916 = vmatpush.msra.mxu0 %v862
      %917 = vmatpush.msra.mxu0 %v858
      %918 = vmatpush.msra.mxu0 %v854
      %919 = vmatpush.msra.mxu0 %v850
      %920 = vmatpush.msra.mxu0 %v846
      %921 = vmatpush.msra.mxu0 %v842
      %922 = vmatmul.f32.gmra.mxu0 %v833
      %v923 = vpop.f32.mrf.mxu0
      %v924 = vadd.f32 0.0, %v923
      %925 = vdwg.mxu0
      %926 = vmatpush.msra.mxu0 %v903
      %927 = vmatpush.msra.mxu0 %v899
      %928 = vmatpush.msra.mxu0 %v895
      %929 = vmatpush.msra.mxu0 %v891
      %930 = vmatpush.msra.mxu0 %v887
      %931 = vmatpush.msra.mxu0 %v883
      %932 = vmatpush.msra.mxu0 %v879
      %933 = vmatpush.msra.mxu0 %v875
      %934 = vmatpush.msra.mxu0 %v871
      %935 = vmatpush.msra.mxu0 %v867
      %936 = vmatpush.msra.mxu0 %v863
      %937 = vmatpush.msra.mxu0 %v859
      %938 = vmatpush.msra.mxu0 %v855
      %939 = vmatpush.msra.mxu0 %v851
      %940 = vmatpush.msra.mxu0 %v847
      %941 = vmatpush.msra.mxu0 %v843
      %942 = vmatmul.f32.gmra.mxu0 %v833
      %v943 = vpop.f32.mrf.mxu0
      %v944 = vadd.f32 0.0, %v943
      %945 = vdwg.mxu0
      %946 = vmatpush.msra.mxu0 %v904
      %947 = vmatpush.msra.mxu0 %v900
      %948 = vmatpush.msra.mxu0 %v896
      %949 = vmatpush.msra.mxu0 %v892
      %950 = vmatpush.msra.mxu0 %v888
      %951 = vmatpush.msra.mxu0 %v884
      %952 = vmatpush.msra.mxu0 %v880
      %953 = vmatpush.msra.mxu0 %v876
      %954 = vmatpush.msra.mxu0 %v872
      %955 = vmatpush.msra.mxu0 %v868
      %956 = vmatpush.msra.mxu0 %v864
      %957 = vmatpush.msra.mxu0 %v860
      %958 = vmatpush.msra.mxu0 %v856
      %959 = vmatpush.msra.mxu0 %v852
      %960 = vmatpush.msra.mxu0 %v848
      %961 = vmatpush.msra.mxu0 %v844
      %962 = vmatmul.f32.gmra.mxu0 %v833
      %v963 = vpop.f32.mrf.mxu0
      %v964 = vadd.f32 0.0, %v963
      %965 = vdwg.mxu0
      %966 = vmatpush.msra.mxu0 %v905
      %967 = vmatpush.msra.mxu0 %v901
      %968 = vmatpush.msra.mxu0 %v897
      %969 = vmatpush.msra.mxu0 %v893
      %970 = vmatpush.msra.mxu0 %v889
      %971 = vmatpush.msra.mxu0 %v885
      %972 = vmatpush.msra.mxu0 %v881
      %973 = vmatpush.msra.mxu0 %v877
      %974 = vmatpush.msra.mxu0 %v873
      %975 = vmatpush.msra.mxu0 %v869
      %976 = vmatpush.msra.mxu0 %v865
      %977 = vmatpush.msra.mxu0 %v861
      %978 = vmatpush.msra.mxu0 %v857
      %979 = vmatpush.msra.mxu0 %v853
      %980 = vmatpush.msra.mxu0 %v849
      %981 = vmatpush.msra.mxu0 %v845
      %982 = vmatmul.f32.gmra.mxu0 %v833
      %v983 = vpop.f32.mrf.mxu0
      %v984 = vadd.f32 0.0, %v983
      %985 = vdwg.mxu0
      %v986 = vadd.f32 %v838, %v924
      %v987 = vadd.f32 %v839, %v944
      %v988 = vadd.f32 %v840, %v964
      %v989 = vadd.f32 %v841, %v984
      %v990 = vxor.u32 %v986, 2147483648
      %v991 = vxor.u32 %v987, 2147483648
      %v992 = vxor.u32 %v988, 2147483648
      %v993 = vmul.f32 %v990, 1.442695
      %v994 = vpow.pop %v993
      %v995 = vmul.f32 %v991, 1.442695
      %v996 = vpow.pop %v995
      %v997 = vmul.f32 %v992, 1.442695
      %v998 = vpow.pop %v997
      %v999 = vadd.f32 %v994, 1.0
      %v1000 = vadd.f32 %v996, 1.0
      %v1001 = vadd.f32 %v998, 1.0
      %v1002 = vrcp.pop %v999
      %v1003 = vmul.f32 %v999, %v1002
      %v1004 = vsub.f32 1.0, %v1003
      %v1005 = vmul.f32 %v1002, %v1004
      %v1006 = vadd.f32 %v1002, %v1005
      %vm1007 = vweird.f32 %v999
      %vm1008 = vweird.f32 %v1002
      %vm1009 = vmor %vm1007, %vm1008
      %v1010 = vsel %vm1009, %v1002, %v1006
      %v1011 = vand.u32 2147483647, %v999
      %vm1012 = vcmp.eq.f32.partialorder %v1011, 8.507059e+37
      %v1013 = vand.u32 %v999, 2147483648
      %v1014 = vor.u32 1.1754944e-38, %v1013
      %v1015 = vsel %vm1012, %v1014, %v1010
      %v1016 = vmul.f32 1.0, %v1015
      %v1017 = vrcp.pop %v1000
      %v1018 = vmul.f32 %v1000, %v1017
      %v1019 = vsub.f32 1.0, %v1018
      %v1020 = vmul.f32 %v1017, %v1019
      %v1021 = vadd.f32 %v1017, %v1020
      %vm1022 = vweird.f32 %v1000
      %vm1023 = vweird.f32 %v1017
      %vm1024 = vmor %vm1022, %vm1023
      %v1025 = vsel %vm1024, %v1017, %v1021
      %v1026 = vand.u32 2147483647, %v1000
      %vm1027 = vcmp.eq.f32.partialorder %v1026, 8.507059e+37
      %v1028 = vand.u32 %v1000, 2147483648
      %v1029 = vor.u32 1.1754944e-38, %v1028
      %v1030 = vsel %vm1027, %v1029, %v1025
      %v1031 = vmul.f32 1.0, %v1030
      %v1032 = vrcp.pop %v1001
      %v1033 = vmul.f32 %v1001, %v1032
      %v1034 = vsub.f32 1.0, %v1033
      %v1035 = vmul.f32 %v1032, %v1034
      %v1036 = vadd.f32 %v1032, %v1035
      %vm1037 = vweird.f32 %v1001
      %vm1038 = vweird.f32 %v1032
      %vm1039 = vmor %vm1037, %vm1038
      %v1040 = vsel %vm1039, %v1032, %v1036
      %v1041 = vand.u32 2147483647, %v1001
      %vm1042 = vcmp.eq.f32.partialorder %v1041, 8.507059e+37
      %v1043 = vand.u32 %v1001, 2147483648
      %v1044 = vor.u32 1.1754944e-38, %v1043
      %v1045 = vsel %vm1042, %v1044, %v1040
      %v1046 = vmul.f32 1.0, %v1045
      %v1047 = vtanh.pop %v989
      %v1048 = vmul.f32 %v1031, %v831
      %v1049 = vmul.f32 %v1016, %v1047
      %v1050 = vadd.f32 %v1048, %v1049
      %v1051 = vtanh.pop %v1050
      %v1052 = vmul.f32 %v1046, %v1051
      %s1053 = scalar_lea.vmem [#allocation2], 8
      %1054 = vst [vmem:[%s1053] sm:$0xff] %v1052
      %s1055 = smul.u32 2, 4
      %s1056 = smul.addr %s1055, 8
      %s1057 = scalar_lea.vmem [#allocation3], %s1056
      %v1058 = vld [vmem:[%s1057] sm:$0xff]
      %v1059 = vld [vmem:[%s1057 + $0x8] sm:$0xff]
      %v1060 = vld [vmem:[%s1057 + $0x10] sm:$0xff]
      %v1061 = vld [vmem:[%s1057 + $0x18] sm:$0xff]
      %v1062 = vld [vmem:[%s309] sm:$0xff]
      %v1063 = vld [vmem:[%s309 + $0x8] sm:$0xff]
      %v1064 = vld [vmem:[%s309 + $0x10] sm:$0xff]
      %v1065 = vld [vmem:[%s309 + $0x18] sm:$0xff]
      %v1066 = vld [vmem:[%s309 + $0x20] sm:$0xff]
      %v1067 = vld [vmem:[%s309 + $0x28] sm:$0xff]
      %v1068 = vld [vmem:[%s309 + $0x30] sm:$0xff]
      %v1069 = vld [vmem:[%s309 + $0x38] sm:$0xff]
      %v1070 = vld [vmem:[%s309 + $0x40] sm:$0xff]
      %v1071 = vld [vmem:[%s309 + $0x48] sm:$0xff]
      %v1072 = vld [vmem:[%s309 + $0x50] sm:$0xff]
      %v1073 = vld [vmem:[%s309 + $0x58] sm:$0xff]
      %v1074 = vld [vmem:[%s309 + $0x60] sm:$0xff]
      %v1075 = vld [vmem:[%s309 + $0x68] sm:$0xff]
      %v1076 = vld [vmem:[%s309 + $0x70] sm:$0xff]
      %v1077 = vld [vmem:[%s309 + $0x78] sm:$0xff]
      %v1078 = vld [vmem:[%s309 + $0x80] sm:$0xff]
      %v1079 = vld [vmem:[%s309 + $0x88] sm:$0xff]
      %v1080 = vld [vmem:[%s309 + $0x90] sm:$0xff]
      %v1081 = vld [vmem:[%s309 + $0x98] sm:$0xff]
      %v1082 = vld [vmem:[%s309 + $0xa0] sm:$0xff]
      %v1083 = vld [vmem:[%s309 + $0xa8] sm:$0xff]
      %v1084 = vld [vmem:[%s309 + $0xb0] sm:$0xff]
      %v1085 = vld [vmem:[%s309 + $0xb8] sm:$0xff]
      %v1086 = vld [vmem:[%s309 + $0xc0] sm:$0xff]
      %v1087 = vld [vmem:[%s309 + $0xc8] sm:$0xff]
      %v1088 = vld [vmem:[%s309 + $0xd0] sm:$0xff]
      %v1089 = vld [vmem:[%s309 + $0xd8] sm:$0xff]
      %v1090 = vld [vmem:[%s309 + $0xe0] sm:$0xff]
      %v1091 = vld [vmem:[%s309 + $0xe8] sm:$0xff]
      %v1092 = vld [vmem:[%s309 + $0xf0] sm:$0xff]
      %v1093 = vld [vmem:[%s309 + $0xf8] sm:$0xff]
      %v1094 = vld [vmem:[%s309 + $0x100] sm:$0xff]
      %v1095 = vld [vmem:[%s309 + $0x108] sm:$0xff]
      %v1096 = vld [vmem:[%s309 + $0x110] sm:$0xff]
      %v1097 = vld [vmem:[%s309 + $0x118] sm:$0xff]
      %v1098 = vld [vmem:[%s309 + $0x120] sm:$0xff]
      %v1099 = vld [vmem:[%s309 + $0x128] sm:$0xff]
      %v1100 = vld [vmem:[%s309 + $0x130] sm:$0xff]
      %v1101 = vld [vmem:[%s309 + $0x138] sm:$0xff]
      %v1102 = vld [vmem:[%s309 + $0x140] sm:$0xff]
      %v1103 = vld [vmem:[%s309 + $0x148] sm:$0xff]
      %v1104 = vld [vmem:[%s309 + $0x150] sm:$0xff]
      %v1105 = vld [vmem:[%s309 + $0x158] sm:$0xff]
      %v1106 = vld [vmem:[%s309 + $0x160] sm:$0xff]
      %v1107 = vld [vmem:[%s309 + $0x168] sm:$0xff]
      %v1108 = vld [vmem:[%s309 + $0x170] sm:$0xff]
      %v1109 = vld [vmem:[%s309 + $0x178] sm:$0xff]
      %v1110 = vld [vmem:[%s309 + $0x180] sm:$0xff]
      %v1111 = vld [vmem:[%s309 + $0x188] sm:$0xff]
      %v1112 = vld [vmem:[%s309 + $0x190] sm:$0xff]
      %v1113 = vld [vmem:[%s309 + $0x198] sm:$0xff]
      %v1114 = vld [vmem:[%s309 + $0x1a0] sm:$0xff]
      %v1115 = vld [vmem:[%s309 + $0x1a8] sm:$0xff]
      %v1116 = vld [vmem:[%s309 + $0x1b0] sm:$0xff]
      %v1117 = vld [vmem:[%s309 + $0x1b8] sm:$0xff]
      %v1118 = vld [vmem:[%s309 + $0x1c0] sm:$0xff]
      %v1119 = vld [vmem:[%s309 + $0x1c8] sm:$0xff]
      %v1120 = vld [vmem:[%s309 + $0x1d0] sm:$0xff]
      %v1121 = vld [vmem:[%s309 + $0x1d8] sm:$0xff]
      %v1122 = vld [vmem:[%s309 + $0x1e0] sm:$0xff]
      %v1123 = vld [vmem:[%s309 + $0x1e8] sm:$0xff]
      %v1124 = vld [vmem:[%s309 + $0x1f0] sm:$0xff]
      %v1125 = vld [vmem:[%s309 + $0x1f8] sm:$0xff]
      %1126 = vmatpush.msra.mxu0 %v1122
      %1127 = vmatpush.msra.mxu0 %v1118
      %1128 = vmatpush.msra.mxu0 %v1114
      %1129 = vmatpush.msra.mxu0 %v1110
      %1130 = vmatpush.msra.mxu0 %v1106
      %1131 = vmatpush.msra.mxu0 %v1102
      %1132 = vmatpush.msra.mxu0 %v1098
      %1133 = vmatpush.msra.mxu0 %v1094
      %1134 = vmatpush.msra.mxu0 %v1090
      %1135 = vmatpush.msra.mxu0 %v1086
      %1136 = vmatpush.msra.mxu0 %v1082
      %1137 = vmatpush.msra.mxu0 %v1078
      %1138 = vmatpush.msra.mxu0 %v1074
      %1139 = vmatpush.msra.mxu0 %v1070
      %1140 = vmatpush.msra.mxu0 %v1066
      %1141 = vmatpush.msra.mxu0 %v1062
      %1142 = vmatmul.f32.gmra.mxu0 %v1052
      %v1143 = vpop.f32.mrf.mxu0
      %v1144 = vadd.f32 0.0, %v1143
      %1145 = vdwg.mxu0
      %1146 = vmatpush.msra.mxu0 %v1123
      %1147 = vmatpush.msra.mxu0 %v1119
      %1148 = vmatpush.msra.mxu0 %v1115
      %1149 = vmatpush.msra.mxu0 %v1111
      %1150 = vmatpush.msra.mxu0 %v1107
      %1151 = vmatpush.msra.mxu0 %v1103
      %1152 = vmatpush.msra.mxu0 %v1099
      %1153 = vmatpush.msra.mxu0 %v1095
      %1154 = vmatpush.msra.mxu0 %v1091
      %1155 = vmatpush.msra.mxu0 %v1087
      %1156 = vmatpush.msra.mxu0 %v1083
      %1157 = vmatpush.msra.mxu0 %v1079
      %1158 = vmatpush.msra.mxu0 %v1075
      %1159 = vmatpush.msra.mxu0 %v1071
      %1160 = vmatpush.msra.mxu0 %v1067
      %1161 = vmatpush.msra.mxu0 %v1063
      %1162 = vmatmul.f32.gmra.mxu0 %v1052
      %v1163 = vpop.f32.mrf.mxu0
      %v1164 = vadd.f32 0.0, %v1163
      %1165 = vdwg.mxu0
      %1166 = vmatpush.msra.mxu0 %v1124
      %1167 = vmatpush.msra.mxu0 %v1120
      %1168 = vmatpush.msra.mxu0 %v1116
      %1169 = vmatpush.msra.mxu0 %v1112
      %1170 = vmatpush.msra.mxu0 %v1108
      %1171 = vmatpush.msra.mxu0 %v1104
      %1172 = vmatpush.msra.mxu0 %v1100
      %1173 = vmatpush.msra.mxu0 %v1096
      %1174 = vmatpush.msra.mxu0 %v1092
      %1175 = vmatpush.msra.mxu0 %v1088
      %1176 = vmatpush.msra.mxu0 %v1084
      %1177 = vmatpush.msra.mxu0 %v1080
      %1178 = vmatpush.msra.mxu0 %v1076
      %1179 = vmatpush.msra.mxu0 %v1072
      %1180 = vmatpush.msra.mxu0 %v1068
      %1181 = vmatpush.msra.mxu0 %v1064
      %1182 = vmatmul.f32.gmra.mxu0 %v1052
      %v1183 = vpop.f32.mrf.mxu0
      %v1184 = vadd.f32 0.0, %v1183
      %1185 = vdwg.mxu0
      %1186 = vmatpush.msra.mxu0 %v1125
      %1187 = vmatpush.msra.mxu0 %v1121
      %1188 = vmatpush.msra.mxu0 %v1117
      %1189 = vmatpush.msra.mxu0 %v1113
      %1190 = vmatpush.msra.mxu0 %v1109
      %1191 = vmatpush.msra.mxu0 %v1105
      %1192 = vmatpush.msra.mxu0 %v1101
      %1193 = vmatpush.msra.mxu0 %v1097
      %1194 = vmatpush.msra.mxu0 %v1093
      %1195 = vmatpush.msra.mxu0 %v1089
      %1196 = vmatpush.msra.mxu0 %v1085
      %1197 = vmatpush.msra.mxu0 %v1081
      %1198 = vmatpush.msra.mxu0 %v1077
      %1199 = vmatpush.msra.mxu0 %v1073
      %1200 = vmatpush.msra.mxu0 %v1069
      %1201 = vmatpush.msra.mxu0 %v1065
      %1202 = vmatmul.f32.gmra.mxu0 %v1052
      %v1203 = vpop.f32.mrf.mxu0
      %v1204 = vadd.f32 0.0, %v1203
      %1205 = vdwg.mxu0
      %v1206 = vadd.f32 %v1058, %v1144
      %v1207 = vadd.f32 %v1059, %v1164
      %v1208 = vadd.f32 %v1060, %v1184
      %v1209 = vadd.f32 %v1061, %v1204
      %v1210 = vxor.u32 %v1206, 2147483648
      %v1211 = vxor.u32 %v1207, 2147483648
      %v1212 = vxor.u32 %v1208, 2147483648
      %v1213 = vmul.f32 %v1210, 1.442695
      %v1214 = vpow.pop %v1213
      %v1215 = vmul.f32 %v1211, 1.442695
      %v1216 = vpow.pop %v1215
      %v1217 = vmul.f32 %v1212, 1.442695
      %v1218 = vpow.pop %v1217
      %v1219 = vadd.f32 %v1214, 1.0
      %v1220 = vadd.f32 %v1216, 1.0
      %v1221 = vadd.f32 %v1218, 1.0
      %v1222 = vrcp.pop %v1219
      %v1223 = vmul.f32 %v1219, %v1222
      %v1224 = vsub.f32 1.0, %v1223
      %v1225 = vmul.f32 %v1222, %v1224
      %v1226 = vadd.f32 %v1222, %v1225
      %vm1227 = vweird.f32 %v1219
      %vm1228 = vweird.f32 %v1222
      %vm1229 = vmor %vm1227, %vm1228
      %v1230 = vsel %vm1229, %v1222, %v1226
      %v1231 = vand.u32 2147483647, %v1219
      %vm1232 = vcmp.eq.f32.partialorder %v1231, 8.507059e+37
      %v1233 = vand.u32 %v1219, 2147483648
      %v1234 = vor.u32 1.1754944e-38, %v1233
      %v1235 = vsel %vm1232, %v1234, %v1230
      %v1236 = vmul.f32 1.0, %v1235
      %v1237 = vrcp.pop %v1220
      %v1238 = vmul.f32 %v1220, %v1237
      %v1239 = vsub.f32 1.0, %v1238
      %v1240 = vmul.f32 %v1237, %v1239
      %v1241 = vadd.f32 %v1237, %v1240
      %vm1242 = vweird.f32 %v1220
      %vm1243 = vweird.f32 %v1237
      %vm1244 = vmor %vm1242, %vm1243
      %v1245 = vsel %vm1244, %v1237, %v1241
      %v1246 = vand.u32 2147483647, %v1220
      %vm1247 = vcmp.eq.f32.partialorder %v1246, 8.507059e+37
      %v1248 = vand.u32 %v1220, 2147483648
      %v1249 = vor.u32 1.1754944e-38, %v1248
      %v1250 = vsel %vm1247, %v1249, %v1245
      %v1251 = vmul.f32 1.0, %v1250
      %v1252 = vrcp.pop %v1221
      %v1253 = vmul.f32 %v1221, %v1252
      %v1254 = vsub.f32 1.0, %v1253
      %v1255 = vmul.f32 %v1252, %v1254
      %v1256 = vadd.f32 %v1252, %v1255
      %vm1257 = vweird.f32 %v1221
      %vm1258 = vweird.f32 %v1252
      %vm1259 = vmor %vm1257, %vm1258
      %v1260 = vsel %vm1259, %v1252, %v1256
      %v1261 = vand.u32 2147483647, %v1221
      %vm1262 = vcmp.eq.f32.partialorder %v1261, 8.507059e+37
      %v1263 = vand.u32 %v1221, 2147483648
      %v1264 = vor.u32 1.1754944e-38, %v1263
      %v1265 = vsel %vm1262, %v1264, %v1260
      %v1266 = vmul.f32 1.0, %v1265
      %v1267 = vtanh.pop %v1209
      %v1268 = vmul.f32 %v1251, %v1050
      %v1269 = vmul.f32 %v1236, %v1267
      %v1270 = vadd.f32 %v1268, %v1269
      %v1271 = vtanh.pop %v1270
      %v1272 = vmul.f32 %v1266, %v1271
      %s1273 = scalar_lea.vmem [#allocation2], 16
      %1274 = vst [vmem:[%s1273] sm:$0xff] %v1272
      %s1275 = smul.u32 3, 4
      %s1276 = smul.addr %s1275, 8
      %s1277 = scalar_lea.vmem [#allocation3], %s1276
      %v1278 = vld [vmem:[%s1277] sm:$0xff]
      %v1279 = vld [vmem:[%s1277 + $0x8] sm:$0xff]
      %v1280 = vld [vmem:[%s1277 + $0x10] sm:$0xff]
      %v1281 = vld [vmem:[%s1277 + $0x18] sm:$0xff]
      %v1282 = vld [vmem:[%s309] sm:$0xff]
      %v1283 = vld [vmem:[%s309 + $0x8] sm:$0xff]
      %v1284 = vld [vmem:[%s309 + $0x10] sm:$0xff]
      %v1285 = vld [vmem:[%s309 + $0x18] sm:$0xff]
      %v1286 = vld [vmem:[%s309 + $0x20] sm:$0xff]
      %v1287 = vld [vmem:[%s309 + $0x28] sm:$0xff]
      %v1288 = vld [vmem:[%s309 + $0x30] sm:$0xff]
      %v1289 = vld [vmem:[%s309 + $0x38] sm:$0xff]
      %v1290 = vld [vmem:[%s309 + $0x40] sm:$0xff]
      %v1291 = vld [vmem:[%s309 + $0x48] sm:$0xff]
      %v1292 = vld [vmem:[%s309 + $0x50] sm:$0xff]
      %v1293 = vld [vmem:[%s309 + $0x58] sm:$0xff]
      %v1294 = vld [vmem:[%s309 + $0x60] sm:$0xff]
      %v1295 = vld [vmem:[%s309 + $0x68] sm:$0xff]
      %v1296 = vld [vmem:[%s309 + $0x70] sm:$0xff]
      %v1297 = vld [vmem:[%s309 + $0x78] sm:$0xff]
      %v1298 = vld [vmem:[%s309 + $0x80] sm:$0xff]
      %v1299 = vld [vmem:[%s309 + $0x88] sm:$0xff]
      %v1300 = vld [vmem:[%s309 + $0x90] sm:$0xff]
      %v1301 = vld [vmem:[%s309 + $0x98] sm:$0xff]
      %v1302 = vld [vmem:[%s309 + $0xa0] sm:$0xff]
      %v1303 = vld [vmem:[%s309 + $0xa8] sm:$0xff]
      %v1304 = vld [vmem:[%s309 + $0xb0] sm:$0xff]
      %v1305 = vld [vmem:[%s309 + $0xb8] sm:$0xff]
      %v1306 = vld [vmem:[%s309 + $0xc0] sm:$0xff]
      %v1307 = vld [vmem:[%s309 + $0xc8] sm:$0xff]
      %v1308 = vld [vmem:[%s309 + $0xd0] sm:$0xff]
      %v1309 = vld [vmem:[%s309 + $0xd8] sm:$0xff]
      %v1310 = vld [vmem:[%s309 + $0xe0] sm:$0xff]
      %v1311 = vld [vmem:[%s309 + $0xe8] sm:$0xff]
      %v1312 = vld [vmem:[%s309 + $0xf0] sm:$0xff]
      %v1313 = vld [vmem:[%s309 + $0xf8] sm:$0xff]
      %v1314 = vld [vmem:[%s309 + $0x100] sm:$0xff]
      %v1315 = vld [vmem:[%s309 + $0x108] sm:$0xff]
      %v1316 = vld [vmem:[%s309 + $0x110] sm:$0xff]
      %v1317 = vld [vmem:[%s309 + $0x118] sm:$0xff]
      %v1318 = vld [vmem:[%s309 + $0x120] sm:$0xff]
      %v1319 = vld [vmem:[%s309 + $0x128] sm:$0xff]
      %v1320 = vld [vmem:[%s309 + $0x130] sm:$0xff]
      %v1321 = vld [vmem:[%s309 + $0x138] sm:$0xff]
      %v1322 = vld [vmem:[%s309 + $0x140] sm:$0xff]
      %v1323 = vld [vmem:[%s309 + $0x148] sm:$0xff]
      %v1324 = vld [vmem:[%s309 + $0x150] sm:$0xff]
      %v1325 = vld [vmem:[%s309 + $0x158] sm:$0xff]
      %v1326 = vld [vmem:[%s309 + $0x160] sm:$0xff]
      %v1327 = vld [vmem:[%s309 + $0x168] sm:$0xff]
      %v1328 = vld [vmem:[%s309 + $0x170] sm:$0xff]
      %v1329 = vld [vmem:[%s309 + $0x178] sm:$0xff]
      %v1330 = vld [vmem:[%s309 + $0x180] sm:$0xff]
      %v1331 = vld [vmem:[%s309 + $0x188] sm:$0xff]
      %v1332 = vld [vmem:[%s309 + $0x190] sm:$0xff]
      %v1333 = vld [vmem:[%s309 + $0x198] sm:$0xff]
      %v1334 = vld [vmem:[%s309 + $0x1a0] sm:$0xff]
      %v1335 = vld [vmem:[%s309 + $0x1a8] sm:$0xff]
      %v1336 = vld [vmem:[%s309 + $0x1b0] sm:$0xff]
      %v1337 = vld [vmem:[%s309 + $0x1b8] sm:$0xff]
      %v1338 = vld [vmem:[%s309 + $0x1c0] sm:$0xff]
      %v1339 = vld [vmem:[%s309 + $0x1c8] sm:$0xff]
      %v1340 = vld [vmem:[%s309 + $0x1d0] sm:$0xff]
      %v1341 = vld [vmem:[%s309 + $0x1d8] sm:$0xff]
      %v1342 = vld [vmem:[%s309 + $0x1e0] sm:$0xff]
      %v1343 = vld [vmem:[%s309 + $0x1e8] sm:$0xff]
      %v1344 = vld [vmem:[%s309 + $0x1f0] sm:$0xff]
      %v1345 = vld [vmem:[%s309 + $0x1f8] sm:$0xff]
      %1346 = vmatpush.msra.mxu0 %v1342
      %1347 = vmatpush.msra.mxu0 %v1338
      %1348 = vmatpush.msra.mxu0 %v1334
      %1349 = vmatpush.msra.mxu0 %v1330
      %1350 = vmatpush.msra.mxu0 %v1326
      %1351 = vmatpush.msra.mxu0 %v1322
      %1352 = vmatpush.msra.mxu0 %v1318
      %1353 = vmatpush.msra.mxu0 %v1314
      %1354 = vmatpush.msra.mxu0 %v1310
      %1355 = vmatpush.msra.mxu0 %v1306
      %1356 = vmatpush.msra.mxu0 %v1302
      %1357 = vmatpush.msra.mxu0 %v1298
      %1358 = vmatpush.msra.mxu0 %v1294
      %1359 = vmatpush.msra.mxu0 %v1290
      %1360 = vmatpush.msra.mxu0 %v1286
      %1361 = vmatpush.msra.mxu0 %v1282
      %1362 = vmatmul.f32.gmra.mxu0 %v1272
      %v1363 = vpop.f32.mrf.mxu0
      %v1364 = vadd.f32 0.0, %v1363
      %1365 = vdwg.mxu0
      %1366 = vmatpush.msra.mxu0 %v1343
      %1367 = vmatpush.msra.mxu0 %v1339
      %1368 = vmatpush.msra.mxu0 %v1335
      %1369 = vmatpush.msra.mxu0 %v1331
      %1370 = vmatpush.msra.mxu0 %v1327
      %1371 = vmatpush.msra.mxu0 %v1323
      %1372 = vmatpush.msra.mxu0 %v1319
      %1373 = vmatpush.msra.mxu0 %v1315
      %1374 = vmatpush.msra.mxu0 %v1311
      %1375 = vmatpush.msra.mxu0 %v1307
      %1376 = vmatpush.msra.mxu0 %v1303
      %1377 = vmatpush.msra.mxu0 %v1299
      %1378 = vmatpush.msra.mxu0 %v1295
      %1379 = vmatpush.msra.mxu0 %v1291
      %1380 = vmatpush.msra.mxu0 %v1287
      %1381 = vmatpush.msra.mxu0 %v1283
      %1382 = vmatmul.f32.gmra.mxu0 %v1272
      %v1383 = vpop.f32.mrf.mxu0
      %v1384 = vadd.f32 0.0, %v1383
      %1385 = vdwg.mxu0
      %1386 = vmatpush.msra.mxu0 %v1344
      %1387 = vmatpush.msra.mxu0 %v1340
      %1388 = vmatpush.msra.mxu0 %v1336
      %1389 = vmatpush.msra.mxu0 %v1332
      %1390 = vmatpush.msra.mxu0 %v1328
      %1391 = vmatpush.msra.mxu0 %v1324
      %1392 = vmatpush.msra.mxu0 %v1320
      %1393 = vmatpush.msra.mxu0 %v1316
      %1394 = vmatpush.msra.mxu0 %v1312
      %1395 = vmatpush.msra.mxu0 %v1308
      %1396 = vmatpush.msra.mxu0 %v1304
      %1397 = vmatpush.msra.mxu0 %v1300
      %1398 = vmatpush.msra.mxu0 %v1296
      %1399 = vmatpush.msra.mxu0 %v1292
      %1400 = vmatpush.msra.mxu0 %v1288
      %1401 = vmatpush.msra.mxu0 %v1284
      %1402 = vmatmul.f32.gmra.mxu0 %v1272
      %v1403 = vpop.f32.mrf.mxu0
      %v1404 = vadd.f32 0.0, %v1403
      %1405 = vdwg.mxu0
      %1406 = vmatpush.msra.mxu0 %v1345
      %1407 = vmatpush.msra.mxu0 %v1341
      %1408 = vmatpush.msra.mxu0 %v1337
      %1409 = vmatpush.msra.mxu0 %v1333
      %1410 = vmatpush.msra.mxu0 %v1329
      %1411 = vmatpush.msra.mxu0 %v1325
      %1412 = vmatpush.msra.mxu0 %v1321
      %1413 = vmatpush.msra.mxu0 %v1317
      %1414 = vmatpush.msra.mxu0 %v1313
      %1415 = vmatpush.msra.mxu0 %v1309
      %1416 = vmatpush.msra.mxu0 %v1305
      %1417 = vmatpush.msra.mxu0 %v1301
      %1418 = vmatpush.msra.mxu0 %v1297
      %1419 = vmatpush.msra.mxu0 %v1293
      %1420 = vmatpush.msra.mxu0 %v1289
      %1421 = vmatpush.msra.mxu0 %v1285
      %1422 = vmatmul.f32.gmra.mxu0 %v1272
      %v1423 = vpop.f32.mrf.mxu0
      %v1424 = vadd.f32 0.0, %v1423
      %1425 = vdwg.mxu0
      %v1426 = vadd.f32 %v1278, %v1364
      %v1427 = vadd.f32 %v1279, %v1384
      %v1428 = vadd.f32 %v1280, %v1404
      %v1429 = vadd.f32 %v1281, %v1424
      %v1430 = vxor.u32 %v1426, 2147483648
      %v1431 = vxor.u32 %v1427, 2147483648
      %v1432 = vxor.u32 %v1428, 2147483648
      %v1433 = vmul.f32 %v1430, 1.442695
      %v1434 = vpow.pop %v1433
      %v1435 = vmul.f32 %v1431, 1.442695
      %v1436 = vpow.pop %v1435
      %v1437 = vmul.f32 %v1432, 1.442695
      %v1438 = vpow.pop %v1437
      %v1439 = vadd.f32 %v1434, 1.0
      %v1440 = vadd.f32 %v1436, 1.0
      %v1441 = vadd.f32 %v1438, 1.0
      %v1442 = vrcp.pop %v1439
      %v1443 = vmul.f32 %v1439, %v1442
      %v1444 = vsub.f32 1.0, %v1443
      %v1445 = vmul.f32 %v1442, %v1444
      %v1446 = vadd.f32 %v1442, %v1445
      %vm1447 = vweird.f32 %v1439
      %vm1448 = vweird.f32 %v1442
      %vm1449 = vmor %vm1447, %vm1448
      %v1450 = vsel %vm1449, %v1442, %v1446
      %v1451 = vand.u32 2147483647, %v1439
      %vm1452 = vcmp.eq.f32.partialorder %v1451, 8.507059e+37
      %v1453 = vand.u32 %v1439, 2147483648
      %v1454 = vor.u32 1.1754944e-38, %v1453
      %v1455 = vsel %vm1452, %v1454, %v1450
      %v1456 = vmul.f32 1.0, %v1455
      %v1457 = vrcp.pop %v1440
      %v1458 = vmul.f32 %v1440, %v1457
      %v1459 = vsub.f32 1.0, %v1458
      %v1460 = vmul.f32 %v1457, %v1459
      %v1461 = vadd.f32 %v1457, %v1460
      %vm1462 = vweird.f32 %v1440
      %vm1463 = vweird.f32 %v1457
      %vm1464 = vmor %vm1462, %vm1463
      %v1465 = vsel %vm1464, %v1457, %v1461
      %v1466 = vand.u32 2147483647, %v1440
      %vm1467 = vcmp.eq.f32.partialorder %v1466, 8.507059e+37
      %v1468 = vand.u32 %v1440, 2147483648
      %v1469 = vor.u32 1.1754944e-38, %v1468
      %v1470 = vsel %vm1467, %v1469, %v1465
      %v1471 = vmul.f32 1.0, %v1470
      %v1472 = vrcp.pop %v1441
      %v1473 = vmul.f32 %v1441, %v1472
      %v1474 = vsub.f32 1.0, %v1473
      %v1475 = vmul.f32 %v1472, %v1474
      %v1476 = vadd.f32 %v1472, %v1475
      %vm1477 = vweird.f32 %v1441
      %vm1478 = vweird.f32 %v1472
      %vm1479 = vmor %vm1477, %vm1478
      %v1480 = vsel %vm1479, %v1472, %v1476
      %v1481 = vand.u32 2147483647, %v1441
      %vm1482 = vcmp.eq.f32.partialorder %v1481, 8.507059e+37
      %v1483 = vand.u32 %v1441, 2147483648
      %v1484 = vor.u32 1.1754944e-38, %v1483
      %v1485 = vsel %vm1482, %v1484, %v1480
      %v1486 = vmul.f32 1.0, %v1485
      %v1487 = vtanh.pop %v1429
      %v1488 = vmul.f32 %v1471, %v1270
      %v1489 = vmul.f32 %v1456, %v1487
      %v1490 = vadd.f32 %v1488, %v1489
      %v1491 = vtanh.pop %v1490
      %v1492 = vmul.f32 %v1486, %v1491
      %s1493 = scalar_lea.vmem [#allocation2], 24
      %1494 = vst [vmem:[%s1493] sm:$0xff] %v1492
      %s1495 = smul.u32 4, 4
      %s1496 = smul.addr %s1495, 8
      %s1497 = scalar_lea.vmem [#allocation3], %s1496
      %v1498 = vld [vmem:[%s1497] sm:$0xff]
      %v1499 = vld [vmem:[%s1497 + $0x8] sm:$0xff]
      %v1500 = vld [vmem:[%s1497 + $0x10] sm:$0xff]
      %v1501 = vld [vmem:[%s1497 + $0x18] sm:$0xff]
      %v1502 = vld [vmem:[%s309] sm:$0xff]
      %v1503 = vld [vmem:[%s309 + $0x8] sm:$0xff]
      %v1504 = vld [vmem:[%s309 + $0x10] sm:$0xff]
      %v1505 = vld [vmem:[%s309 + $0x18] sm:$0xff]
      %v1506 = vld [vmem:[%s309 + $0x20] sm:$0xff]
      %v1507 = vld [vmem:[%s309 + $0x28] sm:$0xff]
      %v1508 = vld [vmem:[%s309 + $0x30] sm:$0xff]
      %v1509 = vld [vmem:[%s309 + $0x38] sm:$0xff]
      %v1510 = vld [vmem:[%s309 + $0x40] sm:$0xff]
      %v1511 = vld [vmem:[%s309 + $0x48] sm:$0xff]
      %v1512 = vld [vmem:[%s309 + $0x50] sm:$0xff]
      %v1513 = vld [vmem:[%s309 + $0x58] sm:$0xff]
      %v1514 = vld [vmem:[%s309 + $0x60] sm:$0xff]
      %v1515 = vld [vmem:[%s309 + $0x68] sm:$0xff]
      %v1516 = vld [vmem:[%s309 + $0x70] sm:$0xff]
      %v1517 = vld [vmem:[%s309 + $0x78] sm:$0xff]
      %v1518 = vld [vmem:[%s309 + $0x80] sm:$0xff]
      %v1519 = vld [vmem:[%s309 + $0x88] sm:$0xff]
      %v1520 = vld [vmem:[%s309 + $0x90] sm:$0xff]
      %v1521 = vld [vmem:[%s309 + $0x98] sm:$0xff]
      %v1522 = vld [vmem:[%s309 + $0xa0] sm:$0xff]
      %v1523 = vld [vmem:[%s309 + $0xa8] sm:$0xff]
      %v1524 = vld [vmem:[%s309 + $0xb0] sm:$0xff]
      %v1525 = vld [vmem:[%s309 + $0xb8] sm:$0xff]
      %v1526 = vld [vmem:[%s309 + $0xc0] sm:$0xff]
      %v1527 = vld [vmem:[%s309 + $0xc8] sm:$0xff]
      %v1528 = vld [vmem:[%s309 + $0xd0] sm:$0xff]
      %v1529 = vld [vmem:[%s309 + $0xd8] sm:$0xff]
      %v1530 = vld [vmem:[%s309 + $0xe0] sm:$0xff]
      %v1531 = vld [vmem:[%s309 + $0xe8] sm:$0xff]
      %v1532 = vld [vmem:[%s309 + $0xf0] sm:$0xff]
      %v1533 = vld [vmem:[%s309 + $0xf8] sm:$0xff]
      %v1534 = vld [vmem:[%s309 + $0x100] sm:$0xff]
      %v1535 = vld [vmem:[%s309 + $0x108] sm:$0xff]
      %v1536 = vld [vmem:[%s309 + $0x110] sm:$0xff]
      %v1537 = vld [vmem:[%s309 + $0x118] sm:$0xff]
      %v1538 = vld [vmem:[%s309 + $0x120] sm:$0xff]
      %v1539 = vld [vmem:[%s309 + $0x128] sm:$0xff]
      %v1540 = vld [vmem:[%s309 + $0x130] sm:$0xff]
      %v1541 = vld [vmem:[%s309 + $0x138] sm:$0xff]
      %v1542 = vld [vmem:[%s309 + $0x140] sm:$0xff]
      %v1543 = vld [vmem:[%s309 + $0x148] sm:$0xff]
      %v1544 = vld [vmem:[%s309 + $0x150] sm:$0xff]
      %v1545 = vld [vmem:[%s309 + $0x158] sm:$0xff]
      %v1546 = vld [vmem:[%s309 + $0x160] sm:$0xff]
      %v1547 = vld [vmem:[%s309 + $0x168] sm:$0xff]
      %v1548 = vld [vmem:[%s309 + $0x170] sm:$0xff]
      %v1549 = vld [vmem:[%s309 + $0x178] sm:$0xff]
      %v1550 = vld [vmem:[%s309 + $0x180] sm:$0xff]
      %v1551 = vld [vmem:[%s309 + $0x188] sm:$0xff]
      %v1552 = vld [vmem:[%s309 + $0x190] sm:$0xff]
      %v1553 = vld [vmem:[%s309 + $0x198] sm:$0xff]
      %v1554 = vld [vmem:[%s309 + $0x1a0] sm:$0xff]
      %v1555 = vld [vmem:[%s309 + $0x1a8] sm:$0xff]
      %v1556 = vld [vmem:[%s309 + $0x1b0] sm:$0xff]
      %v1557 = vld [vmem:[%s309 + $0x1b8] sm:$0xff]
      %v1558 = vld [vmem:[%s309 + $0x1c0] sm:$0xff]
      %v1559 = vld [vmem:[%s309 + $0x1c8] sm:$0xff]
      %v1560 = vld [vmem:[%s309 + $0x1d0] sm:$0xff]
      %v1561 = vld [vmem:[%s309 + $0x1d8] sm:$0xff]
      %v1562 = vld [vmem:[%s309 + $0x1e0] sm:$0xff]
      %v1563 = vld [vmem:[%s309 + $0x1e8] sm:$0xff]
      %v1564 = vld [vmem:[%s309 + $0x1f0] sm:$0xff]
      %v1565 = vld [vmem:[%s309 + $0x1f8] sm:$0xff]
      %1566 = vmatpush.msra.mxu0 %v1562
      %1567 = vmatpush.msra.mxu0 %v1558
      %1568 = vmatpush.msra.mxu0 %v1554
      %1569 = vmatpush.msra.mxu0 %v1550
      %1570 = vmatpush.msra.mxu0 %v1546
      %1571 = vmatpush.msra.mxu0 %v1542
      %1572 = vmatpush.msra.mxu0 %v1538
      %1573 = vmatpush.msra.mxu0 %v1534
      %1574 = vmatpush.msra.mxu0 %v1530
      %1575 = vmatpush.msra.mxu0 %v1526
      %1576 = vmatpush.msra.mxu0 %v1522
      %1577 = vmatpush.msra.mxu0 %v1518
      %1578 = vmatpush.msra.mxu0 %v1514
      %1579 = vmatpush.msra.mxu0 %v1510
      %1580 = vmatpush.msra.mxu0 %v1506
      %1581 = vmatpush.msra.mxu0 %v1502
      %1582 = vmatmul.f32.gmra.mxu0 %v1492
      %v1583 = vpop.f32.mrf.mxu0
      %v1584 = vadd.f32 0.0, %v1583
      %1585 = vdwg.mxu0
      %1586 = vmatpush.msra.mxu0 %v1563
      %1587 = vmatpush.msra.mxu0 %v1559
      %1588 = vmatpush.msra.mxu0 %v1555
      %1589 = vmatpush.msra.mxu0 %v1551
      %1590 = vmatpush.msra.mxu0 %v1547
      %1591 = vmatpush.msra.mxu0 %v1543
      %1592 = vmatpush.msra.mxu0 %v1539
      %1593 = vmatpush.msra.mxu0 %v1535
      %1594 = vmatpush.msra.mxu0 %v1531
      %1595 = vmatpush.msra.mxu0 %v1527
      %1596 = vmatpush.msra.mxu0 %v1523
      %1597 = vmatpush.msra.mxu0 %v1519
      %1598 = vmatpush.msra.mxu0 %v1515
      %1599 = vmatpush.msra.mxu0 %v1511
      %1600 = vmatpush.msra.mxu0 %v1507
      %1601 = vmatpush.msra.mxu0 %v1503
      %1602 = vmatmul.f32.gmra.mxu0 %v1492
      %v1603 = vpop.f32.mrf.mxu0
      %v1604 = vadd.f32 0.0, %v1603
      %1605 = vdwg.mxu0
      %1606 = vmatpush.msra.mxu0 %v1564
      %1607 = vmatpush.msra.mxu0 %v1560
      %1608 = vmatpush.msra.mxu0 %v1556
      %1609 = vmatpush.msra.mxu0 %v1552
      %1610 = vmatpush.msra.mxu0 %v1548
      %1611 = vmatpush.msra.mxu0 %v1544
      %1612 = vmatpush.msra.mxu0 %v1540
      %1613 = vmatpush.msra.mxu0 %v1536
      %1614 = vmatpush.msra.mxu0 %v1532
      %1615 = vmatpush.msra.mxu0 %v1528
      %1616 = vmatpush.msra.mxu0 %v1524
      %1617 = vmatpush.msra.mxu0 %v1520
      %1618 = vmatpush.msra.mxu0 %v1516
      %1619 = vmatpush.msra.mxu0 %v1512
      %1620 = vmatpush.msra.mxu0 %v1508
      %1621 = vmatpush.msra.mxu0 %v1504
      %1622 = vmatmul.f32.gmra.mxu0 %v1492
      %v1623 = vpop.f32.mrf.mxu0
      %v1624 = vadd.f32 0.0, %v1623
      %1625 = vdwg.mxu0
      %1626 = vmatpush.msra.mxu0 %v1565
      %1627 = vmatpush.msra.mxu0 %v1561
      %1628 = vmatpush.msra.mxu0 %v1557
      %1629 = vmatpush.msra.mxu0 %v1553
      %1630 = vmatpush.msra.mxu0 %v1549
      %1631 = vmatpush.msra.mxu0 %v1545
      %1632 = vmatpush.msra.mxu0 %v1541
      %1633 = vmatpush.msra.mxu0 %v1537
      %1634 = vmatpush.msra.mxu0 %v1533
      %1635 = vmatpush.msra.mxu0 %v1529
      %1636 = vmatpush.msra.mxu0 %v1525
      %1637 = vmatpush.msra.mxu0 %v1521
      %1638 = vmatpush.msra.mxu0 %v1517
      %1639 = vmatpush.msra.mxu0 %v1513
      %1640 = vmatpush.msra.mxu0 %v1509
      %1641 = vmatpush.msra.mxu0 %v1505
      %1642 = vmatmul.f32.gmra.mxu0 %v1492
      %v1643 = vpop.f32.mrf.mxu0
      %v1644 = vadd.f32 0.0, %v1643
      %1645 = vdwg.mxu0
      %v1646 = vadd.f32 %v1498, %v1584
      %v1647 = vadd.f32 %v1499, %v1604
      %v1648 = vadd.f32 %v1500, %v1624
      %v1649 = vadd.f32 %v1501, %v1644
      %v1650 = vxor.u32 %v1646, 2147483648
      %v1651 = vxor.u32 %v1647, 2147483648
      %v1652 = vxor.u32 %v1648, 2147483648
      %v1653 = vmul.f32 %v1650, 1.442695
      %v1654 = vpow.pop %v1653
      %v1655 = vmul.f32 %v1651, 1.442695
      %v1656 = vpow.pop %v1655
      %v1657 = vmul.f32 %v1652, 1.442695
      %v1658 = vpow.pop %v1657
      %v1659 = vadd.f32 %v1654, 1.0
      %v1660 = vadd.f32 %v1656, 1.0
      %v1661 = vadd.f32 %v1658, 1.0
      %v1662 = vrcp.pop %v1659
      %v1663 = vmul.f32 %v1659, %v1662
      %v1664 = vsub.f32 1.0, %v1663
      %v1665 = vmul.f32 %v1662, %v1664
      %v1666 = vadd.f32 %v1662, %v1665
      %vm1667 = vweird.f32 %v1659
      %vm1668 = vweird.f32 %v1662
      %vm1669 = vmor %vm1667, %vm1668
      %v1670 = vsel %vm1669, %v1662, %v1666
      %v1671 = vand.u32 2147483647, %v1659
      %vm1672 = vcmp.eq.f32.partialorder %v1671, 8.507059e+37
      %v1673 = vand.u32 %v1659, 2147483648
      %v1674 = vor.u32 1.1754944e-38, %v1673
      %v1675 = vsel %vm1672, %v1674, %v1670
      %v1676 = vmul.f32 1.0, %v1675
      %v1677 = vrcp.pop %v1660
      %v1678 = vmul.f32 %v1660, %v1677
      %v1679 = vsub.f32 1.0, %v1678
      %v1680 = vmul.f32 %v1677, %v1679
      %v1681 = vadd.f32 %v1677, %v1680
      %vm1682 = vweird.f32 %v1660
      %vm1683 = vweird.f32 %v1677
      %vm1684 = vmor %vm1682, %vm1683
      %v1685 = vsel %vm1684, %v1677, %v1681
      %v1686 = vand.u32 2147483647, %v1660
      %vm1687 = vcmp.eq.f32.partialorder %v1686, 8.507059e+37
      %v1688 = vand.u32 %v1660, 2147483648
      %v1689 = vor.u32 1.1754944e-38, %v1688
      %v1690 = vsel %vm1687, %v1689, %v1685
      %v1691 = vmul.f32 1.0, %v1690
      %v1692 = vrcp.pop %v1661
      %v1693 = vmul.f32 %v1661, %v1692
      %v1694 = vsub.f32 1.0, %v1693
      %v1695 = vmul.f32 %v1692, %v1694
      %v1696 = vadd.f32 %v1692, %v1695
      %vm1697 = vweird.f32 %v1661
      %vm1698 = vweird.f32 %v1692
      %vm1699 = vmor %vm1697, %vm1698
      %v1700 = vsel %vm1699, %v1692, %v1696
      %v1701 = vand.u32 2147483647, %v1661
      %vm1702 = vcmp.eq.f32.partialorder %v1701, 8.507059e+37
      %v1703 = vand.u32 %v1661, 2147483648
      %v1704 = vor.u32 1.1754944e-38, %v1703
      %v1705 = vsel %vm1702, %v1704, %v1700
      %v1706 = vmul.f32 1.0, %v1705
      %v1707 = vtanh.pop %v1649
      %v1708 = vmul.f32 %v1691, %v1490
      %v1709 = vmul.f32 %v1676, %v1707
      %v1710 = vadd.f32 %v1708, %v1709
      %v1711 = vtanh.pop %v1710
      %v1712 = vmul.f32 %v1706, %v1711
      %s1713 = scalar_lea.vmem [#allocation2], 32
      %1714 = vst [vmem:[%s1713] sm:$0xff] %v1712
      %s1715 = smul.u32 5, 4
      %s1716 = smul.addr %s1715, 8
      %s1717 = scalar_lea.vmem [#allocation3], %s1716
      %v1718 = vld [vmem:[%s1717] sm:$0xff]
      %v1719 = vld [vmem:[%s1717 + $0x8] sm:$0xff]
      %v1720 = vld [vmem:[%s1717 + $0x10] sm:$0xff]
      %v1721 = vld [vmem:[%s1717 + $0x18] sm:$0xff]
      %v1722 = vld [vmem:[%s309] sm:$0xff]
      %v1723 = vld [vmem:[%s309 + $0x8] sm:$0xff]
      %v1724 = vld [vmem:[%s309 + $0x10] sm:$0xff]
      %v1725 = vld [vmem:[%s309 + $0x18] sm:$0xff]
      %v1726 = vld [vmem:[%s309 + $0x20] sm:$0xff]
      %v1727 = vld [vmem:[%s309 + $0x28] sm:$0xff]
      %v1728 = vld [vmem:[%s309 + $0x30] sm:$0xff]
      %v1729 = vld [vmem:[%s309 + $0x38] sm:$0xff]
      %v1730 = vld [vmem:[%s309 + $0x40] sm:$0xff]
      %v1731 = vld [vmem:[%s309 + $0x48] sm:$0xff]
      %v1732 = vld [vmem:[%s309 + $0x50] sm:$0xff]
      %v1733 = vld [vmem:[%s309 + $0x58] sm:$0xff]
      %v1734 = vld [vmem:[%s309 + $0x60] sm:$0xff]
      %v1735 = vld [vmem:[%s309 + $0x68] sm:$0xff]
      %v1736 = vld [vmem:[%s309 + $0x70] sm:$0xff]
      %v1737 = vld [vmem:[%s309 + $0x78] sm:$0xff]
      %v1738 = vld [vmem:[%s309 + $0x80] sm:$0xff]
      %v1739 = vld [vmem:[%s309 + $0x88] sm:$0xff]
      %v1740 = vld [vmem:[%s309 + $0x90] sm:$0xff]
      %v1741 = vld [vmem:[%s309 + $0x98] sm:$0xff]
      %v1742 = vld [vmem:[%s309 + $0xa0] sm:$0xff]
      %v1743 = vld [vmem:[%s309 + $0xa8] sm:$0xff]
      %v1744 = vld [vmem:[%s309 + $0xb0] sm:$0xff]
      %v1745 = vld [vmem:[%s309 + $0xb8] sm:$0xff]
      %v1746 = vld [vmem:[%s309 + $0xc0] sm:$0xff]
      %v1747 = vld [vmem:[%s309 + $0xc8] sm:$0xff]
      %v1748 = vld [vmem:[%s309 + $0xd0] sm:$0xff]
      %v1749 = vld [vmem:[%s309 + $0xd8] sm:$0xff]
      %v1750 = vld [vmem:[%s309 + $0xe0] sm:$0xff]
      %v1751 = vld [vmem:[%s309 + $0xe8] sm:$0xff]
      %v1752 = vld [vmem:[%s309 + $0xf0] sm:$0xff]
      %v1753 = vld [vmem:[%s309 + $0xf8] sm:$0xff]
      %v1754 = vld [vmem:[%s309 + $0x100] sm:$0xff]
      %v1755 = vld [vmem:[%s309 + $0x108] sm:$0xff]
      %v1756 = vld [vmem:[%s309 + $0x110] sm:$0xff]
      %v1757 = vld [vmem:[%s309 + $0x118] sm:$0xff]
      %v1758 = vld [vmem:[%s309 + $0x120] sm:$0xff]
      %v1759 = vld [vmem:[%s309 + $0x128] sm:$0xff]
      %v1760 = vld [vmem:[%s309 + $0x130] sm:$0xff]
      %v1761 = vld [vmem:[%s309 + $0x138] sm:$0xff]
      %v1762 = vld [vmem:[%s309 + $0x140] sm:$0xff]
      %v1763 = vld [vmem:[%s309 + $0x148] sm:$0xff]
      %v1764 = vld [vmem:[%s309 + $0x150] sm:$0xff]
      %v1765 = vld [vmem:[%s309 + $0x158] sm:$0xff]
      %v1766 = vld [vmem:[%s309 + $0x160] sm:$0xff]
      %v1767 = vld [vmem:[%s309 + $0x168] sm:$0xff]
      %v1768 = vld [vmem:[%s309 + $0x170] sm:$0xff]
      %v1769 = vld [vmem:[%s309 + $0x178] sm:$0xff]
      %v1770 = vld [vmem:[%s309 + $0x180] sm:$0xff]
      %v1771 = vld [vmem:[%s309 + $0x188] sm:$0xff]
      %v1772 = vld [vmem:[%s309 + $0x190] sm:$0xff]
      %v1773 = vld [vmem:[%s309 + $0x198] sm:$0xff]
      %v1774 = vld [vmem:[%s309 + $0x1a0] sm:$0xff]
      %v1775 = vld [vmem:[%s309 + $0x1a8] sm:$0xff]
      %v1776 = vld [vmem:[%s309 + $0x1b0] sm:$0xff]
      %v1777 = vld [vmem:[%s309 + $0x1b8] sm:$0xff]
      %v1778 = vld [vmem:[%s309 + $0x1c0] sm:$0xff]
      %v1779 = vld [vmem:[%s309 + $0x1c8] sm:$0xff]
      %v1780 = vld [vmem:[%s309 + $0x1d0] sm:$0xff]
      %v1781 = vld [vmem:[%s309 + $0x1d8] sm:$0xff]
      %v1782 = vld [vmem:[%s309 + $0x1e0] sm:$0xff]
      %v1783 = vld [vmem:[%s309 + $0x1e8] sm:$0xff]
      %v1784 = vld [vmem:[%s309 + $0x1f0] sm:$0xff]
      %v1785 = vld [vmem:[%s309 + $0x1f8] sm:$0xff]
      %1786 = vmatpush.msra.mxu0 %v1782
      %1787 = vmatpush.msra.mxu0 %v1778
      %1788 = vmatpush.msra.mxu0 %v1774
      %1789 = vmatpush.msra.mxu0 %v1770
      %1790 = vmatpush.msra.mxu0 %v1766
      %1791 = vmatpush.msra.mxu0 %v1762
      %1792 = vmatpush.msra.mxu0 %v1758
      %1793 = vmatpush.msra.mxu0 %v1754
      %1794 = vmatpush.msra.mxu0 %v1750
      %1795 = vmatpush.msra.mxu0 %v1746
      %1796 = vmatpush.msra.mxu0 %v1742
      %1797 = vmatpush.msra.mxu0 %v1738
      %1798 = vmatpush.msra.mxu0 %v1734
      %1799 = vmatpush.msra.mxu0 %v1730
      %1800 = vmatpush.msra.mxu0 %v1726
      %1801 = vmatpush.msra.mxu0 %v1722
      %1802 = vmatmul.f32.gmra.mxu0 %v1712
      %v1803 = vpop.f32.mrf.mxu0
      %v1804 = vadd.f32 0.0, %v1803
      %1805 = vdwg.mxu0
      %1806 = vmatpush.msra.mxu0 %v1783
      %1807 = vmatpush.msra.mxu0 %v1779
      %1808 = vmatpush.msra.mxu0 %v1775
      %1809 = vmatpush.msra.mxu0 %v1771
      %1810 = vmatpush.msra.mxu0 %v1767
      %1811 = vmatpush.msra.mxu0 %v1763
      %1812 = vmatpush.msra.mxu0 %v1759
      %1813 = vmatpush.msra.mxu0 %v1755
      %1814 = vmatpush.msra.mxu0 %v1751
      %1815 = vmatpush.msra.mxu0 %v1747
      %1816 = vmatpush.msra.mxu0 %v1743
      %1817 = vmatpush.msra.mxu0 %v1739
      %1818 = vmatpush.msra.mxu0 %v1735
      %1819 = vmatpush.msra.mxu0 %v1731
      %1820 = vmatpush.msra.mxu0 %v1727
      %1821 = vmatpush.msra.mxu0 %v1723
      %1822 = vmatmul.f32.gmra.mxu0 %v1712
      %v1823 = vpop.f32.mrf.mxu0
      %v1824 = vadd.f32 0.0, %v1823
      %1825 = vdwg.mxu0
      %1826 = vmatpush.msra.mxu0 %v1784
      %1827 = vmatpush.msra.mxu0 %v1780
      %1828 = vmatpush.msra.mxu0 %v1776
      %1829 = vmatpush.msra.mxu0 %v1772
      %1830 = vmatpush.msra.mxu0 %v1768
      %1831 = vmatpush.msra.mxu0 %v1764
      %1832 = vmatpush.msra.mxu0 %v1760
      %1833 = vmatpush.msra.mxu0 %v1756
      %1834 = vmatpush.msra.mxu0 %v1752
      %1835 = vmatpush.msra.mxu0 %v1748
      %1836 = vmatpush.msra.mxu0 %v1744
      %1837 = vmatpush.msra.mxu0 %v1740
      %1838 = vmatpush.msra.mxu0 %v1736
      %1839 = vmatpush.msra.mxu0 %v1732
      %1840 = vmatpush.msra.mxu0 %v1728
      %1841 = vmatpush.msra.mxu0 %v1724
      %1842 = vmatmul.f32.gmra.mxu0 %v1712
      %v1843 = vpop.f32.mrf.mxu0
      %v1844 = vadd.f32 0.0, %v1843
      %1845 = vdwg.mxu0
      %1846 = vmatpush.msra.mxu0 %v1785
      %1847 = vmatpush.msra.mxu0 %v1781
      %1848 = vmatpush.msra.mxu0 %v1777
      %1849 = vmatpush.msra.mxu0 %v1773
      %1850 = vmatpush.msra.mxu0 %v1769
      %1851 = vmatpush.msra.mxu0 %v1765
      %1852 = vmatpush.msra.mxu0 %v1761
      %1853 = vmatpush.msra.mxu0 %v1757
      %1854 = vmatpush.msra.mxu0 %v1753
      %1855 = vmatpush.msra.mxu0 %v1749
      %1856 = vmatpush.msra.mxu0 %v1745
      %1857 = vmatpush.msra.mxu0 %v1741
      %1858 = vmatpush.msra.mxu0 %v1737
      %1859 = vmatpush.msra.mxu0 %v1733
      %1860 = vmatpush.msra.mxu0 %v1729
      %1861 = vmatpush.msra.mxu0 %v1725
      %1862 = vmatmul.f32.gmra.mxu0 %v1712
      %v1863 = vpop.f32.mrf.mxu0
      %v1864 = vadd.f32 0.0, %v1863
      %1865 = vdwg.mxu0
      %v1866 = vadd.f32 %v1718, %v1804
      %v1867 = vadd.f32 %v1719, %v1824
      %v1868 = vadd.f32 %v1720, %v1844
      %v1869 = vadd.f32 %v1721, %v1864
      %v1870 = vxor.u32 %v1866, 2147483648
      %v1871 = vxor.u32 %v1867, 2147483648
      %v1872 = vxor.u32 %v1868, 2147483648
      %v1873 = vmul.f32 %v1870, 1.442695
      %v1874 = vpow.pop %v1873
      %v1875 = vmul.f32 %v1871, 1.442695
      %v1876 = vpow.pop %v1875
      %v1877 = vmul.f32 %v1872, 1.442695
      %v1878 = vpow.pop %v1877
      %v1879 = vadd.f32 %v1874, 1.0
      %v1880 = vadd.f32 %v1876, 1.0
      %v1881 = vadd.f32 %v1878, 1.0
      %v1882 = vrcp.pop %v1879
      %v1883 = vmul.f32 %v1879, %v1882
      %v1884 = vsub.f32 1.0, %v1883
      %v1885 = vmul.f32 %v1882, %v1884
      %v1886 = vadd.f32 %v1882, %v1885
      %vm1887 = vweird.f32 %v1879
      %vm1888 = vweird.f32 %v1882
      %vm1889 = vmor %vm1887, %vm1888
      %v1890 = vsel %vm1889, %v1882, %v1886
      %v1891 = vand.u32 2147483647, %v1879
      %vm1892 = vcmp.eq.f32.partialorder %v1891, 8.507059e+37
      %v1893 = vand.u32 %v1879, 2147483648
      %v1894 = vor.u32 1.1754944e-38, %v1893
      %v1895 = vsel %vm1892, %v1894, %v1890
      %v1896 = vmul.f32 1.0, %v1895
      %v1897 = vrcp.pop %v1880
      %v1898 = vmul.f32 %v1880, %v1897
      %v1899 = vsub.f32 1.0, %v1898
      %v1900 = vmul.f32 %v1897, %v1899
      %v1901 = vadd.f32 %v1897, %v1900
      %vm1902 = vweird.f32 %v1880
      %vm1903 = vweird.f32 %v1897
      %vm1904 = vmor %vm1902, %vm1903
      %v1905 = vsel %vm1904, %v1897, %v1901
      %v1906 = vand.u32 2147483647, %v1880
      %vm1907 = vcmp.eq.f32.partialorder %v1906, 8.507059e+37
      %v1908 = vand.u32 %v1880, 2147483648
      %v1909 = vor.u32 1.1754944e-38, %v1908
      %v1910 = vsel %vm1907, %v1909, %v1905
      %v1911 = vmul.f32 1.0, %v1910
      %v1912 = vrcp.pop %v1881
      %v1913 = vmul.f32 %v1881, %v1912
      %v1914 = vsub.f32 1.0, %v1913
      %v1915 = vmul.f32 %v1912, %v1914
      %v1916 = vadd.f32 %v1912, %v1915
      %vm1917 = vweird.f32 %v1881
      %vm1918 = vweird.f32 %v1912
      %vm1919 = vmor %vm1917, %vm1918
      %v1920 = vsel %vm1919, %v1912, %v1916
      %v1921 = vand.u32 2147483647, %v1881
      %vm1922 = vcmp.eq.f32.partialorder %v1921, 8.507059e+37
      %v1923 = vand.u32 %v1881, 2147483648
      %v1924 = vor.u32 1.1754944e-38, %v1923
      %v1925 = vsel %vm1922, %v1924, %v1920
      %v1926 = vmul.f32 1.0, %v1925
      %v1927 = vtanh.pop %v1869
      %v1928 = vmul.f32 %v1911, %v1710
      %v1929 = vmul.f32 %v1896, %v1927
      %v1930 = vadd.f32 %v1928, %v1929
      %v1931 = vtanh.pop %v1930
      %v1932 = vmul.f32 %v1926, %v1931
      %s1933 = scalar_lea.vmem [#allocation2], 40
      %1934 = vst [vmem:[%s1933] sm:$0xff] %v1932
      %s1935 = smul.u32 6, 4
      %s1936 = smul.addr %s1935, 8
      %s1937 = scalar_lea.vmem [#allocation3], %s1936
      %v1938 = vld [vmem:[%s1937] sm:$0xff]
      %v1939 = vld [vmem:[%s1937 + $0x8] sm:$0xff]
      %v1940 = vld [vmem:[%s1937 + $0x10] sm:$0xff]
      %v1941 = vld [vmem:[%s1937 + $0x18] sm:$0xff]
      %v1942 = vld [vmem:[%s309] sm:$0xff]
      %v1943 = vld [vmem:[%s309 + $0x8] sm:$0xff]
      %v1944 = vld [vmem:[%s309 + $0x10] sm:$0xff]
      %v1945 = vld [vmem:[%s309 + $0x18] sm:$0xff]
      %v1946 = vld [vmem:[%s309 + $0x20] sm:$0xff]
      %v1947 = vld [vmem:[%s309 + $0x28] sm:$0xff]
      %v1948 = vld [vmem:[%s309 + $0x30] sm:$0xff]
      %v1949 = vld [vmem:[%s309 + $0x38] sm:$0xff]
      %v1950 = vld [vmem:[%s309 + $0x40] sm:$0xff]
      %v1951 = vld [vmem:[%s309 + $0x48] sm:$0xff]
      %v1952 = vld [vmem:[%s309 + $0x50] sm:$0xff]
      %v1953 = vld [vmem:[%s309 + $0x58] sm:$0xff]
      %v1954 = vld [vmem:[%s309 + $0x60] sm:$0xff]
      %v1955 = vld [vmem:[%s309 + $0x68] sm:$0xff]
      %v1956 = vld [vmem:[%s309 + $0x70] sm:$0xff]
      %v1957 = vld [vmem:[%s309 + $0x78] sm:$0xff]
      %v1958 = vld [vmem:[%s309 + $0x80] sm:$0xff]
      %v1959 = vld [vmem:[%s309 + $0x88] sm:$0xff]
      %v1960 = vld [vmem:[%s309 + $0x90] sm:$0xff]
      %v1961 = vld [vmem:[%s309 + $0x98] sm:$0xff]
      %v1962 = vld [vmem:[%s309 + $0xa0] sm:$0xff]
      %v1963 = vld [vmem:[%s309 + $0xa8] sm:$0xff]
      %v1964 = vld [vmem:[%s309 + $0xb0] sm:$0xff]
      %v1965 = vld [vmem:[%s309 + $0xb8] sm:$0xff]
      %v1966 = vld [vmem:[%s309 + $0xc0] sm:$0xff]
      %v1967 = vld [vmem:[%s309 + $0xc8] sm:$0xff]
      %v1968 = vld [vmem:[%s309 + $0xd0] sm:$0xff]
      %v1969 = vld [vmem:[%s309 + $0xd8] sm:$0xff]
      %v1970 = vld [vmem:[%s309 + $0xe0] sm:$0xff]
      %v1971 = vld [vmem:[%s309 + $0xe8] sm:$0xff]
      %v1972 = vld [vmem:[%s309 + $0xf0] sm:$0xff]
      %v1973 = vld [vmem:[%s309 + $0xf8] sm:$0xff]
      %v1974 = vld [vmem:[%s309 + $0x100] sm:$0xff]
      %v1975 = vld [vmem:[%s309 + $0x108] sm:$0xff]
      %v1976 = vld [vmem:[%s309 + $0x110] sm:$0xff]
      %v1977 = vld [vmem:[%s309 + $0x118] sm:$0xff]
      %v1978 = vld [vmem:[%s309 + $0x120] sm:$0xff]
      %v1979 = vld [vmem:[%s309 + $0x128] sm:$0xff]
      %v1980 = vld [vmem:[%s309 + $0x130] sm:$0xff]
      %v1981 = vld [vmem:[%s309 + $0x138] sm:$0xff]
      %v1982 = vld [vmem:[%s309 + $0x140] sm:$0xff]
      %v1983 = vld [vmem:[%s309 + $0x148] sm:$0xff]
      %v1984 = vld [vmem:[%s309 + $0x150] sm:$0xff]
      %v1985 = vld [vmem:[%s309 + $0x158] sm:$0xff]
      %v1986 = vld [vmem:[%s309 + $0x160] sm:$0xff]
      %v1987 = vld [vmem:[%s309 + $0x168] sm:$0xff]
      %v1988 = vld [vmem:[%s309 + $0x170] sm:$0xff]
      %v1989 = vld [vmem:[%s309 + $0x178] sm:$0xff]
      %v1990 = vld [vmem:[%s309 + $0x180] sm:$0xff]
      %v1991 = vld [vmem:[%s309 + $0x188] sm:$0xff]
      %v1992 = vld [vmem:[%s309 + $0x190] sm:$0xff]
      %v1993 = vld [vmem:[%s309 + $0x198] sm:$0xff]
      %v1994 = vld [vmem:[%s309 + $0x1a0] sm:$0xff]
      %v1995 = vld [vmem:[%s309 + $0x1a8] sm:$0xff]
      %v1996 = vld [vmem:[%s309 + $0x1b0] sm:$0xff]
      %v1997 = vld [vmem:[%s309 + $0x1b8] sm:$0xff]
      %v1998 = vld [vmem:[%s309 + $0x1c0] sm:$0xff]
      %v1999 = vld [vmem:[%s309 + $0x1c8] sm:$0xff]
      %v2000 = vld [vmem:[%s309 + $0x1d0] sm:$0xff]
      %v2001 = vld [vmem:[%s309 + $0x1d8] sm:$0xff]
      %v2002 = vld [vmem:[%s309 + $0x1e0] sm:$0xff]
      %v2003 = vld [vmem:[%s309 + $0x1e8] sm:$0xff]
      %v2004 = vld [vmem:[%s309 + $0x1f0] sm:$0xff]
      %v2005 = vld [vmem:[%s309 + $0x1f8] sm:$0xff]
      %2006 = vmatpush.msra.mxu0 %v2002
      %2007 = vmatpush.msra.mxu0 %v1998
      %2008 = vmatpush.msra.mxu0 %v1994
      %2009 = vmatpush.msra.mxu0 %v1990
      %2010 = vmatpush.msra.mxu0 %v1986
      %2011 = vmatpush.msra.mxu0 %v1982
      %2012 = vmatpush.msra.mxu0 %v1978
      %2013 = vmatpush.msra.mxu0 %v1974
      %2014 = vmatpush.msra.mxu0 %v1970
      %2015 = vmatpush.msra.mxu0 %v1966
      %2016 = vmatpush.msra.mxu0 %v1962
      %2017 = vmatpush.msra.mxu0 %v1958
      %2018 = vmatpush.msra.mxu0 %v1954
      %2019 = vmatpush.msra.mxu0 %v1950
      %2020 = vmatpush.msra.mxu0 %v1946
      %2021 = vmatpush.msra.mxu0 %v1942
      %2022 = vmatmul.f32.gmra.mxu0 %v1932
      %v2023 = vpop.f32.mrf.mxu0
      %v2024 = vadd.f32 0.0, %v2023
      %2025 = vdwg.mxu0
      %2026 = vmatpush.msra.mxu0 %v2003
      %2027 = vmatpush.msra.mxu0 %v1999
      %2028 = vmatpush.msra.mxu0 %v1995
      %2029 = vmatpush.msra.mxu0 %v1991
      %2030 = vmatpush.msra.mxu0 %v1987
      %2031 = vmatpush.msra.mxu0 %v1983
      %2032 = vmatpush.msra.mxu0 %v1979
      %2033 = vmatpush.msra.mxu0 %v1975
      %2034 = vmatpush.msra.mxu0 %v1971
      %2035 = vmatpush.msra.mxu0 %v1967
      %2036 = vmatpush.msra.mxu0 %v1963
      %2037 = vmatpush.msra.mxu0 %v1959
      %2038 = vmatpush.msra.mxu0 %v1955
      %2039 = vmatpush.msra.mxu0 %v1951
      %2040 = vmatpush.msra.mxu0 %v1947
      %2041 = vmatpush.msra.mxu0 %v1943
      %2042 = vmatmul.f32.gmra.mxu0 %v1932
      %v2043 = vpop.f32.mrf.mxu0
      %v2044 = vadd.f32 0.0, %v2043
      %2045 = vdwg.mxu0
      %2046 = vmatpush.msra.mxu0 %v2004
      %2047 = vmatpush.msra.mxu0 %v2000
      %2048 = vmatpush.msra.mxu0 %v1996
      %2049 = vmatpush.msra.mxu0 %v1992
      %2050 = vmatpush.msra.mxu0 %v1988
      %2051 = vmatpush.msra.mxu0 %v1984
      %2052 = vmatpush.msra.mxu0 %v1980
      %2053 = vmatpush.msra.mxu0 %v1976
      %2054 = vmatpush.msra.mxu0 %v1972
      %2055 = vmatpush.msra.mxu0 %v1968
      %2056 = vmatpush.msra.mxu0 %v1964
      %2057 = vmatpush.msra.mxu0 %v1960
      %2058 = vmatpush.msra.mxu0 %v1956
      %2059 = vmatpush.msra.mxu0 %v1952
      %2060 = vmatpush.msra.mxu0 %v1948
      %2061 = vmatpush.msra.mxu0 %v1944
      %2062 = vmatmul.f32.gmra.mxu0 %v1932
      %v2063 = vpop.f32.mrf.mxu0
      %v2064 = vadd.f32 0.0, %v2063
      %2065 = vdwg.mxu0
      %2066 = vmatpush.msra.mxu0 %v2005
      %2067 = vmatpush.msra.mxu0 %v2001
      %2068 = vmatpush.msra.mxu0 %v1997
      %2069 = vmatpush.msra.mxu0 %v1993
      %2070 = vmatpush.msra.mxu0 %v1989
      %2071 = vmatpush.msra.mxu0 %v1985
      %2072 = vmatpush.msra.mxu0 %v1981
      %2073 = vmatpush.msra.mxu0 %v1977
      %2074 = vmatpush.msra.mxu0 %v1973
      %2075 = vmatpush.msra.mxu0 %v1969
      %2076 = vmatpush.msra.mxu0 %v1965
      %2077 = vmatpush.msra.mxu0 %v1961
      %2078 = vmatpush.msra.mxu0 %v1957
      %2079 = vmatpush.msra.mxu0 %v1953
      %2080 = vmatpush.msra.mxu0 %v1949
      %2081 = vmatpush.msra.mxu0 %v1945
      %2082 = vmatmul.f32.gmra.mxu0 %v1932
      %v2083 = vpop.f32.mrf.mxu0
      %v2084 = vadd.f32 0.0, %v2083
      %2085 = vdwg.mxu0
      %v2086 = vadd.f32 %v1938, %v2024
      %v2087 = vadd.f32 %v1939, %v2044
      %v2088 = vadd.f32 %v1940, %v2064
      %v2089 = vadd.f32 %v1941, %v2084
      %v2090 = vxor.u32 %v2086, 2147483648
      %v2091 = vxor.u32 %v2087, 2147483648
      %v2092 = vxor.u32 %v2088, 2147483648
      %v2093 = vmul.f32 %v2090, 1.442695
      %v2094 = vpow.pop %v2093
      %v2095 = vmul.f32 %v2091, 1.442695
      %v2096 = vpow.pop %v2095
      %v2097 = vmul.f32 %v2092, 1.442695
      %v2098 = vpow.pop %v2097
      %v2099 = vadd.f32 %v2094, 1.0
      %v2100 = vadd.f32 %v2096, 1.0
      %v2101 = vadd.f32 %v2098, 1.0
      %v2102 = vrcp.pop %v2099
      %v2103 = vmul.f32 %v2099, %v2102
      %v2104 = vsub.f32 1.0, %v2103
      %v2105 = vmul.f32 %v2102, %v2104
      %v2106 = vadd.f32 %v2102, %v2105
      %vm2107 = vweird.f32 %v2099
      %vm2108 = vweird.f32 %v2102
      %vm2109 = vmor %vm2107, %vm2108
      %v2110 = vsel %vm2109, %v2102, %v2106
      %v2111 = vand.u32 2147483647, %v2099
      %vm2112 = vcmp.eq.f32.partialorder %v2111, 8.507059e+37
      %v2113 = vand.u32 %v2099, 2147483648
      %v2114 = vor.u32 1.1754944e-38, %v2113
      %v2115 = vsel %vm2112, %v2114, %v2110
      %v2116 = vmul.f32 1.0, %v2115
      %v2117 = vrcp.pop %v2100
      %v2118 = vmul.f32 %v2100, %v2117
      %v2119 = vsub.f32 1.0, %v2118
      %v2120 = vmul.f32 %v2117, %v2119
      %v2121 = vadd.f32 %v2117, %v2120
      %vm2122 = vweird.f32 %v2100
      %vm2123 = vweird.f32 %v2117
      %vm2124 = vmor %vm2122, %vm2123
      %v2125 = vsel %vm2124, %v2117, %v2121
      %v2126 = vand.u32 2147483647, %v2100
      %vm2127 = vcmp.eq.f32.partialorder %v2126, 8.507059e+37
      %v2128 = vand.u32 %v2100, 2147483648
      %v2129 = vor.u32 1.1754944e-38, %v2128
      %v2130 = vsel %vm2127, %v2129, %v2125
      %v2131 = vmul.f32 1.0, %v2130
      %v2132 = vrcp.pop %v2101
      %v2133 = vmul.f32 %v2101, %v2132
      %v2134 = vsub.f32 1.0, %v2133
      %v2135 = vmul.f32 %v2132, %v2134
      %v2136 = vadd.f32 %v2132, %v2135
      %vm2137 = vweird.f32 %v2101
      %vm2138 = vweird.f32 %v2132
      %vm2139 = vmor %vm2137, %vm2138
      %v2140 = vsel %vm2139, %v2132, %v2136
      %v2141 = vand.u32 2147483647, %v2101
      %vm2142 = vcmp.eq.f32.partialorder %v2141, 8.507059e+37
      %v2143 = vand.u32 %v2101, 2147483648
      %v2144 = vor.u32 1.1754944e-38, %v2143
      %v2145 = vsel %vm2142, %v2144, %v2140
      %v2146 = vmul.f32 1.0, %v2145
      %v2147 = vtanh.pop %v2089
      %v2148 = vmul.f32 %v2131, %v1930
      %v2149 = vmul.f32 %v2116, %v2147
      %v2150 = vadd.f32 %v2148, %v2149
      %v2151 = vtanh.pop %v2150
      %v2152 = vmul.f32 %v2146, %v2151
      %s2153 = scalar_lea.vmem [#allocation2], 48
      %2154 = vst [vmem:[%s2153] sm:$0xff] %v2152
      %s2155 = smul.u32 7, 4
      %s2156 = smul.addr %s2155, 8
      %s2157 = scalar_lea.vmem [#allocation3], %s2156
      %v2158 = vld [vmem:[%s2157] sm:$0xff]
      %v2159 = vld [vmem:[%s2157 + $0x8] sm:$0xff]
      %v2160 = vld [vmem:[%s2157 + $0x10] sm:$0xff]
      %v2161 = vld [vmem:[%s2157 + $0x18] sm:$0xff]
      %v2162 = vld [vmem:[%s309] sm:$0xff]
      %v2163 = vld [vmem:[%s309 + $0x8] sm:$0xff]
      %v2164 = vld [vmem:[%s309 + $0x10] sm:$0xff]
      %v2165 = vld [vmem:[%s309 + $0x18] sm:$0xff]
      %v2166 = vld [vmem:[%s309 + $0x20] sm:$0xff]
      %v2167 = vld [vmem:[%s309 + $0x28] sm:$0xff]
      %v2168 = vld [vmem:[%s309 + $0x30] sm:$0xff]
      %v2169 = vld [vmem:[%s309 + $0x38] sm:$0xff]
      %v2170 = vld [vmem:[%s309 + $0x40] sm:$0xff]
      %v2171 = vld [vmem:[%s309 + $0x48] sm:$0xff]
      %v2172 = vld [vmem:[%s309 + $0x50] sm:$0xff]
      %v2173 = vld [vmem:[%s309 + $0x58] sm:$0xff]
      %v2174 = vld [vmem:[%s309 + $0x60] sm:$0xff]
      %v2175 = vld [vmem:[%s309 + $0x68] sm:$0xff]
      %v2176 = vld [vmem:[%s309 + $0x70] sm:$0xff]
      %v2177 = vld [vmem:[%s309 + $0x78] sm:$0xff]
      %v2178 = vld [vmem:[%s309 + $0x80] sm:$0xff]
      %v2179 = vld [vmem:[%s309 + $0x88] sm:$0xff]
      %v2180 = vld [vmem:[%s309 + $0x90] sm:$0xff]
      %v2181 = vld [vmem:[%s309 + $0x98] sm:$0xff]
      %v2182 = vld [vmem:[%s309 + $0xa0] sm:$0xff]
      %v2183 = vld [vmem:[%s309 + $0xa8] sm:$0xff]
      %v2184 = vld [vmem:[%s309 + $0xb0] sm:$0xff]
      %v2185 = vld [vmem:[%s309 + $0xb8] sm:$0xff]
      %v2186 = vld [vmem:[%s309 + $0xc0] sm:$0xff]
      %v2187 = vld [vmem:[%s309 + $0xc8] sm:$0xff]
      %v2188 = vld [vmem:[%s309 + $0xd0] sm:$0xff]
      %v2189 = vld [vmem:[%s309 + $0xd8] sm:$0xff]
      %v2190 = vld [vmem:[%s309 + $0xe0] sm:$0xff]
      %v2191 = vld [vmem:[%s309 + $0xe8] sm:$0xff]
      %v2192 = vld [vmem:[%s309 + $0xf0] sm:$0xff]
      %v2193 = vld [vmem:[%s309 + $0xf8] sm:$0xff]
      %v2194 = vld [vmem:[%s309 + $0x100] sm:$0xff]
      %v2195 = vld [vmem:[%s309 + $0x108] sm:$0xff]
      %v2196 = vld [vmem:[%s309 + $0x110] sm:$0xff]
      %v2197 = vld [vmem:[%s309 + $0x118] sm:$0xff]
      %v2198 = vld [vmem:[%s309 + $0x120] sm:$0xff]
      %v2199 = vld [vmem:[%s309 + $0x128] sm:$0xff]
      %v2200 = vld [vmem:[%s309 + $0x130] sm:$0xff]
      %v2201 = vld [vmem:[%s309 + $0x138] sm:$0xff]
      %v2202 = vld [vmem:[%s309 + $0x140] sm:$0xff]
      %v2203 = vld [vmem:[%s309 + $0x148] sm:$0xff]
      %v2204 = vld [vmem:[%s309 + $0x150] sm:$0xff]
      %v2205 = vld [vmem:[%s309 + $0x158] sm:$0xff]
      %v2206 = vld [vmem:[%s309 + $0x160] sm:$0xff]
      %v2207 = vld [vmem:[%s309 + $0x168] sm:$0xff]
      %v2208 = vld [vmem:[%s309 + $0x170] sm:$0xff]
      %v2209 = vld [vmem:[%s309 + $0x178] sm:$0xff]
      %v2210 = vld [vmem:[%s309 + $0x180] sm:$0xff]
      %v2211 = vld [vmem:[%s309 + $0x188] sm:$0xff]
      %v2212 = vld [vmem:[%s309 + $0x190] sm:$0xff]
      %v2213 = vld [vmem:[%s309 + $0x198] sm:$0xff]
      %v2214 = vld [vmem:[%s309 + $0x1a0] sm:$0xff]
      %v2215 = vld [vmem:[%s309 + $0x1a8] sm:$0xff]
      %v2216 = vld [vmem:[%s309 + $0x1b0] sm:$0xff]
      %v2217 = vld [vmem:[%s309 + $0x1b8] sm:$0xff]
      %v2218 = vld [vmem:[%s309 + $0x1c0] sm:$0xff]
      %v2219 = vld [vmem:[%s309 + $0x1c8] sm:$0xff]
      %v2220 = vld [vmem:[%s309 + $0x1d0] sm:$0xff]
      %v2221 = vld [vmem:[%s309 + $0x1d8] sm:$0xff]
      %v2222 = vld [vmem:[%s309 + $0x1e0] sm:$0xff]
      %v2223 = vld [vmem:[%s309 + $0x1e8] sm:$0xff]
      %v2224 = vld [vmem:[%s309 + $0x1f0] sm:$0xff]
      %v2225 = vld [vmem:[%s309 + $0x1f8] sm:$0xff]
      %2226 = vmatpush.msra.mxu0 %v2222
      %2227 = vmatpush.msra.mxu0 %v2218
      %2228 = vmatpush.msra.mxu0 %v2214
      %2229 = vmatpush.msra.mxu0 %v2210
      %2230 = vmatpush.msra.mxu0 %v2206
      %2231 = vmatpush.msra.mxu0 %v2202
      %2232 = vmatpush.msra.mxu0 %v2198
      %2233 = vmatpush.msra.mxu0 %v2194
      %2234 = vmatpush.msra.mxu0 %v2190
      %2235 = vmatpush.msra.mxu0 %v2186
      %2236 = vmatpush.msra.mxu0 %v2182
      %2237 = vmatpush.msra.mxu0 %v2178
      %2238 = vmatpush.msra.mxu0 %v2174
      %2239 = vmatpush.msra.mxu0 %v2170
      %2240 = vmatpush.msra.mxu0 %v2166
      %2241 = vmatpush.msra.mxu0 %v2162
      %2242 = vmatmul.f32.gmra.mxu0 %v2152
      %v2243 = vpop.f32.mrf.mxu0
      %v2244 = vadd.f32 0.0, %v2243
      %2245 = vdwg.mxu0
      %2246 = vmatpush.msra.mxu0 %v2223
      %2247 = vmatpush.msra.mxu0 %v2219
      %2248 = vmatpush.msra.mxu0 %v2215
      %2249 = vmatpush.msra.mxu0 %v2211
      %2250 = vmatpush.msra.mxu0 %v2207
      %2251 = vmatpush.msra.mxu0 %v2203
      %2252 = vmatpush.msra.mxu0 %v2199
      %2253 = vmatpush.msra.mxu0 %v2195
      %2254 = vmatpush.msra.mxu0 %v2191
      %2255 = vmatpush.msra.mxu0 %v2187
      %2256 = vmatpush.msra.mxu0 %v2183
      %2257 = vmatpush.msra.mxu0 %v2179
      %2258 = vmatpush.msra.mxu0 %v2175
      %2259 = vmatpush.msra.mxu0 %v2171
      %2260 = vmatpush.msra.mxu0 %v2167
      %2261 = vmatpush.msra.mxu0 %v2163
      %2262 = vmatmul.f32.gmra.mxu0 %v2152
      %v2263 = vpop.f32.mrf.mxu0
      %v2264 = vadd.f32 0.0, %v2263
      %2265 = vdwg.mxu0
      %2266 = vmatpush.msra.mxu0 %v2224
      %2267 = vmatpush.msra.mxu0 %v2220
      %2268 = vmatpush.msra.mxu0 %v2216
      %2269 = vmatpush.msra.mxu0 %v2212
      %2270 = vmatpush.msra.mxu0 %v2208
      %2271 = vmatpush.msra.mxu0 %v2204
      %2272 = vmatpush.msra.mxu0 %v2200
      %2273 = vmatpush.msra.mxu0 %v2196
      %2274 = vmatpush.msra.mxu0 %v2192
      %2275 = vmatpush.msra.mxu0 %v2188
      %2276 = vmatpush.msra.mxu0 %v2184
      %2277 = vmatpush.msra.mxu0 %v2180
      %2278 = vmatpush.msra.mxu0 %v2176
      %2279 = vmatpush.msra.mxu0 %v2172
      %2280 = vmatpush.msra.mxu0 %v2168
      %2281 = vmatpush.msra.mxu0 %v2164
      %2282 = vmatmul.f32.gmra.mxu0 %v2152
      %v2283 = vpop.f32.mrf.mxu0
      %v2284 = vadd.f32 0.0, %v2283
      %2285 = vdwg.mxu0
      %2286 = vmatpush.msra.mxu0 %v2225
      %2287 = vmatpush.msra.mxu0 %v2221
      %2288 = vmatpush.msra.mxu0 %v2217
      %2289 = vmatpush.msra.mxu0 %v2213
      %2290 = vmatpush.msra.mxu0 %v2209
      %2291 = vmatpush.msra.mxu0 %v2205
      %2292 = vmatpush.msra.mxu0 %v2201
      %2293 = vmatpush.msra.mxu0 %v2197
      %2294 = vmatpush.msra.mxu0 %v2193
      %2295 = vmatpush.msra.mxu0 %v2189
      %2296 = vmatpush.msra.mxu0 %v2185
      %2297 = vmatpush.msra.mxu0 %v2181
      %2298 = vmatpush.msra.mxu0 %v2177
      %2299 = vmatpush.msra.mxu0 %v2173
      %2300 = vmatpush.msra.mxu0 %v2169
      %2301 = vmatpush.msra.mxu0 %v2165
      %2302 = vmatmul.f32.gmra.mxu0 %v2152
      %v2303 = vpop.f32.mrf.mxu0
      %v2304 = vadd.f32 0.0, %v2303
      %2305 = vdwg.mxu0
      %v2306 = vadd.f32 %v2158, %v2244
      %v2307 = vadd.f32 %v2159, %v2264
      %v2308 = vadd.f32 %v2160, %v2284
      %v2309 = vadd.f32 %v2161, %v2304
      %v2310 = vxor.u32 %v2306, 2147483648
      %v2311 = vxor.u32 %v2307, 2147483648
      %v2312 = vxor.u32 %v2308, 2147483648
      %v2313 = vmul.f32 %v2310, 1.442695
      %v2314 = vpow.pop %v2313
      %v2315 = vmul.f32 %v2311, 1.442695
      %v2316 = vpow.pop %v2315
      %v2317 = vmul.f32 %v2312, 1.442695
      %v2318 = vpow.pop %v2317
      %v2319 = vadd.f32 %v2314, 1.0
      %v2320 = vadd.f32 %v2316, 1.0
      %v2321 = vadd.f32 %v2318, 1.0
      %v2322 = vrcp.pop %v2319
      %v2323 = vmul.f32 %v2319, %v2322
      %v2324 = vsub.f32 1.0, %v2323
      %v2325 = vmul.f32 %v2322, %v2324
      %v2326 = vadd.f32 %v2322, %v2325
      %vm2327 = vweird.f32 %v2319
      %vm2328 = vweird.f32 %v2322
      %vm2329 = vmor %vm2327, %vm2328
      %v2330 = vsel %vm2329, %v2322, %v2326
      %v2331 = vand.u32 2147483647, %v2319
      %vm2332 = vcmp.eq.f32.partialorder %v2331, 8.507059e+37
      %v2333 = vand.u32 %v2319, 2147483648
      %v2334 = vor.u32 1.1754944e-38, %v2333
      %v2335 = vsel %vm2332, %v2334, %v2330
      %v2336 = vmul.f32 1.0, %v2335
      %v2337 = vrcp.pop %v2320
      %v2338 = vmul.f32 %v2320, %v2337
      %v2339 = vsub.f32 1.0, %v2338
      %v2340 = vmul.f32 %v2337, %v2339
      %v2341 = vadd.f32 %v2337, %v2340
      %vm2342 = vweird.f32 %v2320
      %vm2343 = vweird.f32 %v2337
      %vm2344 = vmor %vm2342, %vm2343
      %v2345 = vsel %vm2344, %v2337, %v2341
      %v2346 = vand.u32 2147483647, %v2320
      %vm2347 = vcmp.eq.f32.partialorder %v2346, 8.507059e+37
      %v2348 = vand.u32 %v2320, 2147483648
      %v2349 = vor.u32 1.1754944e-38, %v2348
      %v2350 = vsel %vm2347, %v2349, %v2345
      %v2351 = vmul.f32 1.0, %v2350
      %v2352 = vrcp.pop %v2321
      %v2353 = vmul.f32 %v2321, %v2352
      %v2354 = vsub.f32 1.0, %v2353
      %v2355 = vmul.f32 %v2352, %v2354
      %v2356 = vadd.f32 %v2352, %v2355
      %vm2357 = vweird.f32 %v2321
      %vm2358 = vweird.f32 %v2352
      %vm2359 = vmor %vm2357, %vm2358
      %v2360 = vsel %vm2359, %v2352, %v2356
      %v2361 = vand.u32 2147483647, %v2321
      %vm2362 = vcmp.eq.f32.partialorder %v2361, 8.507059e+37
      %v2363 = vand.u32 %v2321, 2147483648
      %v2364 = vor.u32 1.1754944e-38, %v2363
      %v2365 = vsel %vm2362, %v2364, %v2360
      %v2366 = vmul.f32 1.0, %v2365
      %v2367 = vtanh.pop %v2309
      %v2368 = vmul.f32 %v2351, %v2150
      %v2369 = vmul.f32 %v2336, %v2367
      %v2370 = vadd.f32 %v2368, %v2369
      %v2371 = vtanh.pop %v2370
      %v2372 = vmul.f32 %v2366, %v2371
      %s2373 = scalar_lea.vmem [#allocation2], 56
      %2374 = vst [vmem:[%s2373] sm:$0xff] %v2372
      %p2375 = scmp.eq.s32.totalorder %s24, 1
      // Predicated region
      $region49: #{multivariate_lstm_forward.1} parent=43 // pred_check
        %p2376 = pneg %p2375
      $region50: #{multivariate_lstm_forward.1} parent=43 // pred_check_branch
        %2378 = sbr.rel (%p2376) target = $region52
      $region51: #{multivariate_lstm_forward.1} parent=43 // pred_region
        %v2379 = vld [vmem:[%s4] sm:$0x1]
        %v2381 = vperm.slane %v2379, 0
        %v2383 = vmul.f32 %v2372, %v2381
        %2384 = vadd.xlane.f32.xlu0 %v2383
        %v2385 = vpop.xlane.xlu0 %2384
        %v2386 = vld [vmem:[#allocation4] sm:$0x1]
        %v2388 = vperm.slane %v2386, 0
        %v2390 = vadd.f32 %v2385, %v2388
        %vm2391 = vcmask 7168
        %2392 = vst.msk [vmem:[%s317] sm:$0xff] %vm2391, %v2390
      $region52: #{multivariate_lstm_forward.1} parent=43 // pred_fallthru
        _
      %p2393 = scmp.lt.s32.totalorder %s23, 0
      %s2394 = scalar_select %p2393, %s23, 0
      %s2395 = smul.addr %s2394, 8
      %s2396 = scalar_lea.vmem %s6, %s2395
      // Predicated region
      $region53: #{multivariate_lstm_forward.1} parent=43 // pred_check
        %p2397 = pneg %p195
      $region54: #{multivariate_lstm_forward.1} parent=43 // pred_check_branch
        %2399 = sbr.rel (%p2397) target = $region56
      $region55: #{multivariate_lstm_forward.1} parent=43 // pred_region
        _
      $region56: #{multivariate_lstm_forward.1} parent=43 // pred_fallthru
        _
      // Predicated region
      $region57: #{multivariate_lstm_forward.1} parent=43 // pred_check
        %p2400 = pneg %p195
      $region58: #{multivariate_lstm_forward.1} parent=43 // pred_check_branch
        %2402 = sbr.rel (%p2400) target = $region60
      $region59: #{multivariate_lstm_forward.1} parent=43 // pred_region
        %p2403 = scmp.lt.s32.totalorder %s23, 0
        %s2404 = scalar_select %p2403, %s23, 0
        %s2405 = smul.addr %s2404, 8
        %s2406 = scalar_lea.vmem %s6, %s2405
      $region60: #{multivariate_lstm_forward.1} parent=43 // pred_fallthru
        _
    $region44: #{multivariate_lstm_forward.1} parent=5 // pred_fallthru
      _
    %p2407 = scmp.le.s32.totalorder 2, %s14
    // Predicated region
    $region61: #{multivariate_lstm_forward.1} parent=5 // pred_check
      %p2408 = pneg %p2407
    $region62: #{multivariate_lstm_forward.1} parent=5 // pred_check_branch
      %2410 = sbr.rel (%p2408) target = $region64
    $region63: #{multivariate_lstm_forward.1} parent=5 // pred_region
      %s2411 = ssub.s32 %s14, 2
    $region64: #{multivariate_lstm_forward.1} parent=5 // pred_fallthru
      _
  $region6: #{multivariate_lstm_forward.1} parent=0 // loop_footer
    %s18 = sadd.s32 1, %s14
  $region7: #{multivariate_lstm_forward.1} parent=0 // loop_footer_branch
    %13 = sbr.rel target = $region3
  $region8: #{multivariate_lstm_forward.1} parent=0 // loop_exit
    _

</llo_original>
